<compile_context>
chip_gen: v7x
topology: tpu7x:2x2x1
jax: 0.10.0
libtpu: 0.0.40
codegen_flags: <defaults>
</compile_context>

<pallas_src>
import functools

import jax
import jax.numpy as jnp
from jax.experimental import pallas as pl
from jax.experimental.pallas import tpu as pltpu

K_PAD = 128        # padded feature width (49 real features + zero pad), lane-dense
OUT_PAD = 128      # padded (lane-dense) output width (2 real logits + zero pad)
N_REAL_FEATS = 49

# padded per-layer (in, out) dims fed to the kernel
_PAD_IN = (128, 1024, 512, 256, 128, 64, 128)
_PAD_OUT = (1024, 512, 256, 128, 64, 128, 128)
# true per-layer (in, out) dims of the PyTorch module
_TRUE_IN = (49, 1024, 512, 256, 128, 64, 16)
_TRUE_OUT = (1024, 512, 256, 128, 64, 16, 2)

# Set to pl.Buffered(1) by _probe_single_buffering() when supported.
_WEIGHT_PIPELINE_MODE = None


def _round_up(x, m):
    return ((x + m - 1) // m) * m


def _probe_single_buffering():
    """Enable single-buffered VMEM-resident weight blocks if this JAX supports it."""
    global _WEIGHT_PIPELINE_MODE
    try:
        def _copy(x_ref, o_ref):
            o_ref[...] = x_ref[...] + 1.0

        f = pl.pallas_call(
            _copy,
            out_shape=jax.ShapeDtypeStruct((16, 128), jnp.float32),
            grid=(2,),
            in_specs=[pl.BlockSpec((8, 128), lambda i: (0, 0),
                                   pipeline_mode=pl.Buffered(1))],
            out_specs=pl.BlockSpec((8, 128), lambda i: (i, 0)),
            compiler_params=pltpu.CompilerParams(
                dimension_semantics=("parallel",)),
        )
        jax.block_until_ready(f(jnp.ones((8, 128), jnp.float32)))
        _WEIGHT_PIPELINE_MODE = pl.Buffered(1)
    except Exception:
        # Older JAX / unsupported lowering: keep default double-buffering.
        _WEIGHT_PIPELINE_MODE = None


def _resident_spec(shape):
    """Full-extent block with a constant index_map -> stays VMEM-resident."""
    if _WEIGHT_PIPELINE_MODE is not None:
        return pl.BlockSpec(shape, lambda i: (0, 0),
                            pipeline_mode=_WEIGHT_PIPELINE_MODE)
    return pl.BlockSpec(shape, lambda i: (0, 0))


def _vmem_cap_bytes():
    """~75% of physical VMEM: ~48 MiB on v7x (64 MiB), up to ~100 MiB on v5e/v6e."""
    try:
        cap = int(pltpu.get_tpu_info().vmem_capacity_bytes)
        return max(16 << 20, min(int(0.75 * cap), 100 << 20))
    except Exception:
        return 48 << 20


# ---------------------------------------------------------------------------
# Pallas kernel: 7 chained (matmul + bias + ReLU) layers, weights VMEM-resident
# ---------------------------------------------------------------------------
def mlp7_kernel(x_ref,
                w1_ref, b1_ref, w2_ref, b2_ref, w3_ref, b3_ref,
                w4_ref, b4_ref, w5_ref, b5_ref, w6_ref, b6_ref,
                w7_ref, b7_ref,
                o_ref):
    def layer(h, w_ref, b_ref, relu):
        # bf16 x bf16 matmul on the MXU, f32 accumulation, f32 bias add.
        y = jnp.dot(h, w_ref[...], preferred_element_type=jnp.float32) + b_ref[...]
        if relu:
            # Keep inter-layer activations bf16: halves VMEM + ld/st traffic.
            return jnp.maximum(y, 0.0).astype(jnp.bfloat16)
        return y

    h = x_ref[...]                                   # (TB, 128) bf16
    h = layer(h, w1_ref, b1_ref, relu=True)
    h = layer(h, w2_ref, b2_ref, relu=True)
    h = layer(h, w3_ref, b3_ref, relu=True)
    h = layer(h, w4_ref, b4_ref, relu=True)
    h = layer(h, w5_ref, b5_ref, relu=True)
    h = layer(h, w6_ref, b6_ref, relu=True)
    y = layer(h, w7_ref, b7_ref, relu=False)         # (TB, 128) f32
    o_ref[...] = y.astype(o_ref.dtype)               # bf16 lane-dense writeback


def mlp7_pallas(feats_padded, params, tb):
    """feats_padded: [B_pad, 128] bf16 (B_pad % tb == 0).
       params: 7 pairs (W bf16 [in_pad, out_pad], b f32 [1, out_pad])."""
    b_pad = feats_padded.shape[0]
    assert b_pad % tb == 0 and tb % 8 == 0

    flat = []
    in_specs = [pl.BlockSpec((tb, K_PAD), lambda i: (i, 0))]
    for w, b in params:
        flat.extend([w, b])
        in_specs.append(_resident_spec(w.shape))
        in_specs.append(_resident_spec(b.shape))

    # VMEM budget: resident weights + streamed bf16 tiles + live activations.
    weight_bytes = sum(int(w.size) * w.dtype.itemsize + int(b.size) * b.dtype.itemsize
                       for w, b in params)
    if _WEIGHT_PIPELINE_MODE is None:
        weight_bytes *= 2                                   # double-buffered fallback
    io_bytes = 2 * tb * (K_PAD + OUT_PAD) * 2               # double-buffered bf16 in/out tiles
    # peak live intermediates: f32 pre-ReLU + bf16 post-ReLU of the widest layers
    act_bytes = tb * (1024 * (4 + 2) + 512 * (4 + 2) + 256 * 4 + 128 * 4)
    vmem_limit = int(min(2 * (weight_bytes + io_bytes + act_bytes) + (4 << 20),
                         _vmem_cap_bytes()))
    vmem_limit = max(vmem_limit, 16 << 20)

    return pl.pallas_call(
        mlp7_kernel,
        out_shape=jax.ShapeDtypeStruct((b_pad, OUT_PAD), jnp.bfloat16),
        grid=(b_pad // tb,),
        in_specs=in_specs,
        out_specs=pl.BlockSpec((tb, OUT_PAD), lambda i: (i, 0)),
        compiler_params=pltpu.CompilerParams(
            dimension_semantics=("parallel",),  # batch tiles shard over v7x's 2 TCs
            vmem_limit_bytes=vmem_limit),
    )(feats_padded, *flat)


# ---------------------------------------------------------------------------
# Parameter init (deterministic, mimicking PyTorch defaults) + Pallas packing
# ---------------------------------------------------------------------------
def init_params(key):
    keys = iter(jax.random.split(key, 32))

    def embedding(n, d):
        # nn.Embedding default: N(0, 1)
        return jax.random.normal(next(keys), (n, d), dtype=jnp.float32)

    def linear(fan_in, fan_out):
        # nn.Linear default: U(-1/sqrt(fan_in), 1/sqrt(fan_in)); stored [in, out]
        bound = 1.0 / jnp.sqrt(jnp.float32(fan_in))
        w = jax.random.uniform(next(keys), (fan_in, fan_out),
                               minval=-bound, maxval=bound, dtype=jnp.float32)
        b = jax.random.uniform(next(keys), (1, fan_out),
                               minval=-bound, maxval=bound, dtype=jnp.float32)
        return w, b

    embeds = {
        "sex":     embedding(3, 2),
        "multi_a": embedding(2561, 13),
        "multi_b": embedding(291, 6),
        "multi_c": embedding(428, 7),
        "multi_d": embedding(1556, 11),
    }
    fcs = [linear(_TRUE_IN[i], _TRUE_OUT[i]) for i in range(7)]
    return embeds, fcs


def prepare_pallas_params(fcs):
    """Zero-pad to aligned shapes and cast weights to bf16 (biases stay f32)."""
    padded = []
    for (w, b), ip, op in zip(fcs, _PAD_IN, _PAD_OUT):
        wp = jnp.zeros((ip, op), jnp.float32).at[:w.shape[0], :w.shape[1]].set(w)
        bp = jnp.zeros((1, op), jnp.float32).at[:, :b.shape[1]].set(b)
        padded.append((wp.astype(jnp.bfloat16), bp))
    return padded


# ---------------------------------------------------------------------------
# Forward: JAX glue (embedding gather + padded concat) + Pallas MLP kernel
# ---------------------------------------------------------------------------
def build_feats_padded(x, embeds):
    """Gather embeddings, concat with continuous cols, fold the zero feature
    pad into the concat -> single [B, K_PAD] bf16 buffer."""
    B = x.shape[0]
    ids = x.astype(jnp.int32)
    sex     = embeds["sex"][ids[:, 0]]
    multi_a = embeds["multi_a"][ids[:, 7]]
    multi_b = embeds["multi_b"][ids[:, 8]]
    multi_c = embeds["multi_c"][ids[:, 9]]
    multi_d = embeds["multi_d"][ids[:, 10]]
    pieces = [x[:, 2:7], x[:, 11:16], sex, multi_a, multi_b, multi_c, multi_d]
    pieces = [p.astype(jnp.bfloat16) for p in pieces]
    pieces.append(jnp.zeros((B, K_PAD - N_REAL_FEATS), jnp.bfloat16))
    return jnp.concatenate(pieces, axis=1)               # [B, 128] bf16


@functools.partial(jax.jit, static_argnames=("tb",))
def mynet7_forward(x, embeds, pallas_fcs, tb=1024):
    B = x.shape[0]
    feats = build_feats_padded(x, embeds)                 # [B, 128] bf16
    tb = _round_up(max(8, min(tb, _round_up(B, 8))), 8)
    if B > 8:
        # Keep >= 2 grid steps so both v7x TensorCores get work.
        tb = min(tb, max(8, _round_up((B + 1) // 2, 8)))
    b_pad = _round_up(B, tb)
    if b_pad > B:
        feats = jnp.pad(feats, ((0, b_pad - B), (0, 0)))
    out = mlp7_pallas(feats, pallas_fcs, tb)              # [B_pad, 128] bf16
    return out[:B, :2].astype(jnp.float32)


def mynet7_reference(x, embeds, pallas_fcs):
    """Pure-JAX reference replicating the kernel's numerics (bf16 weights and
    activations, f32 accumulation, bf16 final rounding)."""
    h = build_feats_padded(x, embeds)
    for i, (w, b) in enumerate(pallas_fcs):
        y = jnp.dot(h, w, preferred_element_type=jnp.float32) + b
        h = jnp.maximum(y, 0.0).astype(jnp.bfloat16) if i < 6 else y
    return h[:, :2].astype(jnp.bfloat16).astype(jnp.float32)


def _make_input(key, B):
    k_cont, k0, k7, k8, k9, k10 = jax.random.split(key, 6)
    x = jax.random.normal(k_cont, (B, 16), dtype=jnp.float32)
    x = x.at[:, 0].set(jax.random.randint(k0, (B,), 0, 3).astype(jnp.float32))
    x = x.at[:, 7].set(jax.random.randint(k7, (B,), 0, 2561).astype(jnp.float32))
    x = x.at[:, 8].set(jax.random.randint(k8, (B,), 0, 291).astype(jnp.float32))
    x = x.at[:, 9].set(jax.random.randint(k9, (B,), 0, 428).astype(jnp.float32))
    x = x.at[:, 10].set(jax.random.randint(k10, (B,), 0, 1556).astype(jnp.float32))
    return x


if __name__ == "__main__":
    _probe_single_buffering()   # enable pl.Buffered(1) weight blocks if supported

    key = jax.random.PRNGKey(0)
    k_param, k_in1, k_in2, k_in3 = jax.random.split(key, 4)

    embeds, fcs = init_params(k_param)
    pallas_fcs = prepare_pallas_params(fcs)

    # Small-batch case (single grid step).
    x_small = _make_input(k_in1, 8)
    out_small = jax.block_until_ready(mynet7_forward(x_small, embeds, pallas_fcs))
    ref_small = jax.block_until_ready(mynet7_reference(x_small, embeds, pallas_fcs))
    assert out_small.shape == (8, 2), out_small.shape
    assert jnp.allclose(out_small, ref_small, rtol=2e-2, atol=2e-2), (out_small, ref_small)

    # Multi-tile case (batch grid + row padding), tb=32 -> grid=(3,).
    x_big = _make_input(k_in2, 90)
    out_big = jax.block_until_ready(mynet7_forward(x_big, embeds, pallas_fcs, tb=32))
    ref_big = jax.block_until_ready(mynet7_reference(x_big, embeds, pallas_fcs))
    assert out_big.shape == (90, 2), out_big.shape
    assert jnp.allclose(out_big, ref_big, rtol=2e-2, atol=2e-2), (out_big, ref_big)

    # Medium batch with the default tb: exercises the >=2-grid-step clamp (grid=(2,)).
    x_med = _make_input(k_in3, 256)
    out_med = jax.block_until_ready(mynet7_forward(x_med, embeds, pallas_fcs))
    ref_med = jax.block_until_ready(mynet7_reference(x_med, embeds, pallas_fcs))
    assert out_med.shape == (256, 2), out_med.shape
    assert jnp.allclose(out_med, ref_med, rtol=2e-2, atol=2e-2), (out_med, ref_med)

    print("KERNEL_OK")
</pallas_src>

<mosaic_0001>
module attributes {stable_mosaic.version = 11 : i64} {
  func.func @_copy(%arg0: i32, %arg1: memref<8x128xf32, #tpu.memory_space<vmem>>, %arg2: memref<8x128xf32, #tpu.memory_space<vmem>>) attributes {dimension_semantics = [#tpu.dimension_semantics<parallel>], iteration_bounds = array<i64: 2>, scalar_prefetch = 0 : i64, scratch_operands = 0 : i64, tpu.core_type = #tpu.core_type<tc>, window_params = [{pipeline_mode = #tpu.pipeline_mode<synchronous>, transform_indices = @transform_0, window_bounds = array<i64: 8, 128>}, {transform_indices = @transform_1, window_bounds = array<i64: 8, 128>}]} {
    %c0 = arith.constant 0 : index
    %c0_0 = arith.constant 0 : index
    %0 = vector.load %arg1[%c0, %c0_0] : memref<8x128xf32, #tpu.memory_space<vmem>>, vector<8x128xf32>
    %cst = arith.constant 1.000000e+00 : f32
    %1 = vector.broadcast %cst : f32 to vector<8x128xf32>
    %2 = arith.addf %0, %1 : vector<8x128xf32>
    %c0_1 = arith.constant 0 : index
    %c0_2 = arith.constant 0 : index
    %3 = vector.load %arg2[%c0_1, %c0_2] : memref<8x128xf32, #tpu.memory_space<vmem>>, vector<8x128xf32>
    tpu.vector_store %arg2[%c0_1, %c0_2], %2 {strides = array<i32>} : memref<8x128xf32, #tpu.memory_space<vmem>>, vector<8x128xf32>,
    return
  }
  func.func @transform_0(%arg0: i32) -> (i32, i32) {
    %c0_i32 = arith.constant 0 : i32
    %c0_i32_0 = arith.constant 0 : i32
    %c0_i32_1 = arith.constant 0 : i32
    return %c0_i32, %c0_i32_0 : i32, i32
  }
  func.func @transform_1(%arg0: i32) -> (i32, i32) {
    %c0_i32 = arith.constant 0 : i32
    %c0_i32_0 = arith.constant 0 : i32
    return %arg0, %c0_i32 : i32, i32
  }
}

module attributes {stable_mosaic.version = 11 : i64} {
  func.func @mlp7_kernel(%arg0: i32, %arg1: memref<8x128xbf16, #tpu.memory_space<vmem>>, %arg2: memref<128x1024xbf16, #tpu.memory_space<vmem>>, %arg3: memref<1x1024xf32, #tpu.memory_space<vmem>>, %arg4: memref<1024x512xbf16, #tpu.memory_space<vmem>>, %arg5: memref<1x512xf32, #tpu.memory_space<vmem>>, %arg6: memref<512x256xbf16, #tpu.memory_space<vmem>>, %arg7: memref<1x256xf32, #tpu.memory_space<vmem>>, %arg8: memref<256x128xbf16, #tpu.memory_space<vmem>>, %arg9: memref<1x128xf32, #tpu.memory_space<vmem>>, %arg10: memref<128x64xbf16, #tpu.memory_space<vmem>>, %arg11: memref<1x64xf32, #tpu.memory_space<vmem>>, %arg12: memref<64x128xbf16, #tpu.memory_space<vmem>>, %arg13: memref<1x128xf32, #tpu.memory_space<vmem>>, %arg14: memref<128x128xbf16, #tpu.memory_space<vmem>>, %arg15: memref<1x128xf32, #tpu.memory_space<vmem>>, %arg16: memref<8x128xbf16, #tpu.memory_space<vmem>>) attributes {dimension_semantics = [#tpu.dimension_semantics<parallel>], iteration_bounds = array<i64: 1>, scalar_prefetch = 0 : i64, scratch_operands = 0 : i64, tpu.core_type = #tpu.core_type<tc>, window_params = [{transform_indices = @transform_0, window_bounds = array<i64: 8, 128>}, {pipeline_mode = #tpu.pipeline_mode<synchronous>, transform_indices = @transform_1, window_bounds = array<i64: 128, 1024>}, {pipeline_mode = #tpu.pipeline_mode<synchronous>, transform_indices = @transform_2, window_bounds = array<i64: 1, 1024>}, {pipeline_mode = #tpu.pipeline_mode<synchronous>, transform_indices = @transform_3, window_bounds = array<i64: 1024, 512>}, {pipeline_mode = #tpu.pipeline_mode<synchronous>, transform_indices = @transform_4, window_bounds = array<i64: 1, 512>}, {pipeline_mode = #tpu.pipeline_mode<synchronous>, transform_indices = @transform_5, window_bounds = array<i64: 512, 256>}, {pipeline_mode = #tpu.pipeline_mode<synchronous>, transform_indices = @transform_6, window_bounds = array<i64: 1, 256>}, {pipeline_mode = #tpu.pipeline_mode<synchronous>, transform_indices = @transform_7, window_bounds = array<i64: 256, 128>}, {pipeline_mode = #tpu.pipeline_mode<synchronous>, transform_indices = @transform_8, window_bounds = array<i64: 1, 128>}, {pipeline_mode = #tpu.pipeline_mode<synchronous>, transform_indices = @transform_9, window_bounds = array<i64: 128, 64>}, {pipeline_mode = #tpu.pipeline_mode<synchronous>, transform_indices = @transform_10, window_bounds = array<i64: 1, 64>}, {pipeline_mode = #tpu.pipeline_mode<synchronous>, transform_indices = @transform_11, window_bounds = array<i64: 64, 128>}, {pipeline_mode = #tpu.pipeline_mode<synchronous>, transform_indices = @transform_12, window_bounds = array<i64: 1, 128>}, {pipeline_mode = #tpu.pipeline_mode<synchronous>, transform_indices = @transform_13, window_bounds = array<i64: 128, 128>}, {pipeline_mode = #tpu.pipeline_mode<synchronous>, transform_indices = @transform_14, window_bounds = array<i64: 1, 128>}, {transform_indices = @transform_15, window_bounds = array<i64: 8, 128>}]} {
    %c0 = arith.constant 0 : index
    %c0_0 = arith.constant 0 : index
    %0 = vector.load %arg1[%c0, %c0_0] : memref<8x128xbf16, #tpu.memory_space<vmem>>, vector<8x128xbf16>
    %c0_1 = arith.constant 0 : index
    %c0_2 = arith.constant 0 : index
    %1 = vector.load %arg2[%c0_1, %c0_2] : memref<128x1024xbf16, #tpu.memory_space<vmem>>, vector<128x1024xbf16>
    %cst = arith.constant dense<0.000000e+00> : vector<8x1024xf32>
    %2 = tpu.matmul %0, %1, %cst {dimension_numbers = #tpu.dot_dimension_numbers<[1], [0], [0], [1], [0, 0, 1, 1], [], []>} : vector<8x128xbf16>, vector<128x1024xbf16>, vector<8x1024xf32> -> vector<8x1024xf32>
    %c0_3 = arith.constant 0 : index
    %c0_4 = arith.constant 0 : index
    %3 = vector.load %arg3[%c0_3, %c0_4] : memref<1x1024xf32, #tpu.memory_space<vmem>>, vector<1x1024xf32>
    %4 = vector.broadcast %3 : vector<1x1024xf32> to vector<8x1024xf32>
    %5 = arith.addf %2, %4 : vector<8x1024xf32>
    %cst_5 = arith.constant 0.000000e+00 : f32
    %6 = vector.broadcast %cst_5 : f32 to vector<8x1024xf32>
    %7 = arith.maximumf %5, %6 : vector<8x1024xf32>
    %8 = arith.truncf %7 : vector<8x1024xf32> to vector<8x1024xbf16>
    %c0_6 = arith.constant 0 : index
    %c0_7 = arith.constant 0 : index
    %9 = vector.load %arg4[%c0_6, %c0_7] : memref<1024x512xbf16, #tpu.memory_space<vmem>>, vector<1024x512xbf16>
    %cst_8 = arith.constant dense<0.000000e+00> : vector<8x512xf32>
    %10 = tpu.matmul %8, %9, %cst_8 {dimension_numbers = #tpu.dot_dimension_numbers<[1], [0], [0], [1], [0, 0, 1, 1], [], []>} : vector<8x1024xbf16>, vector<1024x512xbf16>, vector<8x512xf32> -> vector<8x512xf32>
    %c0_9 = arith.constant 0 : index
    %c0_10 = arith.constant 0 : index
    %11 = vector.load %arg5[%c0_9, %c0_10] : memref<1x512xf32, #tpu.memory_space<vmem>>, vector<1x512xf32>
    %12 = vector.broadcast %11 : vector<1x512xf32> to vector<8x512xf32>
    %13 = arith.addf %10, %12 : vector<8x512xf32>
    %cst_11 = arith.constant 0.000000e+00 : f32
    %14 = vector.broadcast %cst_11 : f32 to vector<8x512xf32>
    %15 = arith.maximumf %13, %14 : vector<8x512xf32>
    %16 = arith.truncf %15 : vector<8x512xf32> to vector<8x512xbf16>
    %c0_12 = arith.constant 0 : index
    %c0_13 = arith.constant 0 : index
    %17 = vector.load %arg6[%c0_12, %c0_13] : memref<512x256xbf16, #tpu.memory_space<vmem>>, vector<512x256xbf16>
    %cst_14 = arith.constant dense<0.000000e+00> : vector<8x256xf32>
    %18 = tpu.matmul %16, %17, %cst_14 {dimension_numbers = #tpu.dot_dimension_numbers<[1], [0], [0], [1], [0, 0, 1, 1], [], []>} : vector<8x512xbf16>, vector<512x256xbf16>, vector<8x256xf32> -> vector<8x256xf32>
    %c0_15 = arith.constant 0 : index
    %c0_16 = arith.constant 0 : index
    %19 = vector.load %arg7[%c0_15, %c0_16] : memref<1x256xf32, #tpu.memory_space<vmem>>, vector<1x256xf32>
    %20 = vector.broadcast %19 : vector<1x256xf32> to vector<8x256xf32>
    %21 = arith.addf %18, %20 : vector<8x256xf32>
    %cst_17 = arith.constant 0.000000e+00 : f32
    %22 = vector.broadcast %cst_17 : f32 to vector<8x256xf32>
    %23 = arith.maximumf %21, %22 : vector<8x256xf32>
    %24 = arith.truncf %23 : vector<8x256xf32> to vector<8x256xbf16>
    %c0_18 = arith.constant 0 : index
    %c0_19 = arith.constant 0 : index
    %25 = vector.load %arg8[%c0_18, %c0_19] : memref<256x128xbf16, #tpu.memory_space<vmem>>, vector<256x128xbf16>
    %cst_20 = arith.constant dense<0.000000e+00> : vector<8x128xf32>
    %26 = tpu.matmul %24, %25, %cst_20 {dimension_numbers = #tpu.dot_dimension_numbers<[1], [0], [0], [1], [0, 0, 1, 1], [], []>} : vector<8x256xbf16>, vector<256x128xbf16>, vector<8x128xf32> -> vector<8x128xf32>
    %c0_21 = arith.constant 0 : index
    %c0_22 = arith.constant 0 : index
    %27 = vector.load %arg9[%c0_21, %c0_22] : memref<1x128xf32, #tpu.memory_space<vmem>>, vector<1x128xf32>
    %28 = vector.broadcast %27 : vector<1x128xf32> to vector<8x128xf32>
    %29 = arith.addf %26, %28 : vector<8x128xf32>
    %cst_23 = arith.constant 0.000000e+00 : f32
    %30 = vector.broadcast %cst_23 : f32 to vector<8x128xf32>
    %31 = arith.maximumf %29, %30 : vector<8x128xf32>
    %32 = arith.truncf %31 : vector<8x128xf32> to vector<8x128xbf16>
    %c0_24 = arith.constant 0 : index
    %c0_25 = arith.constant 0 : index
    %33 = vector.load %arg10[%c0_24, %c0_25] : memref<128x64xbf16, #tpu.memory_space<vmem>>, vector<128x64xbf16>
    %cst_26 = arith.constant dense<0.000000e+00> : vector<8x64xf32>
    %34 = tpu.matmul %32, %33, %cst_26 {dimension_numbers = #tpu.dot_dimension_numbers<[1], [0], [0], [1], [0, 0, 1, 1], [], []>} : vector<8x128xbf16>, vector<128x64xbf16>, vector<8x64xf32> -> vector<8x64xf32>
    %c0_27 = arith.constant 0 : index
    %c0_28 = arith.constant 0 : index
    %35 = vector.load %arg11[%c0_27, %c0_28] : memref<1x64xf32, #tpu.memory_space<vmem>>, vector<1x64xf32>
    %36 = vector.broadcast %35 : vector<1x64xf32> to vector<8x64xf32>
    %37 = arith.addf %34, %36 : vector<8x64xf32>
    %cst_29 = arith.constant 0.000000e+00 : f32
    %38 = vector.broadcast %cst_29 : f32 to vector<8x64xf32>
    %39 = arith.maximumf %37, %38 : vector<8x64xf32>
    %40 = arith.truncf %39 : vector<8x64xf32> to vector<8x64xbf16>
    %c0_30 = arith.constant 0 : index
    %c0_31 = arith.constant 0 : index
    %41 = vector.load %arg12[%c0_30, %c0_31] : memref<64x128xbf16, #tpu.memory_space<vmem>>, vector<64x128xbf16>
    %cst_32 = arith.constant dense<0.000000e+00> : vector<8x128xf32>
    %42 = tpu.matmul %40, %41, %cst_32 {dimension_numbers = #tpu.dot_dimension_numbers<[1], [0], [0], [1], [0, 0, 1, 1], [], []>} : vector<8x64xbf16>, vector<64x128xbf16>, vector<8x128xf32> -> vector<8x128xf32>
    %c0_33 = arith.constant 0 : index
    %c0_34 = arith.constant 0 : index
    %43 = vector.load %arg13[%c0_33, %c0_34] : memref<1x128xf32, #tpu.memory_space<vmem>>, vector<1x128xf32>
    %44 = vector.broadcast %43 : vector<1x128xf32> to vector<8x128xf32>
    %45 = arith.addf %42, %44 : vector<8x128xf32>
    %cst_35 = arith.constant 0.000000e+00 : f32
    %46 = vector.broadcast %cst_35 : f32 to vector<8x128xf32>
    %47 = arith.maximumf %45, %46 : vector<8x128xf32>
    %48 = arith.truncf %47 : vector<8x128xf32> to vector<8x128xbf16>
    %c0_36 = arith.constant 0 : index
    %c0_37 = arith.constant 0 : index
    %49 = vector.load %arg14[%c0_36, %c0_37] : memref<128x128xbf16, #tpu.memory_space<vmem>>, vector<128x128xbf16>
    %cst_38 = arith.constant dense<0.000000e+00> : vector<8x128xf32>
    %50 = tpu.matmul %48, %49, %cst_38 {dimension_numbers = #tpu.dot_dimension_numbers<[1], [0], [0], [1], [0, 0, 1, 1], [], []>} : vector<8x128xbf16>, vector<128x128xbf16>, vector<8x128xf32> -> vector<8x128xf32>
    %c0_39 = arith.constant 0 : index
    %c0_40 = arith.constant 0 : index
    %51 = vector.load %arg15[%c0_39, %c0_40] : memref<1x128xf32, #tpu.memory_space<vmem>>, vector<1x128xf32>
    %52 = vector.broadcast %51 : vector<1x128xf32> to vector<8x128xf32>
    %53 = arith.addf %50, %52 : vector<8x128xf32>
    %54 = arith.truncf %53 : vector<8x128xf32> to vector<8x128xbf16>
    %c0_41 = arith.constant 0 : index
    %c0_42 = arith.constant 0 : index
    %55 = vector.load %arg16[%c0_41, %c0_42] : memref<8x128xbf16, #tpu.memory_space<vmem>>, vector<8x128xbf16>
    tpu.vector_store %arg16[%c0_41, %c0_42], %54 {strides = array<i32>} : memref<8x128xbf16, #tpu.memory_space<vmem>>, vector<8x128xbf16>,
    return
  }
  func.func @transform_0(%arg0: i32) -> (i32, i32) {
    %c0_i32 = arith.constant 0 : i32
    %c0_i32_0 = arith.constant 0 : i32
    return %arg0, %c0_i32 : i32, i32
  }
  func.func @transform_1(%arg0: i32) -> (i32, i32) {
    %c0_i32 = arith.constant 0 : i32
    %c0_i32_0 = arith.constant 0 : i32
    %c0_i32_1 = arith.constant 0 : i32
    return %c0_i32, %c0_i32_0 : i32, i32
  }
  func.func @transform_2(%arg0: i32) -> (i32, i32) {
    %c0_i32 = arith.constant 0 : i32
    %c0_i32_0 = arith.constant 0 : i32
    %c0_i32_1 = arith.constant 0 : i32
    return %c0_i32, %c0_i32_0 : i32, i32
  }
  func.func @transform_3(%arg0: i32) -> (i32, i32) {
    %c0_i32 = arith.constant 0 : i32
    %c0_i32_0 = arith.constant 0 : i32
    %c0_i32_1 = arith.constant 0 : i32
    return %c0_i32, %c0_i32_0 : i32, i32
  }
  func.func @transform_4(%arg0: i32) -> (i32, i32) {
    %c0_i32 = arith.constant 0 : i32
    %c0_i32_0 = arith.constant 0 : i32
    %c0_i32_1 = arith.constant 0 : i32
    return %c0_i32, %c0_i32_0 : i32, i32
  }
  func.func @transform_5(%arg0: i32) -> (i32, i32) {
    %c0_i32 = arith.constant 0 : i32
    %c0_i32_0 = arith.constant 0 : i32
    %c0_i32_1 = arith.constant 0 : i32
    return %c0_i32, %c0_i32_0 : i32, i32
  }
  func.func @transform_6(%arg0: i32) -> (i32, i32) {
    %c0_i32 = arith.constant 0 : i32
    %c0_i32_0 = arith.constant 0 : i32
    %c0_i32_1 = arith.constant 0 : i32
    return %c0_i32, %c0_i32_0 : i32, i32
  }
  func.func @transform_7(%arg0: i32) -> (i32, i32) {
    %c0_i32 = arith.constant 0 : i32
    %c0_i32_0 = arith.constant 0 : i32
    %c0_i32_1 = arith.constant 0 : i32
    return %c0_i32, %c0_i32_0 : i32, i32
  }
  func.func @transform_8(%arg0: i32) -> (i32, i32) {
    %c0_i32 = arith.constant 0 : i32
    %c0_i32_0 = arith.constant 0 : i32
    %c0_i32_1 = arith.constant 0 : i32
    return %c0_i32, %c0_i32_0 : i32, i32
  }
  func.func @transform_9(%arg0: i32) -> (i32, i32) {
    %c0_i32 = arith.constant 0 : i32
    %c0_i32_0 = arith.constant 0 : i32
    %c0_i32_1 = arith.constant 0 : i32
    return %c0_i32, %c0_i32_0 : i32, i32
  }
  func.func @transform_10(%arg0: i32) -> (i32, i32) {
    %c0_i32 = arith.constant 0 : i32
    %c0_i32_0 = arith.constant 0 : i32
    %c0_i32_1 = arith.constant 0 : i32
    return %c0_i32, %c0_i32_0 : i32, i32
  }
  func.func @transform_11(%arg0: i32) -> (i32, i32) {
    %c0_i32 = arith.constant 0 : i32
    %c0_i32_0 = arith.constant 0 : i32
    %c0_i32_1 = arith.constant 0 : i32
    return %c0_i32, %c0_i32_0 : i32, i32
  }
  func.func @transform_12(%arg0: i32) -> (i32, i32) {
    %c0_i32 = arith.constant 0 : i32
    %c0_i32_0 = arith.constant 0 : i32
    %c0_i32_1 = arith.constant 0 : i32
    return %c0_i32, %c0_i32_0 : i32, i32
  }
  func.func @transform_13(%arg0: i32) -> (i32, i32) {
    %c0_i32 = arith.constant 0 : i32
    %c0_i32_0 = arith.constant 0 : i32
    %c0_i32_1 = arith.constant 0 : i32
    return %c0_i32, %c0_i32_0 : i32, i32
  }
  func.func @transform_14(%arg0: i32) -> (i32, i32) {
    %c0_i32 = arith.constant 0 : i32
    %c0_i32_0 = arith.constant 0 : i32
    %c0_i32_1 = arith.constant 0 : i32
    return %c0_i32, %c0_i32_0 : i32, i32
  }
  func.func @transform_15(%arg0: i32) -> (i32, i32) {
    %c0_i32 = arith.constant 0 : i32
    %c0_i32_0 = arith.constant 0 : i32
    return %arg0, %c0_i32 : i32, i32
  }
}

</mosaic_0001>

<llo_original>
// kernel: tpu_custom_call.1
$region0: #{tpu_custom_call.1}
  #allocation0 [shape = 'u32[]', space=smem, size = 0x4, offset = 0x4, fixed_abs, tag = 'smem constant byte address 0x4 - core index']
  #allocation1 [shape = 'u32[144,128]{1,0:T(1,128)}', space=vmem, size = 0x12000, scoped, tag = 'internal scratch']
  %s0 = inlined_call_operand.hbm [shape: f32[8,128], index: 0, kind: input, shape index: {}]
  %s1 = inlined_call_operand.hbm [shape: f32[16,128], index: 1, kind: output, shape index: {}]
  %s2 = sld [smem:[#allocation0]]
  $region41: #{tpu_custom_call.1} parent=0
    _
  %s4 = ssub.s32 1, %s2
  %s5 = scalar_select 0, %s4, %s2
  $region1: #{tpu_custom_call.1} parent=0
    #allocation2 [shape = 'u8[4096]{0}', space=vmem, size = 0x1000, scoped, tag = 'input window, operand 0, single buffered']
    #allocation3 [shape = 's32[2]{0}', space=sflag, size = 0x8, scoped, tag = 'scoped memory for tpu_custom_call.1']
    #allocation4 [shape = 's32[2]{0}', space=sflag, size = 0x8, scoped, tag = 'scoped memory for tpu_custom_call.1']
    #allocation5 [shape = 'u8[8192]{0}', space=vmem, size = 0x2000, scoped, tag = 'output window, operand 0']
    %6 = vsyncpa [#allocation3], 0
    %7 = vsyncpa [#allocation4], 0
    %s8 = scalar_lea.sflag [#allocation4], 1
    %9 = vsyncpa %s8, 0
    loop: start=0, step=1, limit=4
    $region2: #{tpu_custom_call.1} parent=1 // loop_pre_header
      _
    $region3: #{tpu_custom_call.1} parent=1 // loop_header
      %s11 = sphi 0, %s15
      %p12 = scmp.ge.s32.totalorder %s11, 4
      %s19 = sphi 0, %s19
      %s21 = sphi 0, %s19
      %s22 = sphi 0, %s21
      %s36 = sphi 0, %s22
      %s42 = sphi 0, %s44
      %s45 = sphi 0, %s42
      %s46 = sphi 0, %s45
      %s62 = sphi 0, %s46
    $region4: #{tpu_custom_call.1} parent=1 // loop_header_branch
      %14 = sbr.rel (%p12) target = $region8
    $region5: #{tpu_custom_call.1} parent=1 // loop_body
      %s16 = ssub.s32 %s11, 1
      %s17 = ssub.s32 %s11, 2
      %s18 = sadd.s32 %s11, 1
      %s20 = sadd.s32 %s19, 1
      %p23 = scmp.eq.s32.totalorder %s11, 1
      %p24 = scmp.ne.s32.totalorder %s19, %s21
      %p25 = scmp.eq.s32.totalorder %s11, 0
      %p26 = por %p24, %p25
      %p27 = scmp.ne.s32.totalorder %s19, %s21
      %p28 = scmp.eq.s32.totalorder %s16, 1
      %p29 = por %p27, %p28
      %p30 = scmp.ne.s32.totalorder %s21, %s22
      %p31 = scmp.eq.s32.totalorder %s16, 0
      %p32 = por %p30, %p31
      %p33 = scmp.ne.s32.totalorder %s21, %s22
      %p34 = scmp.eq.s32.totalorder %s17, 1
      %p35 = por %p33, %p34
      %p37 = scmp.ne.s32.totalorder %s22, %s36
      %p38 = scmp.eq.s32.totalorder %s17, 0
      %p39 = por %p37, %p38
      %s40 = ssub.s32 %s11, %s18
      %p41 = scmp.eq.s32.totalorder %s40, 0
      %s43 = sadd.s32 %s42, 1
      %s44 = scalar_select %p41, %s42, %s43
      %p47 = pneg %p41
      %p48 = scmp.eq.s32.totalorder %s11, 1
      %p49 = por %p47, %p48
      %p50 = scmp.ne.s32.totalorder %s42, %s45
      %p51 = scmp.eq.s32.totalorder %s11, 0
      %p52 = por %p50, %p51
      %p53 = scmp.ne.s32.totalorder %s42, %s45
      %p54 = scmp.eq.s32.totalorder %s16, 1
      %p55 = por %p53, %p54
      %p56 = scmp.ne.s32.totalorder %s45, %s46
      %p57 = scmp.eq.s32.totalorder %s16, 0
      %p58 = por %p56, %p57
      %p59 = scmp.ne.s32.totalorder %s45, %s46
      %p60 = scmp.eq.s32.totalorder %s17, 1
      %p61 = por %p59, %p60
      %p63 = scmp.ne.s32.totalorder %s46, %s62
      %p64 = scmp.eq.s32.totalorder %s17, 0
      %p65 = por %p63, %p64
      %p66 = scmp.le.s32.totalorder 1, %s11
      %p67 = scmp.lt.s32.totalorder %s11, 3
      %p68 = pnand %p66, %p67
      %p69 = pneg %p68
      // Predicated region
      $region9: #{tpu_custom_call.1} parent=5 // pred_check
        _
      $region10: #{tpu_custom_call.1} parent=5 // pred_check_branch
        %71 = sbr.rel (%p68) target = $region12
      $region11: #{tpu_custom_call.1} parent=5 // pred_region
        %s72 = ssub.s32 %s11, 1
        // Predicated region
        $region13: #{tpu_custom_call.1} parent=11 // pred_check
          %p73 = pneg %p32
        $region14: #{tpu_custom_call.1} parent=11 // pred_check_branch
          %75 = sbr.rel (%p73) target = $region16
        $region15: #{tpu_custom_call.1} parent=11 // pred_region
          %s77 = ssub.s32 128, 128
          %78 = vsyncadd [#allocation3], %s77
          %s80 = sshll.u32 [#allocation2], 4
          %s81 = int_to_ptr.vmem [resolvable:$true] %s80
          %83 = dma.hbm_to_vmem [thread:$0]  %s0, 128, %s81, [#allocation3]
        $region16: #{tpu_custom_call.1} parent=11 // pred_fallthru
          _
      $region12: #{tpu_custom_call.1} parent=5 // pred_fallthru
        _
      %p84 = scmp.lt.s32.totalorder %s11, 2
      // Predicated region
      $region17: #{tpu_custom_call.1} parent=5 // pred_check
        %p85 = pneg %p84
      $region18: #{tpu_custom_call.1} parent=5 // pred_check_branch
        %87 = sbr.rel (%p85) target = $region20
      $region19: #{tpu_custom_call.1} parent=5 // pred_region
        _
      $region20: #{tpu_custom_call.1} parent=5 // pred_fallthru
        _
      %p88 = scmp.le.s32.totalorder 1, %s11
      %p89 = scmp.lt.s32.totalorder %s11, 3
      %p90 = pnand %p88, %p89
      %p91 = pneg %p90
      // Predicated region
      $region21: #{tpu_custom_call.1} parent=5 // pred_check
        _
      $region22: #{tpu_custom_call.1} parent=5 // pred_check_branch
        %93 = sbr.rel (%p90) target = $region24
      $region23: #{tpu_custom_call.1} parent=5 // pred_region
        %s94 = ssub.s32 %s11, 1
        // Predicated region
        $region25: #{tpu_custom_call.1} parent=23 // pred_check
          %p95 = pneg %p32
        $region26: #{tpu_custom_call.1} parent=23 // pred_check_branch
          %97 = sbr.rel (%p95) target = $region28
        $region27: #{tpu_custom_call.1} parent=23 // pred_region
          %98 = dma.done [#allocation3], 128
        $region28: #{tpu_custom_call.1} parent=23 // pred_fallthru
          _
        %p99 = pneg %p32
        %p100 = pneg %p29
        %p101 = pneg %p58
        %p102 = pneg %p55
        %s103 = sand.u32 %s45, 1
        %s104 = scalar_lea.sflag [#allocation4], %s103
        %s105 = sand.u32 %s45, 1
        %s106 = smul.addr %s105, 8
        %s107 = scalar_lea.vmem [#allocation5], %s106
        %v108 = vld [vmem:[#allocation2] sm:$0xff]
        %v109 = vadd.f32 %v108, 1.0
        %110 = vst [vmem:[%s107] sm:$0xff] %v109
        %s111 = sand.u32 %s45, 1
        %s112 = scalar_lea.sflag [#allocation4], %s111
        %s113 = sand.u32 %s45, 1
        %s114 = smul.addr %s113, 8
        %s115 = scalar_lea.vmem [#allocation5], %s114
        // Predicated region
        $region29: #{tpu_custom_call.1} parent=23 // pred_check
          %p116 = pneg %p55
        $region30: #{tpu_custom_call.1} parent=23 // pred_check_branch
          %118 = sbr.rel (%p116) target = $region32
        $region31: #{tpu_custom_call.1} parent=23 // pred_region
          %s120 = ssub.s32 128, 128
          %121 = vsyncadd %s112, %s120
          %s122 = smul.addr %s16, 128
          %s123 = scalar_lea.hbm %s1, %s122
          %s125 = sshll.u32 %s115, 4
          %s126 = int_to_ptr.vmem [resolvable:$true] %s125
          %128 = dma.vmem_to_hbm [thread:$0]  %s126, 128, %s123, %s112
        $region32: #{tpu_custom_call.1} parent=23 // pred_fallthru
          _
      $region24: #{tpu_custom_call.1} parent=5 // pred_fallthru
        _
      %p129 = scmp.le.s32.totalorder 2, %s11
      // Predicated region
      $region33: #{tpu_custom_call.1} parent=5 // pred_check
        %p130 = pneg %p129
      $region34: #{tpu_custom_call.1} parent=5 // pred_check_branch
        %132 = sbr.rel (%p130) target = $region36
      $region35: #{tpu_custom_call.1} parent=5 // pred_region
        %s133 = ssub.s32 %s11, 2
        // Predicated region
        $region37: #{tpu_custom_call.1} parent=35 // pred_check
          %p134 = pneg %p61
        $region38: #{tpu_custom_call.1} parent=35 // pred_check_branch
          %136 = sbr.rel (%p134) target = $region40
        $region39: #{tpu_custom_call.1} parent=35 // pred_region
          %s137 = sand.u32 %s46, 1
          %s138 = scalar_lea.sflag [#allocation4], %s137
          %s139 = sand.u32 %s46, 1
          %s140 = smul.addr %s139, 8
          %s141 = scalar_lea.vmem [#allocation5], %s140
          %142 = dma.done %s138, 128
        $region40: #{tpu_custom_call.1} parent=35 // pred_fallthru
          _
      $region36: #{tpu_custom_call.1} parent=5 // pred_fallthru
        _
    $region6: #{tpu_custom_call.1} parent=1 // loop_footer
      %s15 = sadd.s32 1, %s11
    $region7: #{tpu_custom_call.1} parent=1 // loop_footer_branch
      %10 = sbr.rel target = $region3
    $region8: #{tpu_custom_call.1} parent=1 // loop_exit
      _
    %143 = vsyncpa [#allocation3], 1
    %s144 = scalar_lea.sflag [#allocation3], 1
    %145 = vsyncpa %s144, 1
    %146 = vsyncpa [#allocation4], 1
    %s147 = scalar_lea.sflag [#allocation4], 1
    %148 = vsyncpa %s147, 1

// kernel: mynet7_forward.1
$region0: #{mynet7_forward.1}
  #allocation0 [shape = 'u32[]', space=smem, size = 0x4, offset = 0x4, fixed_abs, tag = 'smem constant byte address 0x4 - core index']
  #allocation1 [shape = 'u32[144,128]{1,0:T(1,128)}', space=vmem, size = 0x12000, scoped, tag = 'internal scratch']
  %s0 = inlined_call_operand.vmem [shape: bf16[8,128], index: 0, kind: input, shape index: {}]
  %s1 = inlined_call_operand.vmem [shape: bf16[128,1024], index: 1, kind: input, shape index: {}]
  %s2 = inlined_call_operand.vmem [shape: f32[1,1024], index: 2, kind: input, shape index: {}]
  %s3 = inlined_call_operand.vmem [shape: bf16[1024,512], index: 3, kind: input, shape index: {}]
  %s4 = inlined_call_operand.vmem [shape: f32[1,512], index: 4, kind: input, shape index: {}]
  %s5 = inlined_call_operand.vmem [shape: bf16[512,256], index: 5, kind: input, shape index: {}]
  %s6 = inlined_call_operand.hbm [shape: f32[1,256], index: 6, kind: input, shape index: {}]
  %s7 = inlined_call_operand.vmem [shape: bf16[256,128], index: 7, kind: input, shape index: {}]
  %s8 = inlined_call_operand.vmem [shape: f32[1,128], index: 8, kind: input, shape index: {}]
  %s9 = inlined_call_operand.vmem [shape: bf16[128,64], index: 9, kind: input, shape index: {}]
  %s10 = inlined_call_operand.hbm [shape: f32[1,64], index: 10, kind: input, shape index: {}]
  %s11 = inlined_call_operand.vmem [shape: bf16[64,128], index: 11, kind: input, shape index: {}]
  %s12 = inlined_call_operand.hbm [shape: f32[1,128], index: 12, kind: input, shape index: {}]
  %s13 = inlined_call_operand.vmem [shape: bf16[128,128], index: 13, kind: input, shape index: {}]
  %s14 = inlined_call_operand.hbm [shape: f32[1,128], index: 14, kind: input, shape index: {}]
  %s15 = inlined_call_operand.vmem [shape: bf16[8,128], index: 15, kind: output, shape index: {}]
  %s16 = sld [smem:[#allocation0]]
  $region86: #{mynet7_forward.1} parent=0
    _
  %s18 = ssub.s32 1, %s16
  %s19 = scalar_select 0, %s18, %s16
  $region1: #{mynet7_forward.1} parent=0
    #allocation2 [shape = 'u8[1024]{0}', space=vmem, size = 0x400, scoped, tag = 'input window, operand 6, single buffered']
    #allocation3 [shape = 's32[1]{0}', space=sflag, size = 0x4, scoped, tag = 'scoped memory for mynet7_forward.1']
    #allocation4 [shape = 'u8[512]{0}', space=vmem, size = 0x400, scoped, tag = 'input window, operand 10, single buffered']
    #allocation5 [shape = 's32[1]{0}', space=sflag, size = 0x4, scoped, tag = 'scoped memory for mynet7_forward.1']
    #allocation6 [shape = 'u8[512]{0}', space=vmem, size = 0x400, scoped, tag = 'input window, operand 12, single buffered']
    #allocation7 [shape = 'u8[512]{0}', space=vmem, size = 0x400, scoped, tag = 'input window, operand 14, single buffered']
    #allocation8 [shape = 's32[1]{0}', space=sflag, size = 0x4, scoped, tag = 'scoped memory for mynet7_forward.1']
    %20 = vsyncpa [#allocation3], 0
    %21 = vsyncpa [#allocation5], 0
    %22 = vsyncpa [#allocation8], 0
    // Predicated region
    $region2: #{mynet7_forward.1} parent=1 // pred_check
      _
    $region3: #{mynet7_forward.1} parent=1 // pred_check_branch
      %24 = sbr.rel (0) target = $region5
    $region4: #{mynet7_forward.1} parent=1 // pred_region
      _
    $region5: #{mynet7_forward.1} parent=1 // pred_fallthru
      _
    // Predicated region
    $region6: #{mynet7_forward.1} parent=1 // pred_check
      _
    $region7: #{mynet7_forward.1} parent=1 // pred_check_branch
      %26 = sbr.rel (0) target = $region9
    $region8: #{mynet7_forward.1} parent=1 // pred_region
      _
    $region9: #{mynet7_forward.1} parent=1 // pred_fallthru
      _
    // Predicated region
    $region10: #{mynet7_forward.1} parent=1 // pred_check
      _
    $region11: #{mynet7_forward.1} parent=1 // pred_check_branch
      %28 = sbr.rel (0) target = $region13
    $region12: #{mynet7_forward.1} parent=1 // pred_region
      _
    $region13: #{mynet7_forward.1} parent=1 // pred_fallthru
      _
    // Predicated region
    $region14: #{mynet7_forward.1} parent=1 // pred_check
      _
    $region15: #{mynet7_forward.1} parent=1 // pred_check_branch
      %30 = sbr.rel (0) target = $region17
    $region16: #{mynet7_forward.1} parent=1 // pred_region
      _
    $region17: #{mynet7_forward.1} parent=1 // pred_fallthru
      _
    // Predicated region
    $region18: #{mynet7_forward.1} parent=1 // pred_check
      _
    $region19: #{mynet7_forward.1} parent=1 // pred_check_branch
      %32 = sbr.rel (0) target = $region21
    $region20: #{mynet7_forward.1} parent=1 // pred_region
      _
    $region21: #{mynet7_forward.1} parent=1 // pred_fallthru
      _
    // Predicated region
    $region22: #{mynet7_forward.1} parent=1 // pred_check
      _
    $region23: #{mynet7_forward.1} parent=1 // pred_check_branch
      %34 = sbr.rel (0) target = $region25
    $region24: #{mynet7_forward.1} parent=1 // pred_region
      _
    $region25: #{mynet7_forward.1} parent=1 // pred_fallthru
      _
    // Predicated region
    $region26: #{mynet7_forward.1} parent=1 // pred_check
      _
    $region27: #{mynet7_forward.1} parent=1 // pred_check_branch
      %36 = sbr.rel (0) target = $region29
    $region28: #{mynet7_forward.1} parent=1 // pred_region
      %s38 = ssub.s32 32, 32
      %39 = vsyncadd [#allocation3], %s38
      %s41 = sshll.u32 [#allocation2], 4
      %s42 = int_to_ptr.vmem [resolvable:$true] %s41
      %44 = dma.hbm_to_vmem [thread:$0]  %s6, 32, %s42, [#allocation3]
    $region29: #{mynet7_forward.1} parent=1 // pred_fallthru
      _
    // Predicated region
    $region30: #{mynet7_forward.1} parent=1 // pred_check
      _
    $region31: #{mynet7_forward.1} parent=1 // pred_check_branch
      %46 = sbr.rel (0) target = $region33
    $region32: #{mynet7_forward.1} parent=1 // pred_region
      _
    $region33: #{mynet7_forward.1} parent=1 // pred_fallthru
      _
    // Predicated region
    $region34: #{mynet7_forward.1} parent=1 // pred_check
      _
    $region35: #{mynet7_forward.1} parent=1 // pred_check_branch
      %48 = sbr.rel (0) target = $region37
    $region36: #{mynet7_forward.1} parent=1 // pred_region
      _
    $region37: #{mynet7_forward.1} parent=1 // pred_fallthru
      _
    // Predicated region
    $region38: #{mynet7_forward.1} parent=1 // pred_check
      _
    $region39: #{mynet7_forward.1} parent=1 // pred_check_branch
      %50 = sbr.rel (0) target = $region41
    $region40: #{mynet7_forward.1} parent=1 // pred_region
      _
    $region41: #{mynet7_forward.1} parent=1 // pred_fallthru
      _
    // Predicated region
    $region42: #{mynet7_forward.1} parent=1 // pred_check
      _
    $region43: #{mynet7_forward.1} parent=1 // pred_check_branch
      %52 = sbr.rel (0) target = $region45
    $region44: #{mynet7_forward.1} parent=1 // pred_region
      %s54 = ssub.s32 16, 16
      %55 = vsyncadd [#allocation5], %s54
      %s57 = sshll.u32 [#allocation4], 4
      %s58 = int_to_ptr.vmem [resolvable:$true] %s57
      %60 = dma.hbm_to_vmem [thread:$0]  %s10, 16, %s58, [#allocation5]
    $region45: #{mynet7_forward.1} parent=1 // pred_fallthru
      _
    // Predicated region
    $region46: #{mynet7_forward.1} parent=1 // pred_check
      _
    $region47: #{mynet7_forward.1} parent=1 // pred_check_branch
      %62 = sbr.rel (0) target = $region49
    $region48: #{mynet7_forward.1} parent=1 // pred_region
      _
    $region49: #{mynet7_forward.1} parent=1 // pred_fallthru
      _
    // Predicated region
    $region50: #{mynet7_forward.1} parent=1 // pred_check
      _
    $region51: #{mynet7_forward.1} parent=1 // pred_check_branch
      %64 = sbr.rel (0) target = $region53
    $region52: #{mynet7_forward.1} parent=1 // pred_region
      %s66 = ssub.s32 16, 16
      %67 = vsyncadd [#allocation5], %s66
      %s69 = sshll.u32 [#allocation6], 4
      %s70 = int_to_ptr.vmem [resolvable:$true] %s69
      %72 = dma.hbm_to_vmem [thread:$0]  %s12, 16, %s70, [#allocation5]
    $region53: #{mynet7_forward.1} parent=1 // pred_fallthru
      _
    // Predicated region
    $region54: #{mynet7_forward.1} parent=1 // pred_check
      _
    $region55: #{mynet7_forward.1} parent=1 // pred_check_branch
      %74 = sbr.rel (0) target = $region57
    $region56: #{mynet7_forward.1} parent=1 // pred_region
      _
    $region57: #{mynet7_forward.1} parent=1 // pred_fallthru
      _
    // Predicated region
    $region58: #{mynet7_forward.1} parent=1 // pred_check
      _
    $region59: #{mynet7_forward.1} parent=1 // pred_check_branch
      %76 = sbr.rel (0) target = $region61
    $region60: #{mynet7_forward.1} parent=1 // pred_region
      %s78 = ssub.s32 16, 16
      %79 = vsyncadd [#allocation8], %s78
      %s81 = sshll.u32 [#allocation7], 4
      %s82 = int_to_ptr.vmem [resolvable:$true] %s81
      %84 = dma.hbm_to_vmem [thread:$0]  %s14, 16, %s82, [#allocation8]
    $region61: #{mynet7_forward.1} parent=1 // pred_fallthru
      _
    // Predicated region
    $region62: #{mynet7_forward.1} parent=1 // pred_check
      _
    $region63: #{mynet7_forward.1} parent=1 // pred_check_branch
      %86 = sbr.rel (0) target = $region65
    $region64: #{mynet7_forward.1} parent=1 // pred_region
      %87 = dma.done [#allocation3], 32
    $region65: #{mynet7_forward.1} parent=1 // pred_fallthru
      _
    // Predicated region
    $region66: #{mynet7_forward.1} parent=1 // pred_check
      _
    $region67: #{mynet7_forward.1} parent=1 // pred_check_branch
      %89 = sbr.rel (0) target = $region69
    $region68: #{mynet7_forward.1} parent=1 // pred_region
      %90 = dma.done [#allocation5], 16
    $region69: #{mynet7_forward.1} parent=1 // pred_fallthru
      _
    // Predicated region
    $region70: #{mynet7_forward.1} parent=1 // pred_check
      _
    $region71: #{mynet7_forward.1} parent=1 // pred_check_branch
      %92 = sbr.rel (0) target = $region73
    $region72: #{mynet7_forward.1} parent=1 // pred_region
      %93 = dma.done [#allocation5], 16
    $region73: #{mynet7_forward.1} parent=1 // pred_fallthru
      _
    // Predicated region
    $region74: #{mynet7_forward.1} parent=1 // pred_check
      _
    $region75: #{mynet7_forward.1} parent=1 // pred_check_branch
      %95 = sbr.rel (0) target = $region77
    $region76: #{mynet7_forward.1} parent=1 // pred_region
      %96 = dma.done [#allocation8], 16
    $region77: #{mynet7_forward.1} parent=1 // pred_fallthru
      _
    %v98 = vld [vmem:[%s0] sm:$0xf]
    %v99 = vld [vmem:[%s1] sm:$0xff]
    %v100 = vld [vmem:[%s1 + $0x8] sm:$0xff]
    %v101 = vld [vmem:[%s1 + $0x10] sm:$0xff]
    %v102 = vld [vmem:[%s1 + $0x18] sm:$0xff]
    %v103 = vld [vmem:[%s1 + $0x20] sm:$0xff]
    %v104 = vld [vmem:[%s1 + $0x28] sm:$0xff]
    %v105 = vld [vmem:[%s1 + $0x30] sm:$0xff]
    %v106 = vld [vmem:[%s1 + $0x38] sm:$0xff]
    %v107 = vld [vmem:[%s1 + $0x40] sm:$0xff]
    %v108 = vld [vmem:[%s1 + $0x48] sm:$0xff]
    %v109 = vld [vmem:[%s1 + $0x50] sm:$0xff]
    %v110 = vld [vmem:[%s1 + $0x58] sm:$0xff]
    %v111 = vld [vmem:[%s1 + $0x60] sm:$0xff]
    %v112 = vld [vmem:[%s1 + $0x68] sm:$0xff]
    %v113 = vld [vmem:[%s1 + $0x70] sm:$0xff]
    %v114 = vld [vmem:[%s1 + $0x78] sm:$0xff]
    %v115 = vld [vmem:[%s1 + $0x80] sm:$0xff]
    %v116 = vld [vmem:[%s1 + $0x88] sm:$0xff]
    %v117 = vld [vmem:[%s1 + $0x90] sm:$0xff]
    %v118 = vld [vmem:[%s1 + $0x98] sm:$0xff]
    %v119 = vld [vmem:[%s1 + $0xa0] sm:$0xff]
    %v120 = vld [vmem:[%s1 + $0xa8] sm:$0xff]
    %v121 = vld [vmem:[%s1 + $0xb0] sm:$0xff]
    %v122 = vld [vmem:[%s1 + $0xb8] sm:$0xff]
    %v123 = vld [vmem:[%s1 + $0xc0] sm:$0xff]
    %v124 = vld [vmem:[%s1 + $0xc8] sm:$0xff]
    %v125 = vld [vmem:[%s1 + $0xd0] sm:$0xff]
    %v126 = vld [vmem:[%s1 + $0xd8] sm:$0xff]
    %v127 = vld [vmem:[%s1 + $0xe0] sm:$0xff]
    %v128 = vld [vmem:[%s1 + $0xe8] sm:$0xff]
    %v129 = vld [vmem:[%s1 + $0xf0] sm:$0xff]
    %v130 = vld [vmem:[%s1 + $0xf8] sm:$0xff]
    %v131 = vld [vmem:[%s1 + $0x100] sm:$0xff]
    %v132 = vld [vmem:[%s1 + $0x108] sm:$0xff]
    %v133 = vld [vmem:[%s1 + $0x110] sm:$0xff]
    %v134 = vld [vmem:[%s1 + $0x118] sm:$0xff]
    %v135 = vld [vmem:[%s1 + $0x120] sm:$0xff]
    %v136 = vld [vmem:[%s1 + $0x128] sm:$0xff]
    %v137 = vld [vmem:[%s1 + $0x130] sm:$0xff]
    %v138 = vld [vmem:[%s1 + $0x138] sm:$0xff]
    %v139 = vld [vmem:[%s1 + $0x140] sm:$0xff]
    %v140 = vld [vmem:[%s1 + $0x148] sm:$0xff]
    %v141 = vld [vmem:[%s1 + $0x150] sm:$0xff]
    %v142 = vld [vmem:[%s1 + $0x158] sm:$0xff]
    %v143 = vld [vmem:[%s1 + $0x160] sm:$0xff]
    %v144 = vld [vmem:[%s1 + $0x168] sm:$0xff]
    %v145 = vld [vmem:[%s1 + $0x170] sm:$0xff]
    %v146 = vld [vmem:[%s1 + $0x178] sm:$0xff]
    %v147 = vld [vmem:[%s1 + $0x180] sm:$0xff]
    %v148 = vld [vmem:[%s1 + $0x188] sm:$0xff]
    %v149 = vld [vmem:[%s1 + $0x190] sm:$0xff]
    %v150 = vld [vmem:[%s1 + $0x198] sm:$0xff]
    %v151 = vld [vmem:[%s1 + $0x1a0] sm:$0xff]
    %v152 = vld [vmem:[%s1 + $0x1a8] sm:$0xff]
    %v153 = vld [vmem:[%s1 + $0x1b0] sm:$0xff]
    %v154 = vld [vmem:[%s1 + $0x1b8] sm:$0xff]
    %v155 = vld [vmem:[%s1 + $0x1c0] sm:$0xff]
    %v156 = vld [vmem:[%s1 + $0x1c8] sm:$0xff]
    %v157 = vld [vmem:[%s1 + $0x1d0] sm:$0xff]
    %v158 = vld [vmem:[%s1 + $0x1d8] sm:$0xff]
    %v159 = vld [vmem:[%s1 + $0x1e0] sm:$0xff]
    %v160 = vld [vmem:[%s1 + $0x1e8] sm:$0xff]
    %v161 = vld [vmem:[%s1 + $0x1f0] sm:$0xff]
    %v162 = vld [vmem:[%s1 + $0x1f8] sm:$0xff]
    %v163 = vld [vmem:[%s2] sm:$0xff]
    %v165 = vlaneseq
    %v166 = vshrl.u32 %v165, 7
    %v167 = vsub.s32 0, %v166
    %v168 = vrot.slane %v163, %v167
    %v169 = vlaneseq
    %v170 = vshrl.u32 %v169, 7
    %v171 = vsub.s32 1, %v170
    %v172 = vrot.slane %v163, %v171
    %v173 = vlaneseq
    %v174 = vshrl.u32 %v173, 7
    %v175 = vsub.s32 2, %v174
    %v176 = vrot.slane %v163, %v175
    %v177 = vlaneseq
    %v178 = vshrl.u32 %v177, 7
    %v179 = vsub.s32 3, %v178
    %v180 = vrot.slane %v163, %v179
    %v181 = vlaneseq
    %v182 = vshrl.u32 %v181, 7
    %v183 = vsub.s32 4, %v182
    %v184 = vrot.slane %v163, %v183
    %v185 = vlaneseq
    %v186 = vshrl.u32 %v185, 7
    %v187 = vsub.s32 5, %v186
    %v188 = vrot.slane %v163, %v187
    %v189 = vlaneseq
    %v190 = vshrl.u32 %v189, 7
    %v191 = vsub.s32 6, %v190
    %v192 = vrot.slane %v163, %v191
    %v193 = vlaneseq
    %v194 = vshrl.u32 %v193, 7
    %v195 = vsub.s32 7, %v194
    %v196 = vrot.slane %v163, %v195
    %v269 = vunpack.c.l.b16 %v99
    %v270 = vunpack.c.h.b16 %v99
    %v271 = vunpack.c.l.b16 %v100
    %v272 = vunpack.c.h.b16 %v100
    %v273 = vunpack.c.l.b16 %v101
    %v274 = vunpack.c.h.b16 %v101
    %v275 = vunpack.c.l.b16 %v102
    %v276 = vunpack.c.h.b16 %v102
    %v277 = vunpack.c.l.b16 %v103
    %v278 = vunpack.c.h.b16 %v103
    %v279 = vunpack.c.l.b16 %v104
    %v280 = vunpack.c.h.b16 %v104
    %v281 = vunpack.c.l.b16 %v105
    %v282 = vunpack.c.h.b16 %v105
    %v283 = vunpack.c.l.b16 %v106
    %v284 = vunpack.c.h.b16 %v106
    %v285 = vunpack.c.l.b16 %v107
    %v286 = vunpack.c.h.b16 %v107
    %v287 = vunpack.c.l.b16 %v108
    %v288 = vunpack.c.h.b16 %v108
    %v289 = vunpack.c.l.b16 %v109
    %v290 = vunpack.c.h.b16 %v109
    %v291 = vunpack.c.l.b16 %v110
    %v292 = vunpack.c.h.b16 %v110
    %v293 = vunpack.c.l.b16 %v111
    %v294 = vunpack.c.h.b16 %v111
    %v295 = vunpack.c.l.b16 %v112
    %v296 = vunpack.c.h.b16 %v112
    %v297 = vunpack.c.l.b16 %v113
    %v298 = vunpack.c.h.b16 %v113
    %v299 = vunpack.c.l.b16 %v114
    %v300 = vunpack.c.h.b16 %v114
    %v301 = vunpack.c.l.b16 %v115
    %v302 = vunpack.c.h.b16 %v115
    %v303 = vunpack.c.l.b16 %v116
    %v304 = vunpack.c.h.b16 %v116
    %v305 = vunpack.c.l.b16 %v117
    %v306 = vunpack.c.h.b16 %v117
    %v307 = vunpack.c.l.b16 %v118
    %v308 = vunpack.c.h.b16 %v118
    %v309 = vunpack.c.l.b16 %v119
    %v310 = vunpack.c.h.b16 %v119
    %v311 = vunpack.c.l.b16 %v120
    %v312 = vunpack.c.h.b16 %v120
    %v313 = vunpack.c.l.b16 %v121
    %v314 = vunpack.c.h.b16 %v121
    %v315 = vunpack.c.l.b16 %v122
    %v316 = vunpack.c.h.b16 %v122
    %v317 = vunpack.c.l.b16 %v123
    %v318 = vunpack.c.h.b16 %v123
    %v319 = vunpack.c.l.b16 %v124
    %v320 = vunpack.c.h.b16 %v124
    %v321 = vunpack.c.l.b16 %v125
    %v322 = vunpack.c.h.b16 %v125
    %v323 = vunpack.c.l.b16 %v126
    %v324 = vunpack.c.h.b16 %v126
    %v325 = vunpack.c.l.b16 %v127
    %v326 = vunpack.c.h.b16 %v127
    %v327 = vunpack.c.l.b16 %v128
    %v328 = vunpack.c.h.b16 %v128
    %v329 = vunpack.c.l.b16 %v129
    %v330 = vunpack.c.h.b16 %v129
    %v331 = vunpack.c.l.b16 %v130
    %v332 = vunpack.c.h.b16 %v130
    %v333 = vunpack.c.l.b16 %v131
    %v334 = vunpack.c.h.b16 %v131
    %v335 = vunpack.c.l.b16 %v132
    %v336 = vunpack.c.h.b16 %v132
    %v337 = vunpack.c.l.b16 %v133
    %v338 = vunpack.c.h.b16 %v133
    %v339 = vunpack.c.l.b16 %v134
    %v340 = vunpack.c.h.b16 %v134
    %v341 = vunpack.c.l.b16 %v135
    %v342 = vunpack.c.h.b16 %v135
    %v343 = vunpack.c.l.b16 %v136
    %v344 = vunpack.c.h.b16 %v136
    %v345 = vunpack.c.l.b16 %v137
    %v346 = vunpack.c.h.b16 %v137
    %v347 = vunpack.c.l.b16 %v138
    %v348 = vunpack.c.h.b16 %v138
    %v349 = vunpack.c.l.b16 %v139
    %v350 = vunpack.c.h.b16 %v139
    %v351 = vunpack.c.l.b16 %v140
    %v352 = vunpack.c.h.b16 %v140
    %v353 = vunpack.c.l.b16 %v141
    %v354 = vunpack.c.h.b16 %v141
    %v355 = vunpack.c.l.b16 %v142
    %v356 = vunpack.c.h.b16 %v142
    %v357 = vunpack.c.l.b16 %v143
    %v358 = vunpack.c.h.b16 %v143
    %v359 = vunpack.c.l.b16 %v144
    %v360 = vunpack.c.h.b16 %v144
    %v361 = vunpack.c.l.b16 %v145
    %v362 = vunpack.c.h.b16 %v145
    %v363 = vunpack.c.l.b16 %v146
    %v364 = vunpack.c.h.b16 %v146
    %v365 = vunpack.c.l.b16 %v147
    %v366 = vunpack.c.h.b16 %v147
    %v367 = vunpack.c.l.b16 %v148
    %v368 = vunpack.c.h.b16 %v148
    %v369 = vunpack.c.l.b16 %v149
    %v370 = vunpack.c.h.b16 %v149
    %v371 = vunpack.c.l.b16 %v150
    %v372 = vunpack.c.h.b16 %v150
    %v373 = vunpack.c.l.b16 %v151
    %v374 = vunpack.c.h.b16 %v151
    %v375 = vunpack.c.l.b16 %v152
    %v376 = vunpack.c.h.b16 %v152
    %v377 = vunpack.c.l.b16 %v153
    %v378 = vunpack.c.h.b16 %v153
    %v379 = vunpack.c.l.b16 %v154
    %v380 = vunpack.c.h.b16 %v154
    %v381 = vunpack.c.l.b16 %v155
    %v382 = vunpack.c.h.b16 %v155
    %v383 = vunpack.c.l.b16 %v156
    %v384 = vunpack.c.h.b16 %v156
    %v385 = vunpack.c.l.b16 %v157
    %v386 = vunpack.c.h.b16 %v157
    %v387 = vunpack.c.l.b16 %v158
    %v388 = vunpack.c.h.b16 %v158
    %v389 = vunpack.c.l.b16 %v159
    %v390 = vunpack.c.h.b16 %v159
    %v391 = vunpack.c.l.b16 %v160
    %v392 = vunpack.c.h.b16 %v160
    %v393 = vunpack.c.l.b16 %v161
    %v394 = vunpack.c.h.b16 %v161
    %v395 = vunpack.c.l.b16 %v162
    %v396 = vunpack.c.h.b16 %v162
    %v397 = vpack.c.b16 %v277, %v269
    %v398 = vpack.c.b16 %v278, %v270
    %v399 = vpack.c.b16 %v279, %v271
    %v400 = vpack.c.b16 %v280, %v272
    %v401 = vpack.c.b16 %v281, %v273
    %v402 = vpack.c.b16 %v282, %v274
    %v403 = vpack.c.b16 %v283, %v275
    %v404 = vpack.c.b16 %v284, %v276
    %v405 = vpack.c.b16 %v293, %v285
    %v406 = vpack.c.b16 %v294, %v286
    %v407 = vpack.c.b16 %v295, %v287
    %v408 = vpack.c.b16 %v296, %v288
    %v409 = vpack.c.b16 %v297, %v289
    %v410 = vpack.c.b16 %v298, %v290
    %v411 = vpack.c.b16 %v299, %v291
    %v412 = vpack.c.b16 %v300, %v292
    %v413 = vpack.c.b16 %v309, %v301
    %v414 = vpack.c.b16 %v310, %v302
    %v415 = vpack.c.b16 %v311, %v303
    %v416 = vpack.c.b16 %v312, %v304
    %v417 = vpack.c.b16 %v313, %v305
    %v418 = vpack.c.b16 %v314, %v306
    %v419 = vpack.c.b16 %v315, %v307
    %v420 = vpack.c.b16 %v316, %v308
    %v421 = vpack.c.b16 %v325, %v317
    %v422 = vpack.c.b16 %v326, %v318
    %v423 = vpack.c.b16 %v327, %v319
    %v424 = vpack.c.b16 %v328, %v320
    %v425 = vpack.c.b16 %v329, %v321
    %v426 = vpack.c.b16 %v330, %v322
    %v427 = vpack.c.b16 %v331, %v323
    %v428 = vpack.c.b16 %v332, %v324
    %v429 = vpack.c.b16 %v341, %v333
    %v430 = vpack.c.b16 %v342, %v334
    %v431 = vpack.c.b16 %v343, %v335
    %v432 = vpack.c.b16 %v344, %v336
    %v433 = vpack.c.b16 %v345, %v337
    %v434 = vpack.c.b16 %v346, %v338
    %v435 = vpack.c.b16 %v347, %v339
    %v436 = vpack.c.b16 %v348, %v340
    %v437 = vpack.c.b16 %v357, %v349
    %v438 = vpack.c.b16 %v358, %v350
    %v439 = vpack.c.b16 %v359, %v351
    %v440 = vpack.c.b16 %v360, %v352
    %v441 = vpack.c.b16 %v361, %v353
    %v442 = vpack.c.b16 %v362, %v354
    %v443 = vpack.c.b16 %v363, %v355
    %v444 = vpack.c.b16 %v364, %v356
    %v445 = vpack.c.b16 %v373, %v365
    %v446 = vpack.c.b16 %v374, %v366
    %v447 = vpack.c.b16 %v375, %v367
    %v448 = vpack.c.b16 %v376, %v368
    %v449 = vpack.c.b16 %v377, %v369
    %v450 = vpack.c.b16 %v378, %v370
    %v451 = vpack.c.b16 %v379, %v371
    %v452 = vpack.c.b16 %v380, %v372
    %v453 = vpack.c.b16 %v389, %v381
    %v454 = vpack.c.b16 %v390, %v382
    %v455 = vpack.c.b16 %v391, %v383
    %v456 = vpack.c.b16 %v392, %v384
    %v457 = vpack.c.b16 %v393, %v385
    %v458 = vpack.c.b16 %v394, %v386
    %v459 = vpack.c.b16 %v395, %v387
    %v460 = vpack.c.b16 %v396, %v388
    %525 = vmatprep.subr.bf16.mxu0 %v398
    %526 = vmatpush1.bf16.msra.mxu0 %v397
    %527 = vmatprep.subr.bf16.mxu0 %v406
    %528 = vmatpush1.bf16.msra.mxu0 %v405
    %529 = vmatprep.subr.bf16.mxu0 %v414
    %530 = vmatpush1.bf16.msra.mxu0 %v413
    %531 = vmatprep.subr.bf16.mxu0 %v422
    %532 = vmatpush1.bf16.msra.mxu0 %v421
    %533 = vmatprep.subr.bf16.mxu0 %v430
    %534 = vmatpush1.bf16.msra.mxu0 %v429
    %535 = vmatprep.subr.bf16.mxu0 %v438
    %536 = vmatpush1.bf16.msra.mxu0 %v437
    %537 = vmatprep.subr.bf16.mxu0 %v446
    %538 = vmatpush1.bf16.msra.mxu0 %v445
    %539 = vmatprep.subr.bf16.mxu0 %v454
    %540 = vmatpush1.bf16.msra.mxu0 %v453
    %541 = vmatprep.subr.bf16.mxu0 0
    %542 = vmatpush1.bf16.msra.mxu0 0
    %543 = vmatprep.subr.bf16.mxu0 0
    %544 = vmatpush1.bf16.msra.mxu0 0
    %545 = vmatprep.subr.bf16.mxu0 0
    %546 = vmatpush1.bf16.msra.mxu0 0
    %547 = vmatprep.subr.bf16.mxu0 0
    %548 = vmatpush1.bf16.msra.mxu0 0
    %549 = vmatprep.subr.bf16.mxu0 0
    %550 = vmatpush1.bf16.msra.mxu0 0
    %551 = vmatprep.subr.bf16.mxu0 0
    %552 = vmatpush1.bf16.msra.mxu0 0
    %553 = vmatprep.subr.bf16.mxu0 0
    %554 = vmatpush1.bf16.msra.mxu0 0
    %555 = vmatprep.subr.bf16.mxu0 0
    %556 = vmatpush1.bf16.msra.mxu0 0
    %557 = vmatprep.mubr.bf16.mxu0 0
    %558 = vmatmul.mubr.bf16.gmra.mrb[0].mxu0 %v98
    %v559 = vpop.f32.mrb[0].mxu0
    %v560 = vadd.f32 %v168, %v559
    %v561 = vpop.f32.mrb[0].mxu0
    %v562 = vadd.f32 %v172, %v561
    %v563 = vpop.f32.mrb[0].mxu0
    %v564 = vpop.f32.mrb[0].mxu0
    %565 = vdwg.mxu0
    %566 = vmatprep.subr.bf16.mxu0 %v400
    %567 = vmatpush1.bf16.msra.mxu0 %v399
    %568 = vmatprep.subr.bf16.mxu0 %v408
    %569 = vmatpush1.bf16.msra.mxu0 %v407
    %570 = vmatprep.subr.bf16.mxu0 %v416
    %571 = vmatpush1.bf16.msra.mxu0 %v415
    %572 = vmatprep.subr.bf16.mxu0 %v424
    %573 = vmatpush1.bf16.msra.mxu0 %v423
    %574 = vmatprep.subr.bf16.mxu0 %v432
    %575 = vmatpush1.bf16.msra.mxu0 %v431
    %576 = vmatprep.subr.bf16.mxu0 %v440
    %577 = vmatpush1.bf16.msra.mxu0 %v439
    %578 = vmatprep.subr.bf16.mxu0 %v448
    %579 = vmatpush1.bf16.msra.mxu0 %v447
    %580 = vmatprep.subr.bf16.mxu0 %v456
    %581 = vmatpush1.bf16.msra.mxu0 %v455
    %582 = vmatprep.subr.bf16.mxu0 0
    %583 = vmatpush1.bf16.msra.mxu0 0
    %584 = vmatprep.subr.bf16.mxu0 0
    %585 = vmatpush1.bf16.msra.mxu0 0
    %586 = vmatprep.subr.bf16.mxu0 0
    %587 = vmatpush1.bf16.msra.mxu0 0
    %588 = vmatprep.subr.bf16.mxu0 0
    %589 = vmatpush1.bf16.msra.mxu0 0
    %590 = vmatprep.subr.bf16.mxu0 0
    %591 = vmatpush1.bf16.msra.mxu0 0
    %592 = vmatprep.subr.bf16.mxu0 0
    %593 = vmatpush1.bf16.msra.mxu0 0
    %594 = vmatprep.subr.bf16.mxu0 0
    %595 = vmatpush1.bf16.msra.mxu0 0
    %596 = vmatprep.subr.bf16.mxu0 0
    %597 = vmatpush1.bf16.msra.mxu0 0
    %598 = vmatprep.mubr.bf16.mxu0 0
    %599 = vmatmul.mubr.bf16.gmra.mrb[0].mxu0 %v98
    %v600 = vpop.f32.mrb[0].mxu0
    %v601 = vadd.f32 %v176, %v600
    %v602 = vpop.f32.mrb[0].mxu0
    %v603 = vadd.f32 %v180, %v602
    %v604 = vpop.f32.mrb[0].mxu0
    %v605 = vpop.f32.mrb[0].mxu0
    %606 = vdwg.mxu0
    %607 = vmatprep.subr.bf16.mxu0 %v402
    %608 = vmatpush1.bf16.msra.mxu0 %v401
    %609 = vmatprep.subr.bf16.mxu0 %v410
    %610 = vmatpush1.bf16.msra.mxu0 %v409
    %611 = vmatprep.subr.bf16.mxu0 %v418
    %612 = vmatpush1.bf16.msra.mxu0 %v417
    %613 = vmatprep.subr.bf16.mxu0 %v426
    %614 = vmatpush1.bf16.msra.mxu0 %v425
    %615 = vmatprep.subr.bf16.mxu0 %v434
    %616 = vmatpush1.bf16.msra.mxu0 %v433
    %617 = vmatprep.subr.bf16.mxu0 %v442
    %618 = vmatpush1.bf16.msra.mxu0 %v441
    %619 = vmatprep.subr.bf16.mxu0 %v450
    %620 = vmatpush1.bf16.msra.mxu0 %v449
    %621 = vmatprep.subr.bf16.mxu0 %v458
    %622 = vmatpush1.bf16.msra.mxu0 %v457
    %623 = vmatprep.subr.bf16.mxu0 0
    %624 = vmatpush1.bf16.msra.mxu0 0
    %625 = vmatprep.subr.bf16.mxu0 0
    %626 = vmatpush1.bf16.msra.mxu0 0
    %627 = vmatprep.subr.bf16.mxu0 0
    %628 = vmatpush1.bf16.msra.mxu0 0
    %629 = vmatprep.subr.bf16.mxu0 0
    %630 = vmatpush1.bf16.msra.mxu0 0
    %631 = vmatprep.subr.bf16.mxu0 0
    %632 = vmatpush1.bf16.msra.mxu0 0
    %633 = vmatprep.subr.bf16.mxu0 0
    %634 = vmatpush1.bf16.msra.mxu0 0
    %635 = vmatprep.subr.bf16.mxu0 0
    %636 = vmatpush1.bf16.msra.mxu0 0
    %637 = vmatprep.subr.bf16.mxu0 0
    %638 = vmatpush1.bf16.msra.mxu0 0
    %639 = vmatprep.mubr.bf16.mxu0 0
    %640 = vmatmul.mubr.bf16.gmra.mrb[0].mxu0 %v98
    %v641 = vpop.f32.mrb[0].mxu0
    %v642 = vadd.f32 %v184, %v641
    %v643 = vpop.f32.mrb[0].mxu0
    %v644 = vadd.f32 %v188, %v643
    %v645 = vpop.f32.mrb[0].mxu0
    %v646 = vpop.f32.mrb[0].mxu0
    %647 = vdwg.mxu0
    %648 = vmatprep.subr.bf16.mxu0 %v404
    %649 = vmatpush1.bf16.msra.mxu0 %v403
    %650 = vmatprep.subr.bf16.mxu0 %v412
    %651 = vmatpush1.bf16.msra.mxu0 %v411
    %652 = vmatprep.subr.bf16.mxu0 %v420
    %653 = vmatpush1.bf16.msra.mxu0 %v419
    %654 = vmatprep.subr.bf16.mxu0 %v428
    %655 = vmatpush1.bf16.msra.mxu0 %v427
    %656 = vmatprep.subr.bf16.mxu0 %v436
    %657 = vmatpush1.bf16.msra.mxu0 %v435
    %658 = vmatprep.subr.bf16.mxu0 %v444
    %659 = vmatpush1.bf16.msra.mxu0 %v443
    %660 = vmatprep.subr.bf16.mxu0 %v452
    %661 = vmatpush1.bf16.msra.mxu0 %v451
    %662 = vmatprep.subr.bf16.mxu0 %v460
    %663 = vmatpush1.bf16.msra.mxu0 %v459
    %664 = vmatprep.subr.bf16.mxu0 0
    %665 = vmatpush1.bf16.msra.mxu0 0
    %666 = vmatprep.subr.bf16.mxu0 0
    %667 = vmatpush1.bf16.msra.mxu0 0
    %668 = vmatprep.subr.bf16.mxu0 0
    %669 = vmatpush1.bf16.msra.mxu0 0
    %670 = vmatprep.subr.bf16.mxu0 0
    %671 = vmatpush1.bf16.msra.mxu0 0
    %672 = vmatprep.subr.bf16.mxu0 0
    %673 = vmatpush1.bf16.msra.mxu0 0
    %674 = vmatprep.subr.bf16.mxu0 0
    %675 = vmatpush1.bf16.msra.mxu0 0
    %676 = vmatprep.subr.bf16.mxu0 0
    %677 = vmatpush1.bf16.msra.mxu0 0
    %678 = vmatprep.subr.bf16.mxu0 0
    %679 = vmatpush1.bf16.msra.mxu0 0
    %680 = vmatprep.mubr.bf16.mxu0 0
    %681 = vmatmul.mubr.bf16.gmra.mrb[0].mxu0 %v98
    %v682 = vpop.f32.mrb[0].mxu0
    %v683 = vadd.f32 %v192, %v682
    %v684 = vpop.f32.mrb[0].mxu0
    %v685 = vadd.f32 %v196, %v684
    %v686 = vpop.f32.mrb[0].mxu0
    %v687 = vpop.f32.mrb[0].mxu0
    %688 = vdwg.mxu0
    %v689 = vmax.f32 %v560, 0.0
    %v690 = vmax.f32 %v562, 0.0
    %v691 = vmax.f32 %v601, 0.0
    %v692 = vmax.f32 %v603, 0.0
    %v693 = vmax.f32 %v642, 0.0
    %v694 = vmax.f32 %v644, 0.0
    %v695 = vmax.f32 %v683, 0.0
    %v696 = vmax.f32 %v685, 0.0
    %v697 = vpack.c.bf16 %v689, %v689
    %v698 = vpack.c.bf16 %v690, %v690
    %v699 = vpack.c.bf16 %v691, %v691
    %v700 = vpack.c.bf16 %v692, %v692
    %v701 = vpack.c.bf16 %v693, %v693
    %v702 = vpack.c.bf16 %v694, %v694
    %v703 = vpack.c.bf16 %v695, %v695
    %v704 = vpack.c.bf16 %v696, %v696
    %v705 = vld [vmem:[%s3] sm:$0xff]
    %v706 = vld [vmem:[%s3 + $0x8] sm:$0xff]
    %v707 = vld [vmem:[%s3 + $0x10] sm:$0xff]
    %v708 = vld [vmem:[%s3 + $0x18] sm:$0xff]
    %v709 = vld [vmem:[%s3 + $0x20] sm:$0xff]
    %v710 = vld [vmem:[%s3 + $0x28] sm:$0xff]
    %v711 = vld [vmem:[%s3 + $0x30] sm:$0xff]
    %v712 = vld [vmem:[%s3 + $0x38] sm:$0xff]
    %v713 = vld [vmem:[%s3 + $0x40] sm:$0xff]
    %v714 = vld [vmem:[%s3 + $0x48] sm:$0xff]
    %v715 = vld [vmem:[%s3 + $0x50] sm:$0xff]
    %v716 = vld [vmem:[%s3 + $0x58] sm:$0xff]
    %v717 = vld [vmem:[%s3 + $0x60] sm:$0xff]
    %v718 = vld [vmem:[%s3 + $0x68] sm:$0xff]
    %v719 = vld [vmem:[%s3 + $0x70] sm:$0xff]
    %v720 = vld [vmem:[%s3 + $0x78] sm:$0xff]
    %v721 = vld [vmem:[%s3 + $0x80] sm:$0xff]
    %v722 = vld [vmem:[%s3 + $0x88] sm:$0xff]
    %v723 = vld [vmem:[%s3 + $0x90] sm:$0xff]
    %v724 = vld [vmem:[%s3 + $0x98] sm:$0xff]
    %v725 = vld [vmem:[%s3 + $0xa0] sm:$0xff]
    %v726 = vld [vmem:[%s3 + $0xa8] sm:$0xff]
    %v727 = vld [vmem:[%s3 + $0xb0] sm:$0xff]
    %v728 = vld [vmem:[%s3 + $0xb8] sm:$0xff]
    %v729 = vld [vmem:[%s3 + $0xc0] sm:$0xff]
    %v730 = vld [vmem:[%s3 + $0xc8] sm:$0xff]
    %v731 = vld [vmem:[%s3 + $0xd0] sm:$0xff]
    %v732 = vld [vmem:[%s3 + $0xd8] sm:$0xff]
    %v733 = vld [vmem:[%s3 + $0xe0] sm:$0xff]
    %v734 = vld [vmem:[%s3 + $0xe8] sm:$0xff]
    %v735 = vld [vmem:[%s3 + $0xf0] sm:$0xff]
    %v736 = vld [vmem:[%s3 + $0xf8] sm:$0xff]
    %v737 = vld [vmem:[%s3 + $0x100] sm:$0xff]
    %v738 = vld [vmem:[%s3 + $0x108] sm:$0xff]
    %v739 = vld [vmem:[%s3 + $0x110] sm:$0xff]
    %v740 = vld [vmem:[%s3 + $0x118] sm:$0xff]
    %v741 = vld [vmem:[%s3 + $0x120] sm:$0xff]
    %v742 = vld [vmem:[%s3 + $0x128] sm:$0xff]
    %v743 = vld [vmem:[%s3 + $0x130] sm:$0xff]
    %v744 = vld [vmem:[%s3 + $0x138] sm:$0xff]
    %v745 = vld [vmem:[%s3 + $0x140] sm:$0xff]
    %v746 = vld [vmem:[%s3 + $0x148] sm:$0xff]
    %v747 = vld [vmem:[%s3 + $0x150] sm:$0xff]
    %v748 = vld [vmem:[%s3 + $0x158] sm:$0xff]
    %v749 = vld [vmem:[%s3 + $0x160] sm:$0xff]
    %v750 = vld [vmem:[%s3 + $0x168] sm:$0xff]
    %v751 = vld [vmem:[%s3 + $0x170] sm:$0xff]
    %v752 = vld [vmem:[%s3 + $0x178] sm:$0xff]
    %v753 = vld [vmem:[%s3 + $0x180] sm:$0xff]
    %v754 = vld [vmem:[%s3 + $0x188] sm:$0xff]
    %v755 = vld [vmem:[%s3 + $0x190] sm:$0xff]
    %v756 = vld [vmem:[%s3 + $0x198] sm:$0xff]
    %v757 = vld [vmem:[%s3 + $0x1a0] sm:$0xff]
    %v758 = vld [vmem:[%s3 + $0x1a8] sm:$0xff]
    %v759 = vld [vmem:[%s3 + $0x1b0] sm:$0xff]
    %v760 = vld [vmem:[%s3 + $0x1b8] sm:$0xff]
    %v761 = vld [vmem:[%s3 + $0x1c0] sm:$0xff]
    %v762 = vld [vmem:[%s3 + $0x1c8] sm:$0xff]
    %v763 = vld [vmem:[%s3 + $0x1d0] sm:$0xff]
    %v764 = vld [vmem:[%s3 + $0x1d8] sm:$0xff]
    %v765 = vld [vmem:[%s3 + $0x1e0] sm:$0xff]
    %v766 = vld [vmem:[%s3 + $0x1e8] sm:$0xff]
    %v767 = vld [vmem:[%s3 + $0x1f0] sm:$0xff]
    %v768 = vld [vmem:[%s3 + $0x1f8] sm:$0xff]
    %v769 = vld [vmem:[%s3 + $0x200] sm:$0xff]
    %v770 = vld [vmem:[%s3 + $0x208] sm:$0xff]
    %v771 = vld [vmem:[%s3 + $0x210] sm:$0xff]
    %v772 = vld [vmem:[%s3 + $0x218] sm:$0xff]
    %v773 = vld [vmem:[%s3 + $0x220] sm:$0xff]
    %v774 = vld [vmem:[%s3 + $0x228] sm:$0xff]
    %v775 = vld [vmem:[%s3 + $0x230] sm:$0xff]
    %v776 = vld [vmem:[%s3 + $0x238] sm:$0xff]
    %v777 = vld [vmem:[%s3 + $0x240] sm:$0xff]
    %v778 = vld [vmem:[%s3 + $0x248] sm:$0xff]
    %v779 = vld [vmem:[%s3 + $0x250] sm:$0xff]
    %v780 = vld [vmem:[%s3 + $0x258] sm:$0xff]
    %v781 = vld [vmem:[%s3 + $0x260] sm:$0xff]
    %v782 = vld [vmem:[%s3 + $0x268] sm:$0xff]
    %v783 = vld [vmem:[%s3 + $0x270] sm:$0xff]
    %v784 = vld [vmem:[%s3 + $0x278] sm:$0xff]
    %v785 = vld [vmem:[%s3 + $0x280] sm:$0xff]
    %v786 = vld [vmem:[%s3 + $0x288] sm:$0xff]
    %v787 = vld [vmem:[%s3 + $0x290] sm:$0xff]
    %v788 = vld [vmem:[%s3 + $0x298] sm:$0xff]
    %v789 = vld [vmem:[%s3 + $0x2a0] sm:$0xff]
    %v790 = vld [vmem:[%s3 + $0x2a8] sm:$0xff]
    %v791 = vld [vmem:[%s3 + $0x2b0] sm:$0xff]
    %v792 = vld [vmem:[%s3 + $0x2b8] sm:$0xff]
    %v793 = vld [vmem:[%s3 + $0x2c0] sm:$0xff]
    %v794 = vld [vmem:[%s3 + $0x2c8] sm:$0xff]
    %v795 = vld [vmem:[%s3 + $0x2d0] sm:$0xff]
    %v796 = vld [vmem:[%s3 + $0x2d8] sm:$0xff]
    %v797 = vld [vmem:[%s3 + $0x2e0] sm:$0xff]
    %v798 = vld [vmem:[%s3 + $0x2e8] sm:$0xff]
    %v799 = vld [vmem:[%s3 + $0x2f0] sm:$0xff]
    %v800 = vld [vmem:[%s3 + $0x2f8] sm:$0xff]
    %v801 = vld [vmem:[%s3 + $0x300] sm:$0xff]
    %v802 = vld [vmem:[%s3 + $0x308] sm:$0xff]
    %v803 = vld [vmem:[%s3 + $0x310] sm:$0xff]
    %v804 = vld [vmem:[%s3 + $0x318] sm:$0xff]
    %v805 = vld [vmem:[%s3 + $0x320] sm:$0xff]
    %v806 = vld [vmem:[%s3 + $0x328] sm:$0xff]
    %v807 = vld [vmem:[%s3 + $0x330] sm:$0xff]
    %v808 = vld [vmem:[%s3 + $0x338] sm:$0xff]
    %v809 = vld [vmem:[%s3 + $0x340] sm:$0xff]
    %v810 = vld [vmem:[%s3 + $0x348] sm:$0xff]
    %v811 = vld [vmem:[%s3 + $0x350] sm:$0xff]
    %v812 = vld [vmem:[%s3 + $0x358] sm:$0xff]
    %v813 = vld [vmem:[%s3 + $0x360] sm:$0xff]
    %v814 = vld [vmem:[%s3 + $0x368] sm:$0xff]
    %v815 = vld [vmem:[%s3 + $0x370] sm:$0xff]
    %v816 = vld [vmem:[%s3 + $0x378] sm:$0xff]
    %v817 = vld [vmem:[%s3 + $0x380] sm:$0xff]
    %v818 = vld [vmem:[%s3 + $0x388] sm:$0xff]
    %v819 = vld [vmem:[%s3 + $0x390] sm:$0xff]
    %v820 = vld [vmem:[%s3 + $0x398] sm:$0xff]
    %v821 = vld [vmem:[%s3 + $0x3a0] sm:$0xff]
    %v822 = vld [vmem:[%s3 + $0x3a8] sm:$0xff]
    %v823 = vld [vmem:[%s3 + $0x3b0] sm:$0xff]
    %v824 = vld [vmem:[%s3 + $0x3b8] sm:$0xff]
    %v825 = vld [vmem:[%s3 + $0x3c0] sm:$0xff]
    %v826 = vld [vmem:[%s3 + $0x3c8] sm:$0xff]
    %v827 = vld [vmem:[%s3 + $0x3d0] sm:$0xff]
    %v828 = vld [vmem:[%s3 + $0x3d8] sm:$0xff]
    %v829 = vld [vmem:[%s3 + $0x3e0] sm:$0xff]
    %v830 = vld [vmem:[%s3 + $0x3e8] sm:$0xff]
    %v831 = vld [vmem:[%s3 + $0x3f0] sm:$0xff]
    %v832 = vld [vmem:[%s3 + $0x3f8] sm:$0xff]
    %v833 = vld [vmem:[%s3 + $0x400] sm:$0xff]
    %v834 = vld [vmem:[%s3 + $0x408] sm:$0xff]
    %v835 = vld [vmem:[%s3 + $0x410] sm:$0xff]
    %v836 = vld [vmem:[%s3 + $0x418] sm:$0xff]
    %v837 = vld [vmem:[%s3 + $0x420] sm:$0xff]
    %v838 = vld [vmem:[%s3 + $0x428] sm:$0xff]
    %v839 = vld [vmem:[%s3 + $0x430] sm:$0xff]
    %v840 = vld [vmem:[%s3 + $0x438] sm:$0xff]
    %v841 = vld [vmem:[%s3 + $0x440] sm:$0xff]
    %v842 = vld [vmem:[%s3 + $0x448] sm:$0xff]
    %v843 = vld [vmem:[%s3 + $0x450] sm:$0xff]
    %v844 = vld [vmem:[%s3 + $0x458] sm:$0xff]
    %v845 = vld [vmem:[%s3 + $0x460] sm:$0xff]
    %v846 = vld [vmem:[%s3 + $0x468] sm:$0xff]
    %v847 = vld [vmem:[%s3 + $0x470] sm:$0xff]
    %v848 = vld [vmem:[%s3 + $0x478] sm:$0xff]
    %v849 = vld [vmem:[%s3 + $0x480] sm:$0xff]
    %v850 = vld [vmem:[%s3 + $0x488] sm:$0xff]
    %v851 = vld [vmem:[%s3 + $0x490] sm:$0xff]
    %v852 = vld [vmem:[%s3 + $0x498] sm:$0xff]
    %v853 = vld [vmem:[%s3 + $0x4a0] sm:$0xff]
    %v854 = vld [vmem:[%s3 + $0x4a8] sm:$0xff]
    %v855 = vld [vmem:[%s3 + $0x4b0] sm:$0xff]
    %v856 = vld [vmem:[%s3 + $0x4b8] sm:$0xff]
    %v857 = vld [vmem:[%s3 + $0x4c0] sm:$0xff]
    %v858 = vld [vmem:[%s3 + $0x4c8] sm:$0xff]
    %v859 = vld [vmem:[%s3 + $0x4d0] sm:$0xff]
    %v860 = vld [vmem:[%s3 + $0x4d8] sm:$0xff]
    %v861 = vld [vmem:[%s3 + $0x4e0] sm:$0xff]
    %v862 = vld [vmem:[%s3 + $0x4e8] sm:$0xff]
    %v863 = vld [vmem:[%s3 + $0x4f0] sm:$0xff]
    %v864 = vld [vmem:[%s3 + $0x4f8] sm:$0xff]
    %v865 = vld [vmem:[%s3 + $0x500] sm:$0xff]
    %v866 = vld [vmem:[%s3 + $0x508] sm:$0xff]
    %v867 = vld [vmem:[%s3 + $0x510] sm:$0xff]
    %v868 = vld [vmem:[%s3 + $0x518] sm:$0xff]
    %v869 = vld [vmem:[%s3 + $0x520] sm:$0xff]
    %v870 = vld [vmem:[%s3 + $0x528] sm:$0xff]
    %v871 = vld [vmem:[%s3 + $0x530] sm:$0xff]
    %v872 = vld [vmem:[%s3 + $0x538] sm:$0xff]
    %v873 = vld [vmem:[%s3 + $0x540] sm:$0xff]
    %v874 = vld [vmem:[%s3 + $0x548] sm:$0xff]
    %v875 = vld [vmem:[%s3 + $0x550] sm:$0xff]
    %v876 = vld [vmem:[%s3 + $0x558] sm:$0xff]
    %v877 = vld [vmem:[%s3 + $0x560] sm:$0xff]
    %v878 = vld [vmem:[%s3 + $0x568] sm:$0xff]
    %v879 = vld [vmem:[%s3 + $0x570] sm:$0xff]
    %v880 = vld [vmem:[%s3 + $0x578] sm:$0xff]
    %v881 = vld [vmem:[%s3 + $0x580] sm:$0xff]
    %v882 = vld [vmem:[%s3 + $0x588] sm:$0xff]
    %v883 = vld [vmem:[%s3 + $0x590] sm:$0xff]
    %v884 = vld [vmem:[%s3 + $0x598] sm:$0xff]
    %v885 = vld [vmem:[%s3 + $0x5a0] sm:$0xff]
    %v886 = vld [vmem:[%s3 + $0x5a8] sm:$0xff]
    %v887 = vld [vmem:[%s3 + $0x5b0] sm:$0xff]
    %v888 = vld [vmem:[%s3 + $0x5b8] sm:$0xff]
    %v889 = vld [vmem:[%s3 + $0x5c0] sm:$0xff]
    %v890 = vld [vmem:[%s3 + $0x5c8] sm:$0xff]
    %v891 = vld [vmem:[%s3 + $0x5d0] sm:$0xff]
    %v892 = vld [vmem:[%s3 + $0x5d8] sm:$0xff]
    %v893 = vld [vmem:[%s3 + $0x5e0] sm:$0xff]
    %v894 = vld [vmem:[%s3 + $0x5e8] sm:$0xff]
    %v895 = vld [vmem:[%s3 + $0x5f0] sm:$0xff]
    %v896 = vld [vmem:[%s3 + $0x5f8] sm:$0xff]
    %v897 = vld [vmem:[%s3 + $0x600] sm:$0xff]
    %v898 = vld [vmem:[%s3 + $0x608] sm:$0xff]
    %v899 = vld [vmem:[%s3 + $0x610] sm:$0xff]
    %v900 = vld [vmem:[%s3 + $0x618] sm:$0xff]
    %v901 = vld [vmem:[%s3 + $0x620] sm:$0xff]
    %v902 = vld [vmem:[%s3 + $0x628] sm:$0xff]
    %v903 = vld [vmem:[%s3 + $0x630] sm:$0xff]
    %v904 = vld [vmem:[%s3 + $0x638] sm:$0xff]
    %v905 = vld [vmem:[%s3 + $0x640] sm:$0xff]
    %v906 = vld [vmem:[%s3 + $0x648] sm:$0xff]
    %v907 = vld [vmem:[%s3 + $0x650] sm:$0xff]
    %v908 = vld [vmem:[%s3 + $0x658] sm:$0xff]
    %v909 = vld [vmem:[%s3 + $0x660] sm:$0xff]
    %v910 = vld [vmem:[%s3 + $0x668] sm:$0xff]
    %v911 = vld [vmem:[%s3 + $0x670] sm:$0xff]
    %v912 = vld [vmem:[%s3 + $0x678] sm:$0xff]
    %v913 = vld [vmem:[%s3 + $0x680] sm:$0xff]
    %v914 = vld [vmem:[%s3 + $0x688] sm:$0xff]
    %v915 = vld [vmem:[%s3 + $0x690] sm:$0xff]
    %v916 = vld [vmem:[%s3 + $0x698] sm:$0xff]
    %v917 = vld [vmem:[%s3 + $0x6a0] sm:$0xff]
    %v918 = vld [vmem:[%s3 + $0x6a8] sm:$0xff]
    %v919 = vld [vmem:[%s3 + $0x6b0] sm:$0xff]
    %v920 = vld [vmem:[%s3 + $0x6b8] sm:$0xff]
    %v921 = vld [vmem:[%s3 + $0x6c0] sm:$0xff]
    %v922 = vld [vmem:[%s3 + $0x6c8] sm:$0xff]
    %v923 = vld [vmem:[%s3 + $0x6d0] sm:$0xff]
    %v924 = vld [vmem:[%s3 + $0x6d8] sm:$0xff]
    %v925 = vld [vmem:[%s3 + $0x6e0] sm:$0xff]
    %v926 = vld [vmem:[%s3 + $0x6e8] sm:$0xff]
    %v927 = vld [vmem:[%s3 + $0x6f0] sm:$0xff]
    %v928 = vld [vmem:[%s3 + $0x6f8] sm:$0xff]
    %v929 = vld [vmem:[%s3 + $0x700] sm:$0xff]
    %v930 = vld [vmem:[%s3 + $0x708] sm:$0xff]
    %v931 = vld [vmem:[%s3 + $0x710] sm:$0xff]
    %v932 = vld [vmem:[%s3 + $0x718] sm:$0xff]
    %v933 = vld [vmem:[%s3 + $0x720] sm:$0xff]
    %v934 = vld [vmem:[%s3 + $0x728] sm:$0xff]
    %v935 = vld [vmem:[%s3 + $0x730] sm:$0xff]
    %v936 = vld [vmem:[%s3 + $0x738] sm:$0xff]
    %v937 = vld [vmem:[%s3 + $0x740] sm:$0xff]
    %v938 = vld [vmem:[%s3 + $0x748] sm:$0xff]
    %v939 = vld [vmem:[%s3 + $0x750] sm:$0xff]
    %v940 = vld [vmem:[%s3 + $0x758] sm:$0xff]
    %v941 = vld [vmem:[%s3 + $0x760] sm:$0xff]
    %v942 = vld [vmem:[%s3 + $0x768] sm:$0xff]
    %v943 = vld [vmem:[%s3 + $0x770] sm:$0xff]
    %v944 = vld [vmem:[%s3 + $0x778] sm:$0xff]
    %v945 = vld [vmem:[%s3 + $0x780] sm:$0xff]
    %v946 = vld [vmem:[%s3 + $0x788] sm:$0xff]
    %v947 = vld [vmem:[%s3 + $0x790] sm:$0xff]
    %v948 = vld [vmem:[%s3 + $0x798] sm:$0xff]
    %v949 = vld [vmem:[%s3 + $0x7a0] sm:$0xff]
    %v950 = vld [vmem:[%s3 + $0x7a8] sm:$0xff]
    %v951 = vld [vmem:[%s3 + $0x7b0] sm:$0xff]
    %v952 = vld [vmem:[%s3 + $0x7b8] sm:$0xff]
    %v953 = vld [vmem:[%s3 + $0x7c0] sm:$0xff]
    %v954 = vld [vmem:[%s3 + $0x7c8] sm:$0xff]
    %v955 = vld [vmem:[%s3 + $0x7d0] sm:$0xff]
    %v956 = vld [vmem:[%s3 + $0x7d8] sm:$0xff]
    %v957 = vld [vmem:[%s3 + $0x7e0] sm:$0xff]
    %v958 = vld [vmem:[%s3 + $0x7e8] sm:$0xff]
    %v959 = vld [vmem:[%s3 + $0x7f0] sm:$0xff]
    %v960 = vld [vmem:[%s3 + $0x7f8] sm:$0xff]
    %v961 = vld [vmem:[%s4] sm:$0xf]
    %v963 = vlaneseq
    %v964 = vshrl.u32 %v963, 7
    %v965 = vsub.s32 0, %v964
    %v966 = vrot.slane %v961, %v965
    %v967 = vlaneseq
    %v968 = vshrl.u32 %v967, 7
    %v969 = vsub.s32 1, %v968
    %v970 = vrot.slane %v961, %v969
    %v971 = vlaneseq
    %v972 = vshrl.u32 %v971, 7
    %v973 = vsub.s32 2, %v972
    %v974 = vrot.slane %v961, %v973
    %v975 = vlaneseq
    %v976 = vshrl.u32 %v975, 7
    %v977 = vsub.s32 3, %v976
    %v978 = vrot.slane %v961, %v977
    %v1239 = vunpack.c.l.b16 %v705
    %v1240 = vunpack.c.h.b16 %v705
    %v1241 = vunpack.c.l.b16 %v706
    %v1242 = vunpack.c.h.b16 %v706
    %v1243 = vunpack.c.l.b16 %v707
    %v1244 = vunpack.c.h.b16 %v707
    %v1245 = vunpack.c.l.b16 %v708
    %v1246 = vunpack.c.h.b16 %v708
    %v1247 = vunpack.c.l.b16 %v709
    %v1248 = vunpack.c.h.b16 %v709
    %v1249 = vunpack.c.l.b16 %v710
    %v1250 = vunpack.c.h.b16 %v710
    %v1251 = vunpack.c.l.b16 %v711
    %v1252 = vunpack.c.h.b16 %v711
    %v1253 = vunpack.c.l.b16 %v712
    %v1254 = vunpack.c.h.b16 %v712
    %v1255 = vunpack.c.l.b16 %v713
    %v1256 = vunpack.c.h.b16 %v713
    %v1257 = vunpack.c.l.b16 %v714
    %v1258 = vunpack.c.h.b16 %v714
    %v1259 = vunpack.c.l.b16 %v715
    %v1260 = vunpack.c.h.b16 %v715
    %v1261 = vunpack.c.l.b16 %v716
    %v1262 = vunpack.c.h.b16 %v716
    %v1263 = vunpack.c.l.b16 %v717
    %v1264 = vunpack.c.h.b16 %v717
    %v1265 = vunpack.c.l.b16 %v718
    %v1266 = vunpack.c.h.b16 %v718
    %v1267 = vunpack.c.l.b16 %v719
    %v1268 = vunpack.c.h.b16 %v719
    %v1269 = vunpack.c.l.b16 %v720
    %v1270 = vunpack.c.h.b16 %v720
    %v1271 = vunpack.c.l.b16 %v721
    %v1272 = vunpack.c.h.b16 %v721
    %v1273 = vunpack.c.l.b16 %v722
    %v1274 = vunpack.c.h.b16 %v722
    %v1275 = vunpack.c.l.b16 %v723
    %v1276 = vunpack.c.h.b16 %v723
    %v1277 = vunpack.c.l.b16 %v724
    %v1278 = vunpack.c.h.b16 %v724
    %v1279 = vunpack.c.l.b16 %v725
    %v1280 = vunpack.c.h.b16 %v725
    %v1281 = vunpack.c.l.b16 %v726
    %v1282 = vunpack.c.h.b16 %v726
    %v1283 = vunpack.c.l.b16 %v727
    %v1284 = vunpack.c.h.b16 %v727
    %v1285 = vunpack.c.l.b16 %v728
    %v1286 = vunpack.c.h.b16 %v728
    %v1287 = vunpack.c.l.b16 %v729
    %v1288 = vunpack.c.h.b16 %v729
    %v1289 = vunpack.c.l.b16 %v730
    %v1290 = vunpack.c.h.b16 %v730
    %v1291 = vunpack.c.l.b16 %v731
    %v1292 = vunpack.c.h.b16 %v731
    %v1293 = vunpack.c.l.b16 %v732
    %v1294 = vunpack.c.h.b16 %v732
    %v1295 = vunpack.c.l.b16 %v733
    %v1296 = vunpack.c.h.b16 %v733
    %v1297 = vunpack.c.l.b16 %v734
    %v1298 = vunpack.c.h.b16 %v734
    %v1299 = vunpack.c.l.b16 %v735
    %v1300 = vunpack.c.h.b16 %v735
    %v1301 = vunpack.c.l.b16 %v736
    %v1302 = vunpack.c.h.b16 %v736
    %v1303 = vunpack.c.l.b16 %v737
    %v1304 = vunpack.c.h.b16 %v737
    %v1305 = vunpack.c.l.b16 %v738
    %v1306 = vunpack.c.h.b16 %v738
    %v1307 = vunpack.c.l.b16 %v739
    %v1308 = vunpack.c.h.b16 %v739
    %v1309 = vunpack.c.l.b16 %v740
    %v1310 = vunpack.c.h.b16 %v740
    %v1311 = vunpack.c.l.b16 %v741
    %v1312 = vunpack.c.h.b16 %v741
    %v1313 = vunpack.c.l.b16 %v742
    %v1314 = vunpack.c.h.b16 %v742
    %v1315 = vunpack.c.l.b16 %v743
    %v1316 = vunpack.c.h.b16 %v743
    %v1317 = vunpack.c.l.b16 %v744
    %v1318 = vunpack.c.h.b16 %v744
    %v1319 = vunpack.c.l.b16 %v745
    %v1320 = vunpack.c.h.b16 %v745
    %v1321 = vunpack.c.l.b16 %v746
    %v1322 = vunpack.c.h.b16 %v746
    %v1323 = vunpack.c.l.b16 %v747
    %v1324 = vunpack.c.h.b16 %v747
    %v1325 = vunpack.c.l.b16 %v748
    %v1326 = vunpack.c.h.b16 %v748
    %v1327 = vunpack.c.l.b16 %v749
    %v1328 = vunpack.c.h.b16 %v749
    %v1329 = vunpack.c.l.b16 %v750
    %v1330 = vunpack.c.h.b16 %v750
    %v1331 = vunpack.c.l.b16 %v751
    %v1332 = vunpack.c.h.b16 %v751
    %v1333 = vunpack.c.l.b16 %v752
    %v1334 = vunpack.c.h.b16 %v752
    %v1335 = vunpack.c.l.b16 %v753
    %v1336 = vunpack.c.h.b16 %v753
    %v1337 = vunpack.c.l.b16 %v754
    %v1338 = vunpack.c.h.b16 %v754
    %v1339 = vunpack.c.l.b16 %v755
    %v1340 = vunpack.c.h.b16 %v755
    %v1341 = vunpack.c.l.b16 %v756
    %v1342 = vunpack.c.h.b16 %v756
    %v1343 = vunpack.c.l.b16 %v757
    %v1344 = vunpack.c.h.b16 %v757
    %v1345 = vunpack.c.l.b16 %v758
    %v1346 = vunpack.c.h.b16 %v758
    %v1347 = vunpack.c.l.b16 %v759
    %v1348 = vunpack.c.h.b16 %v759
    %v1349 = vunpack.c.l.b16 %v760
    %v1350 = vunpack.c.h.b16 %v760
    %v1351 = vunpack.c.l.b16 %v761
    %v1352 = vunpack.c.h.b16 %v761
    %v1353 = vunpack.c.l.b16 %v762
    %v1354 = vunpack.c.h.b16 %v762
    %v1355 = vunpack.c.l.b16 %v763
    %v1356 = vunpack.c.h.b16 %v763
    %v1357 = vunpack.c.l.b16 %v764
    %v1358 = vunpack.c.h.b16 %v764
    %v1359 = vunpack.c.l.b16 %v765
    %v1360 = vunpack.c.h.b16 %v765
    %v1361 = vunpack.c.l.b16 %v766
    %v1362 = vunpack.c.h.b16 %v766
    %v1363 = vunpack.c.l.b16 %v767
    %v1364 = vunpack.c.h.b16 %v767
    %v1365 = vunpack.c.l.b16 %v768
    %v1366 = vunpack.c.h.b16 %v768
    %v1367 = vunpack.c.l.b16 %v769
    %v1368 = vunpack.c.h.b16 %v769
    %v1369 = vunpack.c.l.b16 %v770
    %v1370 = vunpack.c.h.b16 %v770
    %v1371 = vunpack.c.l.b16 %v771
    %v1372 = vunpack.c.h.b16 %v771
    %v1373 = vunpack.c.l.b16 %v772
    %v1374 = vunpack.c.h.b16 %v772
    %v1375 = vunpack.c.l.b16 %v773
    %v1376 = vunpack.c.h.b16 %v773
    %v1377 = vunpack.c.l.b16 %v774
    %v1378 = vunpack.c.h.b16 %v774
    %v1379 = vunpack.c.l.b16 %v775
    %v1380 = vunpack.c.h.b16 %v775
    %v1381 = vunpack.c.l.b16 %v776
    %v1382 = vunpack.c.h.b16 %v776
    %v1383 = vunpack.c.l.b16 %v777
    %v1384 = vunpack.c.h.b16 %v777
    %v1385 = vunpack.c.l.b16 %v778
    %v1386 = vunpack.c.h.b16 %v778
    %v1387 = vunpack.c.l.b16 %v779
    %v1388 = vunpack.c.h.b16 %v779
    %v1389 = vunpack.c.l.b16 %v780
    %v1390 = vunpack.c.h.b16 %v780
    %v1391 = vunpack.c.l.b16 %v781
    %v1392 = vunpack.c.h.b16 %v781
    %v1393 = vunpack.c.l.b16 %v782
    %v1394 = vunpack.c.h.b16 %v782
    %v1395 = vunpack.c.l.b16 %v783
    %v1396 = vunpack.c.h.b16 %v783
    %v1397 = vunpack.c.l.b16 %v784
    %v1398 = vunpack.c.h.b16 %v784
    %v1399 = vunpack.c.l.b16 %v785
    %v1400 = vunpack.c.h.b16 %v785
    %v1401 = vunpack.c.l.b16 %v786
    %v1402 = vunpack.c.h.b16 %v786
    %v1403 = vunpack.c.l.b16 %v787
    %v1404 = vunpack.c.h.b16 %v787
    %v1405 = vunpack.c.l.b16 %v788
    %v1406 = vunpack.c.h.b16 %v788
    %v1407 = vunpack.c.l.b16 %v789
    %v1408 = vunpack.c.h.b16 %v789
    %v1409 = vunpack.c.l.b16 %v790
    %v1410 = vunpack.c.h.b16 %v790
    %v1411 = vunpack.c.l.b16 %v791
    %v1412 = vunpack.c.h.b16 %v791
    %v1413 = vunpack.c.l.b16 %v792
    %v1414 = vunpack.c.h.b16 %v792
    %v1415 = vunpack.c.l.b16 %v793
    %v1416 = vunpack.c.h.b16 %v793
    %v1417 = vunpack.c.l.b16 %v794
    %v1418 = vunpack.c.h.b16 %v794
    %v1419 = vunpack.c.l.b16 %v795
    %v1420 = vunpack.c.h.b16 %v795
    %v1421 = vunpack.c.l.b16 %v796
    %v1422 = vunpack.c.h.b16 %v796
    %v1423 = vunpack.c.l.b16 %v797
    %v1424 = vunpack.c.h.b16 %v797
    %v1425 = vunpack.c.l.b16 %v798
    %v1426 = vunpack.c.h.b16 %v798
    %v1427 = vunpack.c.l.b16 %v799
    %v1428 = vunpack.c.h.b16 %v799
    %v1429 = vunpack.c.l.b16 %v800
    %v1430 = vunpack.c.h.b16 %v800
    %v1431 = vunpack.c.l.b16 %v801
    %v1432 = vunpack.c.h.b16 %v801
    %v1433 = vunpack.c.l.b16 %v802
    %v1434 = vunpack.c.h.b16 %v802
    %v1435 = vunpack.c.l.b16 %v803
    %v1436 = vunpack.c.h.b16 %v803
    %v1437 = vunpack.c.l.b16 %v804
    %v1438 = vunpack.c.h.b16 %v804
    %v1439 = vunpack.c.l.b16 %v805
    %v1440 = vunpack.c.h.b16 %v805
    %v1441 = vunpack.c.l.b16 %v806
    %v1442 = vunpack.c.h.b16 %v806
    %v1443 = vunpack.c.l.b16 %v807
    %v1444 = vunpack.c.h.b16 %v807
    %v1445 = vunpack.c.l.b16 %v808
    %v1446 = vunpack.c.h.b16 %v808
    %v1447 = vunpack.c.l.b16 %v809
    %v1448 = vunpack.c.h.b16 %v809
    %v1449 = vunpack.c.l.b16 %v810
    %v1450 = vunpack.c.h.b16 %v810
    %v1451 = vunpack.c.l.b16 %v811
    %v1452 = vunpack.c.h.b16 %v811
    %v1453 = vunpack.c.l.b16 %v812
    %v1454 = vunpack.c.h.b16 %v812
    %v1455 = vunpack.c.l.b16 %v813
    %v1456 = vunpack.c.h.b16 %v813
    %v1457 = vunpack.c.l.b16 %v814
    %v1458 = vunpack.c.h.b16 %v814
    %v1459 = vunpack.c.l.b16 %v815
    %v1460 = vunpack.c.h.b16 %v815
    %v1461 = vunpack.c.l.b16 %v816
    %v1462 = vunpack.c.h.b16 %v816
    %v1463 = vunpack.c.l.b16 %v817
    %v1464 = vunpack.c.h.b16 %v817
    %v1465 = vunpack.c.l.b16 %v818
    %v1466 = vunpack.c.h.b16 %v818
    %v1467 = vunpack.c.l.b16 %v819
    %v1468 = vunpack.c.h.b16 %v819
    %v1469 = vunpack.c.l.b16 %v820
    %v1470 = vunpack.c.h.b16 %v820
    %v1471 = vunpack.c.l.b16 %v821
    %v1472 = vunpack.c.h.b16 %v821
    %v1473 = vunpack.c.l.b16 %v822
    %v1474 = vunpack.c.h.b16 %v822
    %v1475 = vunpack.c.l.b16 %v823
    %v1476 = vunpack.c.h.b16 %v823
    %v1477 = vunpack.c.l.b16 %v824
    %v1478 = vunpack.c.h.b16 %v824
    %v1479 = vunpack.c.l.b16 %v825
    %v1480 = vunpack.c.h.b16 %v825
    %v1481 = vunpack.c.l.b16 %v826
    %v1482 = vunpack.c.h.b16 %v826
    %v1483 = vunpack.c.l.b16 %v827
    %v1484 = vunpack.c.h.b16 %v827
    %v1485 = vunpack.c.l.b16 %v828
    %v1486 = vunpack.c.h.b16 %v828
    %v1487 = vunpack.c.l.b16 %v829
    %v1488 = vunpack.c.h.b16 %v829
    %v1489 = vunpack.c.l.b16 %v830
    %v1490 = vunpack.c.h.b16 %v830
    %v1491 = vunpack.c.l.b16 %v831
    %v1492 = vunpack.c.h.b16 %v831
    %v1493 = vunpack.c.l.b16 %v832
    %v1494 = vunpack.c.h.b16 %v832
    %v1495 = vunpack.c.l.b16 %v833
    %v1496 = vunpack.c.h.b16 %v833
    %v1497 = vunpack.c.l.b16 %v834
    %v1498 = vunpack.c.h.b16 %v834
    %v1499 = vunpack.c.l.b16 %v835
    %v1500 = vunpack.c.h.b16 %v835
    %v1501 = vunpack.c.l.b16 %v836
    %v1502 = vunpack.c.h.b16 %v836
    %v1503 = vunpack.c.l.b16 %v837
    %v1504 = vunpack.c.h.b16 %v837
    %v1505 = vunpack.c.l.b16 %v838
    %v1506 = vunpack.c.h.b16 %v838
    %v1507 = vunpack.c.l.b16 %v839
    %v1508 = vunpack.c.h.b16 %v839
    %v1509 = vunpack.c.l.b16 %v840
    %v1510 = vunpack.c.h.b16 %v840
    %v1511 = vunpack.c.l.b16 %v841
    %v1512 = vunpack.c.h.b16 %v841
    %v1513 = vunpack.c.l.b16 %v842
    %v1514 = vunpack.c.h.b16 %v842
    %v1515 = vunpack.c.l.b16 %v843
    %v1516 = vunpack.c.h.b16 %v843
    %v1517 = vunpack.c.l.b16 %v844
    %v1518 = vunpack.c.h.b16 %v844
    %v1519 = vunpack.c.l.b16 %v845
    %v1520 = vunpack.c.h.b16 %v845
    %v1521 = vunpack.c.l.b16 %v846
    %v1522 = vunpack.c.h.b16 %v846
    %v1523 = vunpack.c.l.b16 %v847
    %v1524 = vunpack.c.h.b16 %v847
    %v1525 = vunpack.c.l.b16 %v848
    %v1526 = vunpack.c.h.b16 %v848
    %v1527 = vunpack.c.l.b16 %v849
    %v1528 = vunpack.c.h.b16 %v849
    %v1529 = vunpack.c.l.b16 %v850
    %v1530 = vunpack.c.h.b16 %v850
    %v1531 = vunpack.c.l.b16 %v851
    %v1532 = vunpack.c.h.b16 %v851
    %v1533 = vunpack.c.l.b16 %v852
    %v1534 = vunpack.c.h.b16 %v852
    %v1535 = vunpack.c.l.b16 %v853
    %v1536 = vunpack.c.h.b16 %v853
    %v1537 = vunpack.c.l.b16 %v854
    %v1538 = vunpack.c.h.b16 %v854
    %v1539 = vunpack.c.l.b16 %v855
    %v1540 = vunpack.c.h.b16 %v855
    %v1541 = vunpack.c.l.b16 %v856
    %v1542 = vunpack.c.h.b16 %v856
    %v1543 = vunpack.c.l.b16 %v857
    %v1544 = vunpack.c.h.b16 %v857
    %v1545 = vunpack.c.l.b16 %v858
    %v1546 = vunpack.c.h.b16 %v858
    %v1547 = vunpack.c.l.b16 %v859
    %v1548 = vunpack.c.h.b16 %v859
    %v1549 = vunpack.c.l.b16 %v860
    %v1550 = vunpack.c.h.b16 %v860
    %v1551 = vunpack.c.l.b16 %v861
    %v1552 = vunpack.c.h.b16 %v861
    %v1553 = vunpack.c.l.b16 %v862
    %v1554 = vunpack.c.h.b16 %v862
    %v1555 = vunpack.c.l.b16 %v863
    %v1556 = vunpack.c.h.b16 %v863
    %v1557 = vunpack.c.l.b16 %v864
    %v1558 = vunpack.c.h.b16 %v864
    %v1559 = vunpack.c.l.b16 %v865
    %v1560 = vunpack.c.h.b16 %v865
    %v1561 = vunpack.c.l.b16 %v866
    %v1562 = vunpack.c.h.b16 %v866
    %v1563 = vunpack.c.l.b16 %v867
    %v1564 = vunpack.c.h.b16 %v867
    %v1565 = vunpack.c.l.b16 %v868
    %v1566 = vunpack.c.h.b16 %v868
    %v1567 = vunpack.c.l.b16 %v869
    %v1568 = vunpack.c.h.b16 %v869
    %v1569 = vunpack.c.l.b16 %v870
    %v1570 = vunpack.c.h.b16 %v870
    %v1571 = vunpack.c.l.b16 %v871
    %v1572 = vunpack.c.h.b16 %v871
    %v1573 = vunpack.c.l.b16 %v872
    %v1574 = vunpack.c.h.b16 %v872
    %v1575 = vunpack.c.l.b16 %v873
    %v1576 = vunpack.c.h.b16 %v873
    %v1577 = vunpack.c.l.b16 %v874
    %v1578 = vunpack.c.h.b16 %v874
    %v1579 = vunpack.c.l.b16 %v875
    %v1580 = vunpack.c.h.b16 %v875
    %v1581 = vunpack.c.l.b16 %v876
    %v1582 = vunpack.c.h.b16 %v876
    %v1583 = vunpack.c.l.b16 %v877
    %v1584 = vunpack.c.h.b16 %v877
    %v1585 = vunpack.c.l.b16 %v878
    %v1586 = vunpack.c.h.b16 %v878
    %v1587 = vunpack.c.l.b16 %v879
    %v1588 = vunpack.c.h.b16 %v879
    %v1589 = vunpack.c.l.b16 %v880
    %v1590 = vunpack.c.h.b16 %v880
    %v1591 = vunpack.c.l.b16 %v881
    %v1592 = vunpack.c.h.b16 %v881
    %v1593 = vunpack.c.l.b16 %v882
    %v1594 = vunpack.c.h.b16 %v882
    %v1595 = vunpack.c.l.b16 %v883
    %v1596 = vunpack.c.h.b16 %v883
    %v1597 = vunpack.c.l.b16 %v884
    %v1598 = vunpack.c.h.b16 %v884
    %v1599 = vunpack.c.l.b16 %v885
    %v1600 = vunpack.c.h.b16 %v885
    %v1601 = vunpack.c.l.b16 %v886
    %v1602 = vunpack.c.h.b16 %v886
    %v1603 = vunpack.c.l.b16 %v887
    %v1604 = vunpack.c.h.b16 %v887
    %v1605 = vunpack.c.l.b16 %v888
    %v1606 = vunpack.c.h.b16 %v888
    %v1607 = vunpack.c.l.b16 %v889
    %v1608 = vunpack.c.h.b16 %v889
    %v1609 = vunpack.c.l.b16 %v890
    %v1610 = vunpack.c.h.b16 %v890
    %v1611 = vunpack.c.l.b16 %v891
    %v1612 = vunpack.c.h.b16 %v891
    %v1613 = vunpack.c.l.b16 %v892
    %v1614 = vunpack.c.h.b16 %v892
    %v1615 = vunpack.c.l.b16 %v893
    %v1616 = vunpack.c.h.b16 %v893
    %v1617 = vunpack.c.l.b16 %v894
    %v1618 = vunpack.c.h.b16 %v894
    %v1619 = vunpack.c.l.b16 %v895
    %v1620 = vunpack.c.h.b16 %v895
    %v1621 = vunpack.c.l.b16 %v896
    %v1622 = vunpack.c.h.b16 %v896
    %v1623 = vunpack.c.l.b16 %v897
    %v1624 = vunpack.c.h.b16 %v897
    %v1625 = vunpack.c.l.b16 %v898
    %v1626 = vunpack.c.h.b16 %v898
    %v1627 = vunpack.c.l.b16 %v899
    %v1628 = vunpack.c.h.b16 %v899
    %v1629 = vunpack.c.l.b16 %v900
    %v1630 = vunpack.c.h.b16 %v900
    %v1631 = vunpack.c.l.b16 %v901
    %v1632 = vunpack.c.h.b16 %v901
    %v1633 = vunpack.c.l.b16 %v902
    %v1634 = vunpack.c.h.b16 %v902
    %v1635 = vunpack.c.l.b16 %v903
    %v1636 = vunpack.c.h.b16 %v903
    %v1637 = vunpack.c.l.b16 %v904
    %v1638 = vunpack.c.h.b16 %v904
    %v1639 = vunpack.c.l.b16 %v905
    %v1640 = vunpack.c.h.b16 %v905
    %v1641 = vunpack.c.l.b16 %v906
    %v1642 = vunpack.c.h.b16 %v906
    %v1643 = vunpack.c.l.b16 %v907
    %v1644 = vunpack.c.h.b16 %v907
    %v1645 = vunpack.c.l.b16 %v908
    %v1646 = vunpack.c.h.b16 %v908
    %v1647 = vunpack.c.l.b16 %v909
    %v1648 = vunpack.c.h.b16 %v909
    %v1649 = vunpack.c.l.b16 %v910
    %v1650 = vunpack.c.h.b16 %v910
    %v1651 = vunpack.c.l.b16 %v911
    %v1652 = vunpack.c.h.b16 %v911
    %v1653 = vunpack.c.l.b16 %v912
    %v1654 = vunpack.c.h.b16 %v912
    %v1655 = vunpack.c.l.b16 %v913
    %v1656 = vunpack.c.h.b16 %v913
    %v1657 = vunpack.c.l.b16 %v914
    %v1658 = vunpack.c.h.b16 %v914
    %v1659 = vunpack.c.l.b16 %v915
    %v1660 = vunpack.c.h.b16 %v915
    %v1661 = vunpack.c.l.b16 %v916
    %v1662 = vunpack.c.h.b16 %v916
    %v1663 = vunpack.c.l.b16 %v917
    %v1664 = vunpack.c.h.b16 %v917
    %v1665 = vunpack.c.l.b16 %v918
    %v1666 = vunpack.c.h.b16 %v918
    %v1667 = vunpack.c.l.b16 %v919
    %v1668 = vunpack.c.h.b16 %v919
    %v1669 = vunpack.c.l.b16 %v920
    %v1670 = vunpack.c.h.b16 %v920
    %v1671 = vunpack.c.l.b16 %v921
    %v1672 = vunpack.c.h.b16 %v921
    %v1673 = vunpack.c.l.b16 %v922
    %v1674 = vunpack.c.h.b16 %v922
    %v1675 = vunpack.c.l.b16 %v923
    %v1676 = vunpack.c.h.b16 %v923
    %v1677 = vunpack.c.l.b16 %v924
    %v1678 = vunpack.c.h.b16 %v924
    %v1679 = vunpack.c.l.b16 %v925
    %v1680 = vunpack.c.h.b16 %v925
    %v1681 = vunpack.c.l.b16 %v926
    %v1682 = vunpack.c.h.b16 %v926
    %v1683 = vunpack.c.l.b16 %v927
    %v1684 = vunpack.c.h.b16 %v927
    %v1685 = vunpack.c.l.b16 %v928
    %v1686 = vunpack.c.h.b16 %v928
    %v1687 = vunpack.c.l.b16 %v929
    %v1688 = vunpack.c.h.b16 %v929
    %v1689 = vunpack.c.l.b16 %v930
    %v1690 = vunpack.c.h.b16 %v930
    %v1691 = vunpack.c.l.b16 %v931
    %v1692 = vunpack.c.h.b16 %v931
    %v1693 = vunpack.c.l.b16 %v932
    %v1694 = vunpack.c.h.b16 %v932
    %v1695 = vunpack.c.l.b16 %v933
    %v1696 = vunpack.c.h.b16 %v933
    %v1697 = vunpack.c.l.b16 %v934
    %v1698 = vunpack.c.h.b16 %v934
    %v1699 = vunpack.c.l.b16 %v935
    %v1700 = vunpack.c.h.b16 %v935
    %v1701 = vunpack.c.l.b16 %v936
    %v1702 = vunpack.c.h.b16 %v936
    %v1703 = vunpack.c.l.b16 %v937
    %v1704 = vunpack.c.h.b16 %v937
    %v1705 = vunpack.c.l.b16 %v938
    %v1706 = vunpack.c.h.b16 %v938
    %v1707 = vunpack.c.l.b16 %v939
    %v1708 = vunpack.c.h.b16 %v939
    %v1709 = vunpack.c.l.b16 %v940
    %v1710 = vunpack.c.h.b16 %v940
    %v1711 = vunpack.c.l.b16 %v941
    %v1712 = vunpack.c.h.b16 %v941
    %v1713 = vunpack.c.l.b16 %v942
    %v1714 = vunpack.c.h.b16 %v942
    %v1715 = vunpack.c.l.b16 %v943
    %v1716 = vunpack.c.h.b16 %v943
    %v1717 = vunpack.c.l.b16 %v944
    %v1718 = vunpack.c.h.b16 %v944
    %v1719 = vunpack.c.l.b16 %v945
    %v1720 = vunpack.c.h.b16 %v945
    %v1721 = vunpack.c.l.b16 %v946
    %v1722 = vunpack.c.h.b16 %v946
    %v1723 = vunpack.c.l.b16 %v947
    %v1724 = vunpack.c.h.b16 %v947
    %v1725 = vunpack.c.l.b16 %v948
    %v1726 = vunpack.c.h.b16 %v948
    %v1727 = vunpack.c.l.b16 %v949
    %v1728 = vunpack.c.h.b16 %v949
    %v1729 = vunpack.c.l.b16 %v950
    %v1730 = vunpack.c.h.b16 %v950
    %v1731 = vunpack.c.l.b16 %v951
    %v1732 = vunpack.c.h.b16 %v951
    %v1733 = vunpack.c.l.b16 %v952
    %v1734 = vunpack.c.h.b16 %v952
    %v1735 = vunpack.c.l.b16 %v953
    %v1736 = vunpack.c.h.b16 %v953
    %v1737 = vunpack.c.l.b16 %v954
    %v1738 = vunpack.c.h.b16 %v954
    %v1739 = vunpack.c.l.b16 %v955
    %v1740 = vunpack.c.h.b16 %v955
    %v1741 = vunpack.c.l.b16 %v956
    %v1742 = vunpack.c.h.b16 %v956
    %v1743 = vunpack.c.l.b16 %v957
    %v1744 = vunpack.c.h.b16 %v957
    %v1745 = vunpack.c.l.b16 %v958
    %v1746 = vunpack.c.h.b16 %v958
    %v1747 = vunpack.c.l.b16 %v959
    %v1748 = vunpack.c.h.b16 %v959
    %v1749 = vunpack.c.l.b16 %v960
    %v1750 = vunpack.c.h.b16 %v960
    %v1751 = vpack.c.b16 %v1243, %v1239
    %v1752 = vpack.c.b16 %v1244, %v1240
    %v1753 = vpack.c.b16 %v1245, %v1241
    %v1754 = vpack.c.b16 %v1246, %v1242
    %v1755 = vpack.c.b16 %v1251, %v1247
    %v1756 = vpack.c.b16 %v1252, %v1248
    %v1757 = vpack.c.b16 %v1253, %v1249
    %v1758 = vpack.c.b16 %v1254, %v1250
    %v1759 = vpack.c.b16 %v1259, %v1255
    %v1760 = vpack.c.b16 %v1260, %v1256
    %v1761 = vpack.c.b16 %v1261, %v1257
    %v1762 = vpack.c.b16 %v1262, %v1258
    %v1763 = vpack.c.b16 %v1267, %v1263
    %v1764 = vpack.c.b16 %v1268, %v1264
    %v1765 = vpack.c.b16 %v1269, %v1265
    %v1766 = vpack.c.b16 %v1270, %v1266
    %v1767 = vpack.c.b16 %v1275, %v1271
    %v1768 = vpack.c.b16 %v1276, %v1272
    %v1769 = vpack.c.b16 %v1277, %v1273
    %v1770 = vpack.c.b16 %v1278, %v1274
    %v1771 = vpack.c.b16 %v1283, %v1279
    %v1772 = vpack.c.b16 %v1284, %v1280
    %v1773 = vpack.c.b16 %v1285, %v1281
    %v1774 = vpack.c.b16 %v1286, %v1282
    %v1775 = vpack.c.b16 %v1291, %v1287
    %v1776 = vpack.c.b16 %v1292, %v1288
    %v1777 = vpack.c.b16 %v1293, %v1289
    %v1778 = vpack.c.b16 %v1294, %v1290
    %v1779 = vpack.c.b16 %v1299, %v1295
    %v1780 = vpack.c.b16 %v1300, %v1296
    %v1781 = vpack.c.b16 %v1301, %v1297
    %v1782 = vpack.c.b16 %v1302, %v1298
    %v1783 = vpack.c.b16 %v1307, %v1303
    %v1784 = vpack.c.b16 %v1308, %v1304
    %v1785 = vpack.c.b16 %v1309, %v1305
    %v1786 = vpack.c.b16 %v1310, %v1306
    %v1787 = vpack.c.b16 %v1315, %v1311
    %v1788 = vpack.c.b16 %v1316, %v1312
    %v1789 = vpack.c.b16 %v1317, %v1313
    %v1790 = vpack.c.b16 %v1318, %v1314
    %v1791 = vpack.c.b16 %v1323, %v1319
    %v1792 = vpack.c.b16 %v1324, %v1320
    %v1793 = vpack.c.b16 %v1325, %v1321
    %v1794 = vpack.c.b16 %v1326, %v1322
    %v1795 = vpack.c.b16 %v1331, %v1327
    %v1796 = vpack.c.b16 %v1332, %v1328
    %v1797 = vpack.c.b16 %v1333, %v1329
    %v1798 = vpack.c.b16 %v1334, %v1330
    %v1799 = vpack.c.b16 %v1339, %v1335
    %v1800 = vpack.c.b16 %v1340, %v1336
    %v1801 = vpack.c.b16 %v1341, %v1337
    %v1802 = vpack.c.b16 %v1342, %v1338
    %v1803 = vpack.c.b16 %v1347, %v1343
    %v1804 = vpack.c.b16 %v1348, %v1344
    %v1805 = vpack.c.b16 %v1349, %v1345
    %v1806 = vpack.c.b16 %v1350, %v1346
    %v1807 = vpack.c.b16 %v1355, %v1351
    %v1808 = vpack.c.b16 %v1356, %v1352
    %v1809 = vpack.c.b16 %v1357, %v1353
    %v1810 = vpack.c.b16 %v1358, %v1354
    %v1811 = vpack.c.b16 %v1363, %v1359
    %v1812 = vpack.c.b16 %v1364, %v1360
    %v1813 = vpack.c.b16 %v1365, %v1361
    %v1814 = vpack.c.b16 %v1366, %v1362
    %v1815 = vpack.c.b16 %v1371, %v1367
    %v1816 = vpack.c.b16 %v1372, %v1368
    %v1817 = vpack.c.b16 %v1373, %v1369
    %v1818 = vpack.c.b16 %v1374, %v1370
    %v1819 = vpack.c.b16 %v1379, %v1375
    %v1820 = vpack.c.b16 %v1380, %v1376
    %v1821 = vpack.c.b16 %v1381, %v1377
    %v1822 = vpack.c.b16 %v1382, %v1378
    %v1823 = vpack.c.b16 %v1387, %v1383
    %v1824 = vpack.c.b16 %v1388, %v1384
    %v1825 = vpack.c.b16 %v1389, %v1385
    %v1826 = vpack.c.b16 %v1390, %v1386
    %v1827 = vpack.c.b16 %v1395, %v1391
    %v1828 = vpack.c.b16 %v1396, %v1392
    %v1829 = vpack.c.b16 %v1397, %v1393
    %v1830 = vpack.c.b16 %v1398, %v1394
    %v1831 = vpack.c.b16 %v1403, %v1399
    %v1832 = vpack.c.b16 %v1404, %v1400
    %v1833 = vpack.c.b16 %v1405, %v1401
    %v1834 = vpack.c.b16 %v1406, %v1402
    %v1835 = vpack.c.b16 %v1411, %v1407
    %v1836 = vpack.c.b16 %v1412, %v1408
    %v1837 = vpack.c.b16 %v1413, %v1409
    %v1838 = vpack.c.b16 %v1414, %v1410
    %v1839 = vpack.c.b16 %v1419, %v1415
    %v1840 = vpack.c.b16 %v1420, %v1416
    %v1841 = vpack.c.b16 %v1421, %v1417
    %v1842 = vpack.c.b16 %v1422, %v1418
    %v1843 = vpack.c.b16 %v1427, %v1423
    %v1844 = vpack.c.b16 %v1428, %v1424
    %v1845 = vpack.c.b16 %v1429, %v1425
    %v1846 = vpack.c.b16 %v1430, %v1426
    %v1847 = vpack.c.b16 %v1435, %v1431
    %v1848 = vpack.c.b16 %v1436, %v1432
    %v1849 = vpack.c.b16 %v1437, %v1433
    %v1850 = vpack.c.b16 %v1438, %v1434
    %v1851 = vpack.c.b16 %v1443, %v1439
    %v1852 = vpack.c.b16 %v1444, %v1440
    %v1853 = vpack.c.b16 %v1445, %v1441
    %v1854 = vpack.c.b16 %v1446, %v1442
    %v1855 = vpack.c.b16 %v1451, %v1447
    %v1856 = vpack.c.b16 %v1452, %v1448
    %v1857 = vpack.c.b16 %v1453, %v1449
    %v1858 = vpack.c.b16 %v1454, %v1450
    %v1859 = vpack.c.b16 %v1459, %v1455
    %v1860 = vpack.c.b16 %v1460, %v1456
    %v1861 = vpack.c.b16 %v1461, %v1457
    %v1862 = vpack.c.b16 %v1462, %v1458
    %v1863 = vpack.c.b16 %v1467, %v1463
    %v1864 = vpack.c.b16 %v1468, %v1464
    %v1865 = vpack.c.b16 %v1469, %v1465
    %v1866 = vpack.c.b16 %v1470, %v1466
    %v1867 = vpack.c.b16 %v1475, %v1471
    %v1868 = vpack.c.b16 %v1476, %v1472
    %v1869 = vpack.c.b16 %v1477, %v1473
    %v1870 = vpack.c.b16 %v1478, %v1474
    %v1871 = vpack.c.b16 %v1483, %v1479
    %v1872 = vpack.c.b16 %v1484, %v1480
    %v1873 = vpack.c.b16 %v1485, %v1481
    %v1874 = vpack.c.b16 %v1486, %v1482
    %v1875 = vpack.c.b16 %v1491, %v1487
    %v1876 = vpack.c.b16 %v1492, %v1488
    %v1877 = vpack.c.b16 %v1493, %v1489
    %v1878 = vpack.c.b16 %v1494, %v1490
    %v1879 = vpack.c.b16 %v1499, %v1495
    %v1880 = vpack.c.b16 %v1500, %v1496
    %v1881 = vpack.c.b16 %v1501, %v1497
    %v1882 = vpack.c.b16 %v1502, %v1498
    %v1883 = vpack.c.b16 %v1507, %v1503
    %v1884 = vpack.c.b16 %v1508, %v1504
    %v1885 = vpack.c.b16 %v1509, %v1505
    %v1886 = vpack.c.b16 %v1510, %v1506
    %v1887 = vpack.c.b16 %v1515, %v1511
    %v1888 = vpack.c.b16 %v1516, %v1512
    %v1889 = vpack.c.b16 %v1517, %v1513
    %v1890 = vpack.c.b16 %v1518, %v1514
    %v1891 = vpack.c.b16 %v1523, %v1519
    %v1892 = vpack.c.b16 %v1524, %v1520
    %v1893 = vpack.c.b16 %v1525, %v1521
    %v1894 = vpack.c.b16 %v1526, %v1522
    %v1895 = vpack.c.b16 %v1531, %v1527
    %v1896 = vpack.c.b16 %v1532, %v1528
    %v1897 = vpack.c.b16 %v1533, %v1529
    %v1898 = vpack.c.b16 %v1534, %v1530
    %v1899 = vpack.c.b16 %v1539, %v1535
    %v1900 = vpack.c.b16 %v1540, %v1536
    %v1901 = vpack.c.b16 %v1541, %v1537
    %v1902 = vpack.c.b16 %v1542, %v1538
    %v1903 = vpack.c.b16 %v1547, %v1543
    %v1904 = vpack.c.b16 %v1548, %v1544
    %v1905 = vpack.c.b16 %v1549, %v1545
    %v1906 = vpack.c.b16 %v1550, %v1546
    %v1907 = vpack.c.b16 %v1555, %v1551
    %v1908 = vpack.c.b16 %v1556, %v1552
    %v1909 = vpack.c.b16 %v1557, %v1553
    %v1910 = vpack.c.b16 %v1558, %v1554
    %v1911 = vpack.c.b16 %v1563, %v1559
    %v1912 = vpack.c.b16 %v1564, %v1560
    %v1913 = vpack.c.b16 %v1565, %v1561
    %v1914 = vpack.c.b16 %v1566, %v1562
    %v1915 = vpack.c.b16 %v1571, %v1567
    %v1916 = vpack.c.b16 %v1572, %v1568
    %v1917 = vpack.c.b16 %v1573, %v1569
    %v1918 = vpack.c.b16 %v1574, %v1570
    %v1919 = vpack.c.b16 %v1579, %v1575
    %v1920 = vpack.c.b16 %v1580, %v1576
    %v1921 = vpack.c.b16 %v1581, %v1577
    %v1922 = vpack.c.b16 %v1582, %v1578
    %v1923 = vpack.c.b16 %v1587, %v1583
    %v1924 = vpack.c.b16 %v1588, %v1584
    %v1925 = vpack.c.b16 %v1589, %v1585
    %v1926 = vpack.c.b16 %v1590, %v1586
    %v1927 = vpack.c.b16 %v1595, %v1591
    %v1928 = vpack.c.b16 %v1596, %v1592
    %v1929 = vpack.c.b16 %v1597, %v1593
    %v1930 = vpack.c.b16 %v1598, %v1594
    %v1931 = vpack.c.b16 %v1603, %v1599
    %v1932 = vpack.c.b16 %v1604, %v1600
    %v1933 = vpack.c.b16 %v1605, %v1601
    %v1934 = vpack.c.b16 %v1606, %v1602
    %v1935 = vpack.c.b16 %v1611, %v1607
    %v1936 = vpack.c.b16 %v1612, %v1608
    %v1937 = vpack.c.b16 %v1613, %v1609
    %v1938 = vpack.c.b16 %v1614, %v1610
    %v1939 = vpack.c.b16 %v1619, %v1615
    %v1940 = vpack.c.b16 %v1620, %v1616
    %v1941 = vpack.c.b16 %v1621, %v1617
    %v1942 = vpack.c.b16 %v1622, %v1618
    %v1943 = vpack.c.b16 %v1627, %v1623
    %v1944 = vpack.c.b16 %v1628, %v1624
    %v1945 = vpack.c.b16 %v1629, %v1625
    %v1946 = vpack.c.b16 %v1630, %v1626
    %v1947 = vpack.c.b16 %v1635, %v1631
    %v1948 = vpack.c.b16 %v1636, %v1632
    %v1949 = vpack.c.b16 %v1637, %v1633
    %v1950 = vpack.c.b16 %v1638, %v1634
    %v1951 = vpack.c.b16 %v1643, %v1639
    %v1952 = vpack.c.b16 %v1644, %v1640
    %v1953 = vpack.c.b16 %v1645, %v1641
    %v1954 = vpack.c.b16 %v1646, %v1642
    %v1955 = vpack.c.b16 %v1651, %v1647
    %v1956 = vpack.c.b16 %v1652, %v1648
    %v1957 = vpack.c.b16 %v1653, %v1649
    %v1958 = vpack.c.b16 %v1654, %v1650
    %v1959 = vpack.c.b16 %v1659, %v1655
    %v1960 = vpack.c.b16 %v1660, %v1656
    %v1961 = vpack.c.b16 %v1661, %v1657
    %v1962 = vpack.c.b16 %v1662, %v1658
    %v1963 = vpack.c.b16 %v1667, %v1663
    %v1964 = vpack.c.b16 %v1668, %v1664
    %v1965 = vpack.c.b16 %v1669, %v1665
    %v1966 = vpack.c.b16 %v1670, %v1666
    %v1967 = vpack.c.b16 %v1675, %v1671
    %v1968 = vpack.c.b16 %v1676, %v1672
    %v1969 = vpack.c.b16 %v1677, %v1673
    %v1970 = vpack.c.b16 %v1678, %v1674
    %v1971 = vpack.c.b16 %v1683, %v1679
    %v1972 = vpack.c.b16 %v1684, %v1680
    %v1973 = vpack.c.b16 %v1685, %v1681
    %v1974 = vpack.c.b16 %v1686, %v1682
    %v1975 = vpack.c.b16 %v1691, %v1687
    %v1976 = vpack.c.b16 %v1692, %v1688
    %v1977 = vpack.c.b16 %v1693, %v1689
    %v1978 = vpack.c.b16 %v1694, %v1690
    %v1979 = vpack.c.b16 %v1699, %v1695
    %v1980 = vpack.c.b16 %v1700, %v1696
    %v1981 = vpack.c.b16 %v1701, %v1697
    %v1982 = vpack.c.b16 %v1702, %v1698
    %v1983 = vpack.c.b16 %v1707, %v1703
    %v1984 = vpack.c.b16 %v1708, %v1704
    %v1985 = vpack.c.b16 %v1709, %v1705
    %v1986 = vpack.c.b16 %v1710, %v1706
    %v1987 = vpack.c.b16 %v1715, %v1711
    %v1988 = vpack.c.b16 %v1716, %v1712
    %v1989 = vpack.c.b16 %v1717, %v1713
    %v1990 = vpack.c.b16 %v1718, %v1714
    %v1991 = vpack.c.b16 %v1723, %v1719
    %v1992 = vpack.c.b16 %v1724, %v1720
    %v1993 = vpack.c.b16 %v1725, %v1721
    %v1994 = vpack.c.b16 %v1726, %v1722
    %v1995 = vpack.c.b16 %v1731, %v1727
    %v1996 = vpack.c.b16 %v1732, %v1728
    %v1997 = vpack.c.b16 %v1733, %v1729
    %v1998 = vpack.c.b16 %v1734, %v1730
    %v1999 = vpack.c.b16 %v1739, %v1735
    %v2000 = vpack.c.b16 %v1740, %v1736
    %v2001 = vpack.c.b16 %v1741, %v1737
    %v2002 = vpack.c.b16 %v1742, %v1738
    %v2003 = vpack.c.b16 %v1747, %v1743
    %v2004 = vpack.c.b16 %v1748, %v1744
    %v2005 = vpack.c.b16 %v1749, %v1745
    %v2006 = vpack.c.b16 %v1750, %v1746
    %2263 = vmatprep.subr.bf16.mxu0 %v1752
    %2264 = vmatpush1.bf16.msra.mxu0 %v1751
    %2265 = vmatprep.subr.bf16.mxu0 %v1756
    %2266 = vmatpush1.bf16.msra.mxu0 %v1755
    %2267 = vmatprep.subr.bf16.mxu0 %v1760
    %2268 = vmatpush1.bf16.msra.mxu0 %v1759
    %2269 = vmatprep.subr.bf16.mxu0 %v1764
    %2270 = vmatpush1.bf16.msra.mxu0 %v1763
    %2271 = vmatprep.subr.bf16.mxu0 %v1768
    %2272 = vmatpush1.bf16.msra.mxu0 %v1767
    %2273 = vmatprep.subr.bf16.mxu0 %v1772
    %2274 = vmatpush1.bf16.msra.mxu0 %v1771
    %2275 = vmatprep.subr.bf16.mxu0 %v1776
    %2276 = vmatpush1.bf16.msra.mxu0 %v1775
    %2277 = vmatprep.subr.bf16.mxu0 %v1780
    %2278 = vmatpush1.bf16.msra.mxu0 %v1779
    %2279 = vmatprep.subr.bf16.mxu0 %v1784
    %2280 = vmatpush1.bf16.msra.mxu0 %v1783
    %2281 = vmatprep.subr.bf16.mxu0 %v1788
    %2282 = vmatpush1.bf16.msra.mxu0 %v1787
    %2283 = vmatprep.subr.bf16.mxu0 %v1792
    %2284 = vmatpush1.bf16.msra.mxu0 %v1791
    %2285 = vmatprep.subr.bf16.mxu0 %v1796
    %2286 = vmatpush1.bf16.msra.mxu0 %v1795
    %2287 = vmatprep.subr.bf16.mxu0 %v1800
    %2288 = vmatpush1.bf16.msra.mxu0 %v1799
    %2289 = vmatprep.subr.bf16.mxu0 %v1804
    %2290 = vmatpush1.bf16.msra.mxu0 %v1803
    %2291 = vmatprep.subr.bf16.mxu0 %v1808
    %2292 = vmatpush1.bf16.msra.mxu0 %v1807
    %2293 = vmatprep.subr.bf16.mxu0 %v1812
    %2294 = vmatpush1.bf16.msra.mxu0 %v1811
    %2295 = vmatprep.mubr.bf16.mxu0 %v698
    %2296 = vmatmul.mubr.bf16.gmra.mrb[0].mxu0 %v697
    %v2297 = vpop.f32.mrb[0].mxu0
    %v2298 = vadd.f32 %v966, %v2297
    %v2299 = vpop.f32.mrb[0].mxu0
    %v2300 = vadd.f32 %v970, %v2299
    %v2301 = vpop.f32.mrb[0].mxu0
    %v2302 = vpop.f32.mrb[0].mxu0
    %2303 = vdwg.mxu0
    %2304 = vmatprep.subr.bf16.mxu0 %v1816
    %2305 = vmatpush1.bf16.msra.mxu0 %v1815
    %2306 = vmatprep.subr.bf16.mxu0 %v1820
    %2307 = vmatpush1.bf16.msra.mxu0 %v1819
    %2308 = vmatprep.subr.bf16.mxu0 %v1824
    %2309 = vmatpush1.bf16.msra.mxu0 %v1823
    %2310 = vmatprep.subr.bf16.mxu0 %v1828
    %2311 = vmatpush1.bf16.msra.mxu0 %v1827
    %2312 = vmatprep.subr.bf16.mxu0 %v1832
    %2313 = vmatpush1.bf16.msra.mxu0 %v1831
    %2314 = vmatprep.subr.bf16.mxu0 %v1836
    %2315 = vmatpush1.bf16.msra.mxu0 %v1835
    %2316 = vmatprep.subr.bf16.mxu0 %v1840
    %2317 = vmatpush1.bf16.msra.mxu0 %v1839
    %2318 = vmatprep.subr.bf16.mxu0 %v1844
    %2319 = vmatpush1.bf16.msra.mxu0 %v1843
    %2320 = vmatprep.subr.bf16.mxu0 %v1848
    %2321 = vmatpush1.bf16.msra.mxu0 %v1847
    %2322 = vmatprep.subr.bf16.mxu0 %v1852
    %2323 = vmatpush1.bf16.msra.mxu0 %v1851
    %2324 = vmatprep.subr.bf16.mxu0 %v1856
    %2325 = vmatpush1.bf16.msra.mxu0 %v1855
    %2326 = vmatprep.subr.bf16.mxu0 %v1860
    %2327 = vmatpush1.bf16.msra.mxu0 %v1859
    %2328 = vmatprep.subr.bf16.mxu0 %v1864
    %2329 = vmatpush1.bf16.msra.mxu0 %v1863
    %2330 = vmatprep.subr.bf16.mxu0 %v1868
    %2331 = vmatpush1.bf16.msra.mxu0 %v1867
    %2332 = vmatprep.subr.bf16.mxu0 %v1872
    %2333 = vmatpush1.bf16.msra.mxu0 %v1871
    %2334 = vmatprep.subr.bf16.mxu0 %v1876
    %2335 = vmatpush1.bf16.msra.mxu0 %v1875
    %2336 = vmatprep.mubr.bf16.mxu0 %v700
    %2337 = vmatmul.mubr.bf16.gmra.mrb[0].mxu0 %v699
    %v2338 = vpop.f32.mrb[0].mxu0
    %v2339 = vadd.f32 %v2298, %v2338
    %v2340 = vpop.f32.mrb[0].mxu0
    %v2341 = vadd.f32 %v2300, %v2340
    %v2342 = vpop.f32.mrb[0].mxu0
    %v2343 = vpop.f32.mrb[0].mxu0
    %2344 = vdwg.mxu0
    %2345 = vmatprep.subr.bf16.mxu0 %v1880
    %2346 = vmatpush1.bf16.msra.mxu0 %v1879
    %2347 = vmatprep.subr.bf16.mxu0 %v1884
    %2348 = vmatpush1.bf16.msra.mxu0 %v1883
    %2349 = vmatprep.subr.bf16.mxu0 %v1888
    %2350 = vmatpush1.bf16.msra.mxu0 %v1887
    %2351 = vmatprep.subr.bf16.mxu0 %v1892
    %2352 = vmatpush1.bf16.msra.mxu0 %v1891
    %2353 = vmatprep.subr.bf16.mxu0 %v1896
    %2354 = vmatpush1.bf16.msra.mxu0 %v1895
    %2355 = vmatprep.subr.bf16.mxu0 %v1900
    %2356 = vmatpush1.bf16.msra.mxu0 %v1899
    %2357 = vmatprep.subr.bf16.mxu0 %v1904
    %2358 = vmatpush1.bf16.msra.mxu0 %v1903
    %2359 = vmatprep.subr.bf16.mxu0 %v1908
    %2360 = vmatpush1.bf16.msra.mxu0 %v1907
    %2361 = vmatprep.subr.bf16.mxu0 %v1912
    %2362 = vmatpush1.bf16.msra.mxu0 %v1911
    %2363 = vmatprep.subr.bf16.mxu0 %v1916
    %2364 = vmatpush1.bf16.msra.mxu0 %v1915
    %2365 = vmatprep.subr.bf16.mxu0 %v1920
    %2366 = vmatpush1.bf16.msra.mxu0 %v1919
    %2367 = vmatprep.subr.bf16.mxu0 %v1924
    %2368 = vmatpush1.bf16.msra.mxu0 %v1923
    %2369 = vmatprep.subr.bf16.mxu0 %v1928
    %2370 = vmatpush1.bf16.msra.mxu0 %v1927
    %2371 = vmatprep.subr.bf16.mxu0 %v1932
    %2372 = vmatpush1.bf16.msra.mxu0 %v1931
    %2373 = vmatprep.subr.bf16.mxu0 %v1936
    %2374 = vmatpush1.bf16.msra.mxu0 %v1935
    %2375 = vmatprep.subr.bf16.mxu0 %v1940
    %2376 = vmatpush1.bf16.msra.mxu0 %v1939
    %2377 = vmatprep.mubr.bf16.mxu0 %v702
    %2378 = vmatmul.mubr.bf16.gmra.mrb[0].mxu0 %v701
    %v2379 = vpop.f32.mrb[0].mxu0
    %v2380 = vadd.f32 %v2339, %v2379
    %v2381 = vpop.f32.mrb[0].mxu0
    %v2382 = vadd.f32 %v2341, %v2381
    %v2383 = vpop.f32.mrb[0].mxu0
    %v2384 = vpop.f32.mrb[0].mxu0
    %2385 = vdwg.mxu0
    %2386 = vmatprep.subr.bf16.mxu0 %v1944
    %2387 = vmatpush1.bf16.msra.mxu0 %v1943
    %2388 = vmatprep.subr.bf16.mxu0 %v1948
    %2389 = vmatpush1.bf16.msra.mxu0 %v1947
    %2390 = vmatprep.subr.bf16.mxu0 %v1952
    %2391 = vmatpush1.bf16.msra.mxu0 %v1951
    %2392 = vmatprep.subr.bf16.mxu0 %v1956
    %2393 = vmatpush1.bf16.msra.mxu0 %v1955
    %2394 = vmatprep.subr.bf16.mxu0 %v1960
    %2395 = vmatpush1.bf16.msra.mxu0 %v1959
    %2396 = vmatprep.subr.bf16.mxu0 %v1964
    %2397 = vmatpush1.bf16.msra.mxu0 %v1963
    %2398 = vmatprep.subr.bf16.mxu0 %v1968
    %2399 = vmatpush1.bf16.msra.mxu0 %v1967
    %2400 = vmatprep.subr.bf16.mxu0 %v1972
    %2401 = vmatpush1.bf16.msra.mxu0 %v1971
    %2402 = vmatprep.subr.bf16.mxu0 %v1976
    %2403 = vmatpush1.bf16.msra.mxu0 %v1975
    %2404 = vmatprep.subr.bf16.mxu0 %v1980
    %2405 = vmatpush1.bf16.msra.mxu0 %v1979
    %2406 = vmatprep.subr.bf16.mxu0 %v1984
    %2407 = vmatpush1.bf16.msra.mxu0 %v1983
    %2408 = vmatprep.subr.bf16.mxu0 %v1988
    %2409 = vmatpush1.bf16.msra.mxu0 %v1987
    %2410 = vmatprep.subr.bf16.mxu0 %v1992
    %2411 = vmatpush1.bf16.msra.mxu0 %v1991
    %2412 = vmatprep.subr.bf16.mxu0 %v1996
    %2413 = vmatpush1.bf16.msra.mxu0 %v1995
    %2414 = vmatprep.subr.bf16.mxu0 %v2000
    %2415 = vmatpush1.bf16.msra.mxu0 %v1999
    %2416 = vmatprep.subr.bf16.mxu0 %v2004
    %2417 = vmatpush1.bf16.msra.mxu0 %v2003
    %2418 = vmatprep.mubr.bf16.mxu0 %v704
    %2419 = vmatmul.mubr.bf16.gmra.mrb[0].mxu0 %v703
    %v2420 = vpop.f32.mrb[0].mxu0
    %v2421 = vadd.f32 %v2380, %v2420
    %v2422 = vpop.f32.mrb[0].mxu0
    %v2423 = vadd.f32 %v2382, %v2422
    %v2424 = vpop.f32.mrb[0].mxu0
    %v2425 = vpop.f32.mrb[0].mxu0
    %2426 = vdwg.mxu0
    %2427 = vmatprep.subr.bf16.mxu0 %v1754
    %2428 = vmatpush1.bf16.msra.mxu0 %v1753
    %2429 = vmatprep.subr.bf16.mxu0 %v1758
    %2430 = vmatpush1.bf16.msra.mxu0 %v1757
    %2431 = vmatprep.subr.bf16.mxu0 %v1762
    %2432 = vmatpush1.bf16.msra.mxu0 %v1761
    %2433 = vmatprep.subr.bf16.mxu0 %v1766
    %2434 = vmatpush1.bf16.msra.mxu0 %v1765
    %2435 = vmatprep.subr.bf16.mxu0 %v1770
    %2436 = vmatpush1.bf16.msra.mxu0 %v1769
    %2437 = vmatprep.subr.bf16.mxu0 %v1774
    %2438 = vmatpush1.bf16.msra.mxu0 %v1773
    %2439 = vmatprep.subr.bf16.mxu0 %v1778
    %2440 = vmatpush1.bf16.msra.mxu0 %v1777
    %2441 = vmatprep.subr.bf16.mxu0 %v1782
    %2442 = vmatpush1.bf16.msra.mxu0 %v1781
    %2443 = vmatprep.subr.bf16.mxu0 %v1786
    %2444 = vmatpush1.bf16.msra.mxu0 %v1785
    %2445 = vmatprep.subr.bf16.mxu0 %v1790
    %2446 = vmatpush1.bf16.msra.mxu0 %v1789
    %2447 = vmatprep.subr.bf16.mxu0 %v1794
    %2448 = vmatpush1.bf16.msra.mxu0 %v1793
    %2449 = vmatprep.subr.bf16.mxu0 %v1798
    %2450 = vmatpush1.bf16.msra.mxu0 %v1797
    %2451 = vmatprep.subr.bf16.mxu0 %v1802
    %2452 = vmatpush1.bf16.msra.mxu0 %v1801
    %2453 = vmatprep.subr.bf16.mxu0 %v1806
    %2454 = vmatpush1.bf16.msra.mxu0 %v1805
    %2455 = vmatprep.subr.bf16.mxu0 %v1810
    %2456 = vmatpush1.bf16.msra.mxu0 %v1809
    %2457 = vmatprep.subr.bf16.mxu0 %v1814
    %2458 = vmatpush1.bf16.msra.mxu0 %v1813
    %2459 = vmatprep.mubr.bf16.mxu0 %v698
    %2460 = vmatmul.mubr.bf16.gmra.mrb[0].mxu0 %v697
    %v2461 = vpop.f32.mrb[0].mxu0
    %v2462 = vadd.f32 %v974, %v2461
    %v2463 = vpop.f32.mrb[0].mxu0
    %v2464 = vadd.f32 %v978, %v2463
    %v2465 = vpop.f32.mrb[0].mxu0
    %v2466 = vpop.f32.mrb[0].mxu0
    %2467 = vdwg.mxu0
    %2468 = vmatprep.subr.bf16.mxu0 %v1818
    %2469 = vmatpush1.bf16.msra.mxu0 %v1817
    %2470 = vmatprep.subr.bf16.mxu0 %v1822
    %2471 = vmatpush1.bf16.msra.mxu0 %v1821
    %2472 = vmatprep.subr.bf16.mxu0 %v1826
    %2473 = vmatpush1.bf16.msra.mxu0 %v1825
    %2474 = vmatprep.subr.bf16.mxu0 %v1830
    %2475 = vmatpush1.bf16.msra.mxu0 %v1829
    %2476 = vmatprep.subr.bf16.mxu0 %v1834
    %2477 = vmatpush1.bf16.msra.mxu0 %v1833
    %2478 = vmatprep.subr.bf16.mxu0 %v1838
    %2479 = vmatpush1.bf16.msra.mxu0 %v1837
    %2480 = vmatprep.subr.bf16.mxu0 %v1842
    %2481 = vmatpush1.bf16.msra.mxu0 %v1841
    %2482 = vmatprep.subr.bf16.mxu0 %v1846
    %2483 = vmatpush1.bf16.msra.mxu0 %v1845
    %2484 = vmatprep.subr.bf16.mxu0 %v1850
    %2485 = vmatpush1.bf16.msra.mxu0 %v1849
    %2486 = vmatprep.subr.bf16.mxu0 %v1854
    %2487 = vmatpush1.bf16.msra.mxu0 %v1853
    %2488 = vmatprep.subr.bf16.mxu0 %v1858
    %2489 = vmatpush1.bf16.msra.mxu0 %v1857
    %2490 = vmatprep.subr.bf16.mxu0 %v1862
    %2491 = vmatpush1.bf16.msra.mxu0 %v1861
    %2492 = vmatprep.subr.bf16.mxu0 %v1866
    %2493 = vmatpush1.bf16.msra.mxu0 %v1865
    %2494 = vmatprep.subr.bf16.mxu0 %v1870
    %2495 = vmatpush1.bf16.msra.mxu0 %v1869
    %2496 = vmatprep.subr.bf16.mxu0 %v1874
    %2497 = vmatpush1.bf16.msra.mxu0 %v1873
    %2498 = vmatprep.subr.bf16.mxu0 %v1878
    %2499 = vmatpush1.bf16.msra.mxu0 %v1877
    %2500 = vmatprep.mubr.bf16.mxu0 %v700
    %2501 = vmatmul.mubr.bf16.gmra.mrb[0].mxu0 %v699
    %v2502 = vpop.f32.mrb[0].mxu0
    %v2503 = vadd.f32 %v2462, %v2502
    %v2504 = vpop.f32.mrb[0].mxu0
    %v2505 = vadd.f32 %v2464, %v2504
    %v2506 = vpop.f32.mrb[0].mxu0
    %v2507 = vpop.f32.mrb[0].mxu0
    %2508 = vdwg.mxu0
    %2509 = vmatprep.subr.bf16.mxu0 %v1882
    %2510 = vmatpush1.bf16.msra.mxu0 %v1881
    %2511 = vmatprep.subr.bf16.mxu0 %v1886
    %2512 = vmatpush1.bf16.msra.mxu0 %v1885
    %2513 = vmatprep.subr.bf16.mxu0 %v1890
    %2514 = vmatpush1.bf16.msra.mxu0 %v1889
    %2515 = vmatprep.subr.bf16.mxu0 %v1894
    %2516 = vmatpush1.bf16.msra.mxu0 %v1893
    %2517 = vmatprep.subr.bf16.mxu0 %v1898
    %2518 = vmatpush1.bf16.msra.mxu0 %v1897
    %2519 = vmatprep.subr.bf16.mxu0 %v1902
    %2520 = vmatpush1.bf16.msra.mxu0 %v1901
    %2521 = vmatprep.subr.bf16.mxu0 %v1906
    %2522 = vmatpush1.bf16.msra.mxu0 %v1905
    %2523 = vmatprep.subr.bf16.mxu0 %v1910
    %2524 = vmatpush1.bf16.msra.mxu0 %v1909
    %2525 = vmatprep.subr.bf16.mxu0 %v1914
    %2526 = vmatpush1.bf16.msra.mxu0 %v1913
    %2527 = vmatprep.subr.bf16.mxu0 %v1918
    %2528 = vmatpush1.bf16.msra.mxu0 %v1917
    %2529 = vmatprep.subr.bf16.mxu0 %v1922
    %2530 = vmatpush1.bf16.msra.mxu0 %v1921
    %2531 = vmatprep.subr.bf16.mxu0 %v1926
    %2532 = vmatpush1.bf16.msra.mxu0 %v1925
    %2533 = vmatprep.subr.bf16.mxu0 %v1930
    %2534 = vmatpush1.bf16.msra.mxu0 %v1929
    %2535 = vmatprep.subr.bf16.mxu0 %v1934
    %2536 = vmatpush1.bf16.msra.mxu0 %v1933
    %2537 = vmatprep.subr.bf16.mxu0 %v1938
    %2538 = vmatpush1.bf16.msra.mxu0 %v1937
    %2539 = vmatprep.subr.bf16.mxu0 %v1942
    %2540 = vmatpush1.bf16.msra.mxu0 %v1941
    %2541 = vmatprep.mubr.bf16.mxu0 %v702
    %2542 = vmatmul.mubr.bf16.gmra.mrb[0].mxu0 %v701
    %v2543 = vpop.f32.mrb[0].mxu0
    %v2544 = vadd.f32 %v2503, %v2543
    %v2545 = vpop.f32.mrb[0].mxu0
    %v2546 = vadd.f32 %v2505, %v2545
    %v2547 = vpop.f32.mrb[0].mxu0
    %v2548 = vpop.f32.mrb[0].mxu0
    %2549 = vdwg.mxu0
    %2550 = vmatprep.subr.bf16.mxu0 %v1946
    %2551 = vmatpush1.bf16.msra.mxu0 %v1945
    %2552 = vmatprep.subr.bf16.mxu0 %v1950
    %2553 = vmatpush1.bf16.msra.mxu0 %v1949
    %2554 = vmatprep.subr.bf16.mxu0 %v1954
    %2555 = vmatpush1.bf16.msra.mxu0 %v1953
    %2556 = vmatprep.subr.bf16.mxu0 %v1958
    %2557 = vmatpush1.bf16.msra.mxu0 %v1957
    %2558 = vmatprep.subr.bf16.mxu0 %v1962
    %2559 = vmatpush1.bf16.msra.mxu0 %v1961
    %2560 = vmatprep.subr.bf16.mxu0 %v1966
    %2561 = vmatpush1.bf16.msra.mxu0 %v1965
    %2562 = vmatprep.subr.bf16.mxu0 %v1970
    %2563 = vmatpush1.bf16.msra.mxu0 %v1969
    %2564 = vmatprep.subr.bf16.mxu0 %v1974
    %2565 = vmatpush1.bf16.msra.mxu0 %v1973
    %2566 = vmatprep.subr.bf16.mxu0 %v1978
    %2567 = vmatpush1.bf16.msra.mxu0 %v1977
    %2568 = vmatprep.subr.bf16.mxu0 %v1982
    %2569 = vmatpush1.bf16.msra.mxu0 %v1981
    %2570 = vmatprep.subr.bf16.mxu0 %v1986
    %2571 = vmatpush1.bf16.msra.mxu0 %v1985
    %2572 = vmatprep.subr.bf16.mxu0 %v1990
    %2573 = vmatpush1.bf16.msra.mxu0 %v1989
    %2574 = vmatprep.subr.bf16.mxu0 %v1994
    %2575 = vmatpush1.bf16.msra.mxu0 %v1993
    %2576 = vmatprep.subr.bf16.mxu0 %v1998
    %2577 = vmatpush1.bf16.msra.mxu0 %v1997
    %2578 = vmatprep.subr.bf16.mxu0 %v2002
    %2579 = vmatpush1.bf16.msra.mxu0 %v2001
    %2580 = vmatprep.subr.bf16.mxu0 %v2006
    %2581 = vmatpush1.bf16.msra.mxu0 %v2005
    %2582 = vmatprep.mubr.bf16.mxu0 %v704
    %2583 = vmatmul.mubr.bf16.gmra.mrb[0].mxu0 %v703
    %v2584 = vpop.f32.mrb[0].mxu0
    %v2585 = vadd.f32 %v2544, %v2584
    %v2586 = vpop.f32.mrb[0].mxu0
    %v2587 = vadd.f32 %v2546, %v2586
    %v2588 = vpop.f32.mrb[0].mxu0
    %v2589 = vpop.f32.mrb[0].mxu0
    %2590 = vdwg.mxu0
    %v2591 = vmax.f32 %v2421, 0.0
    %v2592 = vmax.f32 %v2423, 0.0
    %v2593 = vmax.f32 %v2585, 0.0
    %v2594 = vmax.f32 %v2587, 0.0
    %v2595 = vpack.c.bf16 %v2591, %v2591
    %v2596 = vpack.c.bf16 %v2592, %v2592
    %v2597 = vpack.c.bf16 %v2593, %v2593
    %v2598 = vpack.c.bf16 %v2594, %v2594
    %v2599 = vld [vmem:[%s5] sm:$0xff]
    %v2600 = vld [vmem:[%s5 + $0x8] sm:$0xff]
    %v2601 = vld [vmem:[%s5 + $0x10] sm:$0xff]
    %v2602 = vld [vmem:[%s5 + $0x18] sm:$0xff]
    %v2603 = vld [vmem:[%s5 + $0x20] sm:$0xff]
    %v2604 = vld [vmem:[%s5 + $0x28] sm:$0xff]
    %v2605 = vld [vmem:[%s5 + $0x30] sm:$0xff]
    %v2606 = vld [vmem:[%s5 + $0x38] sm:$0xff]
    %v2607 = vld [vmem:[%s5 + $0x40] sm:$0xff]
    %v2608 = vld [vmem:[%s5 + $0x48] sm:$0xff]
    %v2609 = vld [vmem:[%s5 + $0x50] sm:$0xff]
    %v2610 = vld [vmem:[%s5 + $0x58] sm:$0xff]
    %v2611 = vld [vmem:[%s5 + $0x60] sm:$0xff]
    %v2612 = vld [vmem:[%s5 + $0x68] sm:$0xff]
    %v2613 = vld [vmem:[%s5 + $0x70] sm:$0xff]
    %v2614 = vld [vmem:[%s5 + $0x78] sm:$0xff]
    %v2615 = vld [vmem:[%s5 + $0x80] sm:$0xff]
    %v2616 = vld [vmem:[%s5 + $0x88] sm:$0xff]
    %v2617 = vld [vmem:[%s5 + $0x90] sm:$0xff]
    %v2618 = vld [vmem:[%s5 + $0x98] sm:$0xff]
    %v2619 = vld [vmem:[%s5 + $0xa0] sm:$0xff]
    %v2620 = vld [vmem:[%s5 + $0xa8] sm:$0xff]
    %v2621 = vld [vmem:[%s5 + $0xb0] sm:$0xff]
    %v2622 = vld [vmem:[%s5 + $0xb8] sm:$0xff]
    %v2623 = vld [vmem:[%s5 + $0xc0] sm:$0xff]
    %v2624 = vld [vmem:[%s5 + $0xc8] sm:$0xff]
    %v2625 = vld [vmem:[%s5 + $0xd0] sm:$0xff]
    %v2626 = vld [vmem:[%s5 + $0xd8] sm:$0xff]
    %v2627 = vld [vmem:[%s5 + $0xe0] sm:$0xff]
    %v2628 = vld [vmem:[%s5 + $0xe8] sm:$0xff]
    %v2629 = vld [vmem:[%s5 + $0xf0] sm:$0xff]
    %v2630 = vld [vmem:[%s5 + $0xf8] sm:$0xff]
    %v2631 = vld [vmem:[%s5 + $0x100] sm:$0xff]
    %v2632 = vld [vmem:[%s5 + $0x108] sm:$0xff]
    %v2633 = vld [vmem:[%s5 + $0x110] sm:$0xff]
    %v2634 = vld [vmem:[%s5 + $0x118] sm:$0xff]
    %v2635 = vld [vmem:[%s5 + $0x120] sm:$0xff]
    %v2636 = vld [vmem:[%s5 + $0x128] sm:$0xff]
    %v2637 = vld [vmem:[%s5 + $0x130] sm:$0xff]
    %v2638 = vld [vmem:[%s5 + $0x138] sm:$0xff]
    %v2639 = vld [vmem:[%s5 + $0x140] sm:$0xff]
    %v2640 = vld [vmem:[%s5 + $0x148] sm:$0xff]
    %v2641 = vld [vmem:[%s5 + $0x150] sm:$0xff]
    %v2642 = vld [vmem:[%s5 + $0x158] sm:$0xff]
    %v2643 = vld [vmem:[%s5 + $0x160] sm:$0xff]
    %v2644 = vld [vmem:[%s5 + $0x168] sm:$0xff]
    %v2645 = vld [vmem:[%s5 + $0x170] sm:$0xff]
    %v2646 = vld [vmem:[%s5 + $0x178] sm:$0xff]
    %v2647 = vld [vmem:[%s5 + $0x180] sm:$0xff]
    %v2648 = vld [vmem:[%s5 + $0x188] sm:$0xff]
    %v2649 = vld [vmem:[%s5 + $0x190] sm:$0xff]
    %v2650 = vld [vmem:[%s5 + $0x198] sm:$0xff]
    %v2651 = vld [vmem:[%s5 + $0x1a0] sm:$0xff]
    %v2652 = vld [vmem:[%s5 + $0x1a8] sm:$0xff]
    %v2653 = vld [vmem:[%s5 + $0x1b0] sm:$0xff]
    %v2654 = vld [vmem:[%s5 + $0x1b8] sm:$0xff]
    %v2655 = vld [vmem:[%s5 + $0x1c0] sm:$0xff]
    %v2656 = vld [vmem:[%s5 + $0x1c8] sm:$0xff]
    %v2657 = vld [vmem:[%s5 + $0x1d0] sm:$0xff]
    %v2658 = vld [vmem:[%s5 + $0x1d8] sm:$0xff]
    %v2659 = vld [vmem:[%s5 + $0x1e0] sm:$0xff]
    %v2660 = vld [vmem:[%s5 + $0x1e8] sm:$0xff]
    %v2661 = vld [vmem:[%s5 + $0x1f0] sm:$0xff]
    %v2662 = vld [vmem:[%s5 + $0x1f8] sm:$0xff]
    %v2663 = vld [vmem:[#allocation2] sm:$0x3]
    %v2665 = vlaneseq
    %v2666 = vshrl.u32 %v2665, 7
    %v2667 = vsub.s32 0, %v2666
    %v2668 = vrot.slane %v2663, %v2667
    %v2669 = vlaneseq
    %v2670 = vshrl.u32 %v2669, 7
    %v2671 = vsub.s32 1, %v2670
    %v2672 = vrot.slane %v2663, %v2671
    %v2739 = vunpack.c.l.b16 %v2599
    %v2740 = vunpack.c.h.b16 %v2599
    %v2741 = vunpack.c.l.b16 %v2600
    %v2742 = vunpack.c.h.b16 %v2600
    %v2743 = vunpack.c.l.b16 %v2601
    %v2744 = vunpack.c.h.b16 %v2601
    %v2745 = vunpack.c.l.b16 %v2602
    %v2746 = vunpack.c.h.b16 %v2602
    %v2747 = vunpack.c.l.b16 %v2603
    %v2748 = vunpack.c.h.b16 %v2603
    %v2749 = vunpack.c.l.b16 %v2604
    %v2750 = vunpack.c.h.b16 %v2604
    %v2751 = vunpack.c.l.b16 %v2605
    %v2752 = vunpack.c.h.b16 %v2605
    %v2753 = vunpack.c.l.b16 %v2606
    %v2754 = vunpack.c.h.b16 %v2606
    %v2755 = vunpack.c.l.b16 %v2607
    %v2756 = vunpack.c.h.b16 %v2607
    %v2757 = vunpack.c.l.b16 %v2608
    %v2758 = vunpack.c.h.b16 %v2608
    %v2759 = vunpack.c.l.b16 %v2609
    %v2760 = vunpack.c.h.b16 %v2609
    %v2761 = vunpack.c.l.b16 %v2610
    %v2762 = vunpack.c.h.b16 %v2610
    %v2763 = vunpack.c.l.b16 %v2611
    %v2764 = vunpack.c.h.b16 %v2611
    %v2765 = vunpack.c.l.b16 %v2612
    %v2766 = vunpack.c.h.b16 %v2612
    %v2767 = vunpack.c.l.b16 %v2613
    %v2768 = vunpack.c.h.b16 %v2613
    %v2769 = vunpack.c.l.b16 %v2614
    %v2770 = vunpack.c.h.b16 %v2614
    %v2771 = vunpack.c.l.b16 %v2615
    %v2772 = vunpack.c.h.b16 %v2615
    %v2773 = vunpack.c.l.b16 %v2616
    %v2774 = vunpack.c.h.b16 %v2616
    %v2775 = vunpack.c.l.b16 %v2617
    %v2776 = vunpack.c.h.b16 %v2617
    %v2777 = vunpack.c.l.b16 %v2618
    %v2778 = vunpack.c.h.b16 %v2618
    %v2779 = vunpack.c.l.b16 %v2619
    %v2780 = vunpack.c.h.b16 %v2619
    %v2781 = vunpack.c.l.b16 %v2620
    %v2782 = vunpack.c.h.b16 %v2620
    %v2783 = vunpack.c.l.b16 %v2621
    %v2784 = vunpack.c.h.b16 %v2621
    %v2785 = vunpack.c.l.b16 %v2622
    %v2786 = vunpack.c.h.b16 %v2622
    %v2787 = vunpack.c.l.b16 %v2623
    %v2788 = vunpack.c.h.b16 %v2623
    %v2789 = vunpack.c.l.b16 %v2624
    %v2790 = vunpack.c.h.b16 %v2624
    %v2791 = vunpack.c.l.b16 %v2625
    %v2792 = vunpack.c.h.b16 %v2625
    %v2793 = vunpack.c.l.b16 %v2626
    %v2794 = vunpack.c.h.b16 %v2626
    %v2795 = vunpack.c.l.b16 %v2627
    %v2796 = vunpack.c.h.b16 %v2627
    %v2797 = vunpack.c.l.b16 %v2628
    %v2798 = vunpack.c.h.b16 %v2628
    %v2799 = vunpack.c.l.b16 %v2629
    %v2800 = vunpack.c.h.b16 %v2629
    %v2801 = vunpack.c.l.b16 %v2630
    %v2802 = vunpack.c.h.b16 %v2630
    %v2803 = vunpack.c.l.b16 %v2631
    %v2804 = vunpack.c.h.b16 %v2631
    %v2805 = vunpack.c.l.b16 %v2632
    %v2806 = vunpack.c.h.b16 %v2632
    %v2807 = vunpack.c.l.b16 %v2633
    %v2808 = vunpack.c.h.b16 %v2633
    %v2809 = vunpack.c.l.b16 %v2634
    %v2810 = vunpack.c.h.b16 %v2634
    %v2811 = vunpack.c.l.b16 %v2635
    %v2812 = vunpack.c.h.b16 %v2635
    %v2813 = vunpack.c.l.b16 %v2636
    %v2814 = vunpack.c.h.b16 %v2636
    %v2815 = vunpack.c.l.b16 %v2637
    %v2816 = vunpack.c.h.b16 %v2637
    %v2817 = vunpack.c.l.b16 %v2638
    %v2818 = vunpack.c.h.b16 %v2638
    %v2819 = vunpack.c.l.b16 %v2639
    %v2820 = vunpack.c.h.b16 %v2639
    %v2821 = vunpack.c.l.b16 %v2640
    %v2822 = vunpack.c.h.b16 %v2640
    %v2823 = vunpack.c.l.b16 %v2641
    %v2824 = vunpack.c.h.b16 %v2641
    %v2825 = vunpack.c.l.b16 %v2642
    %v2826 = vunpack.c.h.b16 %v2642
    %v2827 = vunpack.c.l.b16 %v2643
    %v2828 = vunpack.c.h.b16 %v2643
    %v2829 = vunpack.c.l.b16 %v2644
    %v2830 = vunpack.c.h.b16 %v2644
    %v2831 = vunpack.c.l.b16 %v2645
    %v2832 = vunpack.c.h.b16 %v2645
    %v2833 = vunpack.c.l.b16 %v2646
    %v2834 = vunpack.c.h.b16 %v2646
    %v2835 = vunpack.c.l.b16 %v2647
    %v2836 = vunpack.c.h.b16 %v2647
    %v2837 = vunpack.c.l.b16 %v2648
    %v2838 = vunpack.c.h.b16 %v2648
    %v2839 = vunpack.c.l.b16 %v2649
    %v2840 = vunpack.c.h.b16 %v2649
    %v2841 = vunpack.c.l.b16 %v2650
    %v2842 = vunpack.c.h.b16 %v2650
    %v2843 = vunpack.c.l.b16 %v2651
    %v2844 = vunpack.c.h.b16 %v2651
    %v2845 = vunpack.c.l.b16 %v2652
    %v2846 = vunpack.c.h.b16 %v2652
    %v2847 = vunpack.c.l.b16 %v2653
    %v2848 = vunpack.c.h.b16 %v2653
    %v2849 = vunpack.c.l.b16 %v2654
    %v2850 = vunpack.c.h.b16 %v2654
    %v2851 = vunpack.c.l.b16 %v2655
    %v2852 = vunpack.c.h.b16 %v2655
    %v2853 = vunpack.c.l.b16 %v2656
    %v2854 = vunpack.c.h.b16 %v2656
    %v2855 = vunpack.c.l.b16 %v2657
    %v2856 = vunpack.c.h.b16 %v2657
    %v2857 = vunpack.c.l.b16 %v2658
    %v2858 = vunpack.c.h.b16 %v2658
    %v2859 = vunpack.c.l.b16 %v2659
    %v2860 = vunpack.c.h.b16 %v2659
    %v2861 = vunpack.c.l.b16 %v2660
    %v2862 = vunpack.c.h.b16 %v2660
    %v2863 = vunpack.c.l.b16 %v2661
    %v2864 = vunpack.c.h.b16 %v2661
    %v2865 = vunpack.c.l.b16 %v2662
    %v2866 = vunpack.c.h.b16 %v2662
    %v2867 = vpack.c.b16 %v2741, %v2739
    %v2868 = vpack.c.b16 %v2742, %v2740
    %v2869 = vpack.c.b16 %v2745, %v2743
    %v2870 = vpack.c.b16 %v2746, %v2744
    %v2871 = vpack.c.b16 %v2749, %v2747
    %v2872 = vpack.c.b16 %v2750, %v2748
    %v2873 = vpack.c.b16 %v2753, %v2751
    %v2874 = vpack.c.b16 %v2754, %v2752
    %v2875 = vpack.c.b16 %v2757, %v2755
    %v2876 = vpack.c.b16 %v2758, %v2756
    %v2877 = vpack.c.b16 %v2761, %v2759
    %v2878 = vpack.c.b16 %v2762, %v2760
    %v2879 = vpack.c.b16 %v2765, %v2763
    %v2880 = vpack.c.b16 %v2766, %v2764
    %v2881 = vpack.c.b16 %v2769, %v2767
    %v2882 = vpack.c.b16 %v2770, %v2768
    %v2883 = vpack.c.b16 %v2773, %v2771
    %v2884 = vpack.c.b16 %v2774, %v2772
    %v2885 = vpack.c.b16 %v2777, %v2775
    %v2886 = vpack.c.b16 %v2778, %v2776
    %v2887 = vpack.c.b16 %v2781, %v2779
    %v2888 = vpack.c.b16 %v2782, %v2780
    %v2889 = vpack.c.b16 %v2785, %v2783
    %v2890 = vpack.c.b16 %v2786, %v2784
    %v2891 = vpack.c.b16 %v2789, %v2787
    %v2892 = vpack.c.b16 %v2790, %v2788
    %v2893 = vpack.c.b16 %v2793, %v2791
    %v2894 = vpack.c.b16 %v2794, %v2792
    %v2895 = vpack.c.b16 %v2797, %v2795
    %v2896 = vpack.c.b16 %v2798, %v2796
    %v2897 = vpack.c.b16 %v2801, %v2799
    %v2898 = vpack.c.b16 %v2802, %v2800
    %v2899 = vpack.c.b16 %v2805, %v2803
    %v2900 = vpack.c.b16 %v2806, %v2804
    %v2901 = vpack.c.b16 %v2809, %v2807
    %v2902 = vpack.c.b16 %v2810, %v2808
    %v2903 = vpack.c.b16 %v2813, %v2811
    %v2904 = vpack.c.b16 %v2814, %v2812
    %v2905 = vpack.c.b16 %v2817, %v2815
    %v2906 = vpack.c.b16 %v2818, %v2816
    %v2907 = vpack.c.b16 %v2821, %v2819
    %v2908 = vpack.c.b16 %v2822, %v2820
    %v2909 = vpack.c.b16 %v2825, %v2823
    %v2910 = vpack.c.b16 %v2826, %v2824
    %v2911 = vpack.c.b16 %v2829, %v2827
    %v2912 = vpack.c.b16 %v2830, %v2828
    %v2913 = vpack.c.b16 %v2833, %v2831
    %v2914 = vpack.c.b16 %v2834, %v2832
    %v2915 = vpack.c.b16 %v2837, %v2835
    %v2916 = vpack.c.b16 %v2838, %v2836
    %v2917 = vpack.c.b16 %v2841, %v2839
    %v2918 = vpack.c.b16 %v2842, %v2840
    %v2919 = vpack.c.b16 %v2845, %v2843
    %v2920 = vpack.c.b16 %v2846, %v2844
    %v2921 = vpack.c.b16 %v2849, %v2847
    %v2922 = vpack.c.b16 %v2850, %v2848
    %v2923 = vpack.c.b16 %v2853, %v2851
    %v2924 = vpack.c.b16 %v2854, %v2852
    %v2925 = vpack.c.b16 %v2857, %v2855
    %v2926 = vpack.c.b16 %v2858, %v2856
    %v2927 = vpack.c.b16 %v2861, %v2859
    %v2928 = vpack.c.b16 %v2862, %v2860
    %v2929 = vpack.c.b16 %v2865, %v2863
    %v2930 = vpack.c.b16 %v2866, %v2864
    %2995 = vmatprep.subr.bf16.mxu0 %v2868
    %2996 = vmatpush1.bf16.msra.mxu0 %v2867
    %2997 = vmatprep.subr.bf16.mxu0 %v2870
    %2998 = vmatpush1.bf16.msra.mxu0 %v2869
    %2999 = vmatprep.subr.bf16.mxu0 %v2872
    %3000 = vmatpush1.bf16.msra.mxu0 %v2871
    %3001 = vmatprep.subr.bf16.mxu0 %v2874
    %3002 = vmatpush1.bf16.msra.mxu0 %v2873
    %3003 = vmatprep.subr.bf16.mxu0 %v2876
    %3004 = vmatpush1.bf16.msra.mxu0 %v2875
    %3005 = vmatprep.subr.bf16.mxu0 %v2878
    %3006 = vmatpush1.bf16.msra.mxu0 %v2877
    %3007 = vmatprep.subr.bf16.mxu0 %v2880
    %3008 = vmatpush1.bf16.msra.mxu0 %v2879
    %3009 = vmatprep.subr.bf16.mxu0 %v2882
    %3010 = vmatpush1.bf16.msra.mxu0 %v2881
    %3011 = vmatprep.subr.bf16.mxu0 %v2884
    %3012 = vmatpush1.bf16.msra.mxu0 %v2883
    %3013 = vmatprep.subr.bf16.mxu0 %v2886
    %3014 = vmatpush1.bf16.msra.mxu0 %v2885
    %3015 = vmatprep.subr.bf16.mxu0 %v2888
    %3016 = vmatpush1.bf16.msra.mxu0 %v2887
    %3017 = vmatprep.subr.bf16.mxu0 %v2890
    %3018 = vmatpush1.bf16.msra.mxu0 %v2889
    %3019 = vmatprep.subr.bf16.mxu0 %v2892
    %3020 = vmatpush1.bf16.msra.mxu0 %v2891
    %3021 = vmatprep.subr.bf16.mxu0 %v2894
    %3022 = vmatpush1.bf16.msra.mxu0 %v2893
    %3023 = vmatprep.subr.bf16.mxu0 %v2896
    %3024 = vmatpush1.bf16.msra.mxu0 %v2895
    %3025 = vmatprep.subr.bf16.mxu0 %v2898
    %3026 = vmatpush1.bf16.msra.mxu0 %v2897
    %3027 = vmatprep.mubr.bf16.mxu0 %v2596
    %3028 = vmatmul.mubr.bf16.gmra.mrb[0].mxu0 %v2595
    %v3029 = vpop.f32.mrb[0].mxu0
    %v3030 = vadd.f32 %v2668, %v3029
    %v3031 = vpop.f32.mrb[0].mxu0
    %v3032 = vadd.f32 %v2672, %v3031
    %v3033 = vpop.f32.mrb[0].mxu0
    %v3034 = vpop.f32.mrb[0].mxu0
    %3035 = vdwg.mxu0
    %3036 = vmatprep.subr.bf16.mxu0 %v2900
    %3037 = vmatpush1.bf16.msra.mxu0 %v2899
    %3038 = vmatprep.subr.bf16.mxu0 %v2902
    %3039 = vmatpush1.bf16.msra.mxu0 %v2901
    %3040 = vmatprep.subr.bf16.mxu0 %v2904
    %3041 = vmatpush1.bf16.msra.mxu0 %v2903
    %3042 = vmatprep.subr.bf16.mxu0 %v2906
    %3043 = vmatpush1.bf16.msra.mxu0 %v2905
    %3044 = vmatprep.subr.bf16.mxu0 %v2908
    %3045 = vmatpush1.bf16.msra.mxu0 %v2907
    %3046 = vmatprep.subr.bf16.mxu0 %v2910
    %3047 = vmatpush1.bf16.msra.mxu0 %v2909
    %3048 = vmatprep.subr.bf16.mxu0 %v2912
    %3049 = vmatpush1.bf16.msra.mxu0 %v2911
    %3050 = vmatprep.subr.bf16.mxu0 %v2914
    %3051 = vmatpush1.bf16.msra.mxu0 %v2913
    %3052 = vmatprep.subr.bf16.mxu0 %v2916
    %3053 = vmatpush1.bf16.msra.mxu0 %v2915
    %3054 = vmatprep.subr.bf16.mxu0 %v2918
    %3055 = vmatpush1.bf16.msra.mxu0 %v2917
    %3056 = vmatprep.subr.bf16.mxu0 %v2920
    %3057 = vmatpush1.bf16.msra.mxu0 %v2919
    %3058 = vmatprep.subr.bf16.mxu0 %v2922
    %3059 = vmatpush1.bf16.msra.mxu0 %v2921
    %3060 = vmatprep.subr.bf16.mxu0 %v2924
    %3061 = vmatpush1.bf16.msra.mxu0 %v2923
    %3062 = vmatprep.subr.bf16.mxu0 %v2926
    %3063 = vmatpush1.bf16.msra.mxu0 %v2925
    %3064 = vmatprep.subr.bf16.mxu0 %v2928
    %3065 = vmatpush1.bf16.msra.mxu0 %v2927
    %3066 = vmatprep.subr.bf16.mxu0 %v2930
    %3067 = vmatpush1.bf16.msra.mxu0 %v2929
    %3068 = vmatprep.mubr.bf16.mxu0 %v2598
    %3069 = vmatmul.mubr.bf16.gmra.mrb[0].mxu0 %v2597
    %v3070 = vpop.f32.mrb[0].mxu0
    %v3071 = vadd.f32 %v3030, %v3070
    %v3072 = vpop.f32.mrb[0].mxu0
    %v3073 = vadd.f32 %v3032, %v3072
    %v3074 = vpop.f32.mrb[0].mxu0
    %v3075 = vpop.f32.mrb[0].mxu0
    %3076 = vdwg.mxu0
    %v3077 = vmax.f32 %v3071, 0.0
    %v3078 = vmax.f32 %v3073, 0.0
    %v3079 = vpack.c.bf16 %v3077, %v3077
    %v3080 = vpack.c.bf16 %v3078, %v3078
    %v3081 = vld [vmem:[%s7] sm:$0xf]
    %v3082 = vld [vmem:[%s7 + $0x4] sm:$0xf]
    %v3083 = vld [vmem:[%s7 + $0x8] sm:$0xf]
    %v3084 = vld [vmem:[%s7 + $0xc] sm:$0xf]
    %v3085 = vld [vmem:[%s7 + $0x10] sm:$0xf]
    %v3086 = vld [vmem:[%s7 + $0x14] sm:$0xf]
    %v3087 = vld [vmem:[%s7 + $0x18] sm:$0xf]
    %v3088 = vld [vmem:[%s7 + $0x1c] sm:$0xf]
    %v3089 = vld [vmem:[%s7 + $0x20] sm:$0xf]
    %v3090 = vld [vmem:[%s7 + $0x24] sm:$0xf]
    %v3091 = vld [vmem:[%s7 + $0x28] sm:$0xf]
    %v3092 = vld [vmem:[%s7 + $0x2c] sm:$0xf]
    %v3093 = vld [vmem:[%s7 + $0x30] sm:$0xf]
    %v3094 = vld [vmem:[%s7 + $0x34] sm:$0xf]
    %v3095 = vld [vmem:[%s7 + $0x38] sm:$0xf]
    %v3096 = vld [vmem:[%s7 + $0x3c] sm:$0xf]
    %v3097 = vld [vmem:[%s7 + $0x40] sm:$0xf]
    %v3098 = vld [vmem:[%s7 + $0x44] sm:$0xf]
    %v3099 = vld [vmem:[%s7 + $0x48] sm:$0xf]
    %v3100 = vld [vmem:[%s7 + $0x4c] sm:$0xf]
    %v3101 = vld [vmem:[%s7 + $0x50] sm:$0xf]
    %v3102 = vld [vmem:[%s7 + $0x54] sm:$0xf]
    %v3103 = vld [vmem:[%s7 + $0x58] sm:$0xf]
    %v3104 = vld [vmem:[%s7 + $0x5c] sm:$0xf]
    %v3105 = vld [vmem:[%s7 + $0x60] sm:$0xf]
    %v3106 = vld [vmem:[%s7 + $0x64] sm:$0xf]
    %v3107 = vld [vmem:[%s7 + $0x68] sm:$0xf]
    %v3108 = vld [vmem:[%s7 + $0x6c] sm:$0xf]
    %v3109 = vld [vmem:[%s7 + $0x70] sm:$0xf]
    %v3110 = vld [vmem:[%s7 + $0x74] sm:$0xf]
    %v3111 = vld [vmem:[%s7 + $0x78] sm:$0xf]
    %v3112 = vld [vmem:[%s7 + $0x7c] sm:$0xf]
    %v3113 = vld [vmem:[%s8] sm:$0x1]
    %v3115 = vlaneseq
    %v3116 = vshrl.u32 %v3115, 7
    %v3117 = vsub.s32 0, %v3116
    %v3118 = vrot.slane %v3113, %v3117
    %v3152 = vunpack.c.l.b16 %v3081
    %v3153 = vunpack.c.l.b16 %v3082
    %v3154 = vunpack.c.l.b16 %v3083
    %v3155 = vunpack.c.l.b16 %v3084
    %v3156 = vunpack.c.l.b16 %v3085
    %v3157 = vunpack.c.l.b16 %v3086
    %v3158 = vunpack.c.l.b16 %v3087
    %v3159 = vunpack.c.l.b16 %v3088
    %v3160 = vunpack.c.l.b16 %v3089
    %v3161 = vunpack.c.l.b16 %v3090
    %v3162 = vunpack.c.l.b16 %v3091
    %v3163 = vunpack.c.l.b16 %v3092
    %v3164 = vunpack.c.l.b16 %v3093
    %v3165 = vunpack.c.l.b16 %v3094
    %v3166 = vunpack.c.l.b16 %v3095
    %v3167 = vunpack.c.l.b16 %v3096
    %v3168 = vunpack.c.l.b16 %v3097
    %v3169 = vunpack.c.l.b16 %v3098
    %v3170 = vunpack.c.l.b16 %v3099
    %v3171 = vunpack.c.l.b16 %v3100
    %v3172 = vunpack.c.l.b16 %v3101
    %v3173 = vunpack.c.l.b16 %v3102
    %v3174 = vunpack.c.l.b16 %v3103
    %v3175 = vunpack.c.l.b16 %v3104
    %v3176 = vunpack.c.l.b16 %v3105
    %v3177 = vunpack.c.l.b16 %v3106
    %v3178 = vunpack.c.l.b16 %v3107
    %v3179 = vunpack.c.l.b16 %v3108
    %v3180 = vunpack.c.l.b16 %v3109
    %v3181 = vunpack.c.l.b16 %v3110
    %v3182 = vunpack.c.l.b16 %v3111
    %v3183 = vunpack.c.l.b16 %v3112
    %v3184 = vpack.c.b16 %v3153, %v3152
    %v3185 = vpack.c.b16 %v3155, %v3154
    %v3186 = vpack.c.b16 %v3157, %v3156
    %v3187 = vpack.c.b16 %v3159, %v3158
    %v3188 = vpack.c.b16 %v3161, %v3160
    %v3189 = vpack.c.b16 %v3163, %v3162
    %v3190 = vpack.c.b16 %v3165, %v3164
    %v3191 = vpack.c.b16 %v3167, %v3166
    %v3192 = vpack.c.b16 %v3169, %v3168
    %v3193 = vpack.c.b16 %v3171, %v3170
    %v3194 = vpack.c.b16 %v3173, %v3172
    %v3195 = vpack.c.b16 %v3175, %v3174
    %v3196 = vpack.c.b16 %v3177, %v3176
    %v3197 = vpack.c.b16 %v3179, %v3178
    %v3198 = vpack.c.b16 %v3181, %v3180
    %v3199 = vpack.c.b16 %v3183, %v3182
    %3216 = vmatprep.subr.bf16.mxu0 0
    %3217 = vmatpush1.bf16.msra.mxu0 %v3184
    %3218 = vmatprep.subr.bf16.mxu0 0
    %3219 = vmatpush1.bf16.msra.mxu0 %v3185
    %3220 = vmatprep.subr.bf16.mxu0 0
    %3221 = vmatpush1.bf16.msra.mxu0 %v3186
    %3222 = vmatprep.subr.bf16.mxu0 0
    %3223 = vmatpush1.bf16.msra.mxu0 %v3187
    %3224 = vmatprep.subr.bf16.mxu0 0
    %3225 = vmatpush1.bf16.msra.mxu0 %v3188
    %3226 = vmatprep.subr.bf16.mxu0 0
    %3227 = vmatpush1.bf16.msra.mxu0 %v3189
    %3228 = vmatprep.subr.bf16.mxu0 0
    %3229 = vmatpush1.bf16.msra.mxu0 %v3190
    %3230 = vmatprep.subr.bf16.mxu0 0
    %3231 = vmatpush1.bf16.msra.mxu0 %v3191
    %3232 = vmatprep.subr.bf16.mxu0 0
    %3233 = vmatpush1.bf16.msra.mxu0 %v3192
    %3234 = vmatprep.subr.bf16.mxu0 0
    %3235 = vmatpush1.bf16.msra.mxu0 %v3193
    %3236 = vmatprep.subr.bf16.mxu0 0
    %3237 = vmatpush1.bf16.msra.mxu0 %v3194
    %3238 = vmatprep.subr.bf16.mxu0 0
    %3239 = vmatpush1.bf16.msra.mxu0 %v3195
    %3240 = vmatprep.subr.bf16.mxu0 0
    %3241 = vmatpush1.bf16.msra.mxu0 %v3196
    %3242 = vmatprep.subr.bf16.mxu0 0
    %3243 = vmatpush1.bf16.msra.mxu0 %v3197
    %3244 = vmatprep.subr.bf16.mxu0 0
    %3245 = vmatpush1.bf16.msra.mxu0 %v3198
    %3246 = vmatprep.subr.bf16.mxu0 0
    %3247 = vmatpush1.bf16.msra.mxu0 %v3199
    %3248 = vmatprep.mubr.bf16.mxu0 %v3080
    %3249 = vmatmul.mubr.bf16.gmra.mrb[0].mxu0 %v3079
    %v3250 = vpop.f32.mrb[0].mxu0
    %v3251 = vadd.f32 %v3118, %v3250
    %v3252 = vpop.f32.mrb[0].mxu0
    %v3253 = vpop.f32.mrb[0].mxu0
    %v3254 = vpop.f32.mrb[0].mxu0
    %3255 = vdwg.mxu0
    %v3256 = vmax.f32 %v3251, 0.0
    %v3257 = vpack.c.bf16 %v3256, %v3256
    %v3258 = vld [vmem:[%s9] sm:$0xf]
    %v3259 = vld [vmem:[%s9 + $0x4] sm:$0xf]
    %v3260 = vld [vmem:[%s9 + $0x8] sm:$0xf]
    %v3261 = vld [vmem:[%s9 + $0xc] sm:$0xf]
    %v3262 = vld [vmem:[%s9 + $0x10] sm:$0xf]
    %v3263 = vld [vmem:[%s9 + $0x14] sm:$0xf]
    %v3264 = vld [vmem:[%s9 + $0x18] sm:$0xf]
    %v3265 = vld [vmem:[%s9 + $0x1c] sm:$0xf]
    %v3266 = vld [vmem:[%s9 + $0x20] sm:$0xf]
    %v3267 = vld [vmem:[%s9 + $0x24] sm:$0xf]
    %v3268 = vld [vmem:[%s9 + $0x28] sm:$0xf]
    %v3269 = vld [vmem:[%s9 + $0x2c] sm:$0xf]
    %v3270 = vld [vmem:[%s9 + $0x30] sm:$0xf]
    %v3271 = vld [vmem:[%s9 + $0x34] sm:$0xf]
    %v3272 = vld [vmem:[%s9 + $0x38] sm:$0xf]
    %v3273 = vld [vmem:[%s9 + $0x3c] sm:$0xf]
    %v3274 = vld [vmem:[#allocation4] sm:$0x1]
    %v3276 = vlaneseq
    %v3277 = vshrl.u32 %v3276, 7
    %v3278 = vsub.s32 0, %v3277
    %v3279 = vrot.slane %v3274, %v3278
    %v3297 = vunpack.c.l.b16 %v3258
    %v3298 = vunpack.c.l.b16 %v3259
    %v3299 = vunpack.c.l.b16 %v3260
    %v3300 = vunpack.c.l.b16 %v3261
    %v3301 = vunpack.c.l.b16 %v3262
    %v3302 = vunpack.c.l.b16 %v3263
    %v3303 = vunpack.c.l.b16 %v3264
    %v3304 = vunpack.c.l.b16 %v3265
    %v3305 = vunpack.c.l.b16 %v3266
    %v3306 = vunpack.c.l.b16 %v3267
    %v3307 = vunpack.c.l.b16 %v3268
    %v3308 = vunpack.c.l.b16 %v3269
    %v3309 = vunpack.c.l.b16 %v3270
    %v3310 = vunpack.c.l.b16 %v3271
    %v3311 = vunpack.c.l.b16 %v3272
    %v3312 = vunpack.c.l.b16 %v3273
    %v3313 = vpack.c.b16 %v3298, %v3297
    %v3314 = vpack.c.b16 %v3300, %v3299
    %v3315 = vpack.c.b16 %v3302, %v3301
    %v3316 = vpack.c.b16 %v3304, %v3303
    %v3317 = vpack.c.b16 %v3306, %v3305
    %v3318 = vpack.c.b16 %v3308, %v3307
    %v3319 = vpack.c.b16 %v3310, %v3309
    %v3320 = vpack.c.b16 %v3312, %v3311
    %3329 = vmatprep.subr.bf16.mxu0 0
    %3330 = vmatpush1.bf16.msra.mxu0 %v3313
    %3331 = vmatprep.subr.bf16.mxu0 0
    %3332 = vmatpush1.bf16.msra.mxu0 %v3314
    %3333 = vmatprep.subr.bf16.mxu0 0
    %3334 = vmatpush1.bf16.msra.mxu0 %v3315
    %3335 = vmatprep.subr.bf16.mxu0 0
    %3336 = vmatpush1.bf16.msra.mxu0 %v3316
    %3337 = vmatprep.subr.bf16.mxu0 0
    %3338 = vmatpush1.bf16.msra.mxu0 %v3317
    %3339 = vmatprep.subr.bf16.mxu0 0
    %3340 = vmatpush1.bf16.msra.mxu0 %v3318
    %3341 = vmatprep.subr.bf16.mxu0 0
    %3342 = vmatpush1.bf16.msra.mxu0 %v3319
    %3343 = vmatprep.subr.bf16.mxu0 0
    %3344 = vmatpush1.bf16.msra.mxu0 %v3320
    %3345 = vmatprep.subr.bf16.mxu0 0
    %3346 = vmatpush1.bf16.msra.mxu0 0
    %3347 = vmatprep.subr.bf16.mxu0 0
    %3348 = vmatpush1.bf16.msra.mxu0 0
    %3349 = vmatprep.subr.bf16.mxu0 0
    %3350 = vmatpush1.bf16.msra.mxu0 0
    %3351 = vmatprep.subr.bf16.mxu0 0
    %3352 = vmatpush1.bf16.msra.mxu0 0
    %3353 = vmatprep.subr.bf16.mxu0 0
    %3354 = vmatpush1.bf16.msra.mxu0 0
    %3355 = vmatprep.subr.bf16.mxu0 0
    %3356 = vmatpush1.bf16.msra.mxu0 0
    %3357 = vmatprep.subr.bf16.mxu0 0
    %3358 = vmatpush1.bf16.msra.mxu0 0
    %3359 = vmatprep.subr.bf16.mxu0 0
    %3360 = vmatpush1.bf16.msra.mxu0 0
    %3361 = vmatprep.mubr.bf16.mxu0 0
    %3362 = vmatmul.mubr.bf16.gmra.mrb[0].mxu0 %v3257
    %v3363 = vpop.f32.mrb[0].mxu0
    %v3364 = vadd.f32 %v3279, %v3363
    %v3365 = vpop.f32.mrb[0].mxu0
    %v3366 = vpop.f32.mrb[0].mxu0
    %v3367 = vpop.f32.mrb[0].mxu0
    %3368 = vdwg.mxu0
    %v3369 = vmax.f32 %v3364, 0.0
    %v3370 = vpack.c.bf16 %v3369, %v3369
    %v3371 = vld [vmem:[%s11] sm:$0xf]
    %v3372 = vld [vmem:[%s11 + $0x4] sm:$0xf]
    %v3373 = vld [vmem:[%s11 + $0x8] sm:$0xf]
    %v3374 = vld [vmem:[%s11 + $0xc] sm:$0xf]
    %v3375 = vld [vmem:[%s11 + $0x10] sm:$0xf]
    %v3376 = vld [vmem:[%s11 + $0x14] sm:$0xf]
    %v3377 = vld [vmem:[%s11 + $0x18] sm:$0xf]
    %v3378 = vld [vmem:[%s11 + $0x1c] sm:$0xf]
    %v3379 = vld [vmem:[#allocation6] sm:$0x1]
    %v3381 = vlaneseq
    %v3382 = vshrl.u32 %v3381, 7
    %v3383 = vsub.s32 0, %v3382
    %v3384 = vrot.slane %v3379, %v3383
    %v3394 = vunpack.c.l.b16 %v3371
    %v3395 = vunpack.c.l.b16 %v3372
    %v3396 = vunpack.c.l.b16 %v3373
    %v3397 = vunpack.c.l.b16 %v3374
    %v3398 = vunpack.c.l.b16 %v3375
    %v3399 = vunpack.c.l.b16 %v3376
    %v3400 = vunpack.c.l.b16 %v3377
    %v3401 = vunpack.c.l.b16 %v3378
    %v3402 = vpack.c.b16 %v3395, %v3394
    %v3403 = vpack.c.b16 %v3397, %v3396
    %v3404 = vpack.c.b16 %v3399, %v3398
    %v3405 = vpack.c.b16 %v3401, %v3400
    %vm3410 = vcmask 523264
    %v3412 = vsel %vm3410, %v3370, 0
    %3414 = vmatprep.subr.bf16.mxu0 0
    %3415 = vmatpush1.bf16.msra.mxu0 %v3402
    %3416 = vmatprep.subr.bf16.mxu0 0
    %3417 = vmatpush1.bf16.msra.mxu0 %v3403
    %3418 = vmatprep.subr.bf16.mxu0 0
    %3419 = vmatpush1.bf16.msra.mxu0 %v3404
    %3420 = vmatprep.subr.bf16.mxu0 0
    %3421 = vmatpush1.bf16.msra.mxu0 %v3405
    %3422 = vmatprep.subr.bf16.mxu0 0
    %3423 = vmatpush1.bf16.msra.mxu0 0
    %3424 = vmatprep.subr.bf16.mxu0 0
    %3425 = vmatpush1.bf16.msra.mxu0 0
    %3426 = vmatprep.subr.bf16.mxu0 0
    %3427 = vmatpush1.bf16.msra.mxu0 0
    %3428 = vmatprep.subr.bf16.mxu0 0
    %3429 = vmatpush1.bf16.msra.mxu0 0
    %3430 = vmatprep.subr.bf16.mxu0 0
    %3431 = vmatpush1.bf16.msra.mxu0 0
    %3432 = vmatprep.subr.bf16.mxu0 0
    %3433 = vmatpush1.bf16.msra.mxu0 0
    %3434 = vmatprep.subr.bf16.mxu0 0
    %3435 = vmatpush1.bf16.msra.mxu0 0
    %3436 = vmatprep.subr.bf16.mxu0 0
    %3437 = vmatpush1.bf16.msra.mxu0 0
    %3438 = vmatprep.subr.bf16.mxu0 0
    %3439 = vmatpush1.bf16.msra.mxu0 0
    %3440 = vmatprep.subr.bf16.mxu0 0
    %3441 = vmatpush1.bf16.msra.mxu0 0
    %3442 = vmatprep.subr.bf16.mxu0 0
    %3443 = vmatpush1.bf16.msra.mxu0 0
    %3444 = vmatprep.subr.bf16.mxu0 0
    %3445 = vmatpush1.bf16.msra.mxu0 0
    %3446 = vmatprep.mubr.bf16.mxu0 0
    %3447 = vmatmul.mubr.bf16.gmra.mrb[0].mxu0 %v3412
    %v3448 = vpop.f32.mrb[0].mxu0
    %v3449 = vadd.f32 %v3384, %v3448
    %v3450 = vpop.f32.mrb[0].mxu0
    %v3451 = vpop.f32.mrb[0].mxu0
    %v3452 = vpop.f32.mrb[0].mxu0
    %3453 = vdwg.mxu0
    %v3454 = vmax.f32 %v3449, 0.0
    %v3455 = vpack.c.bf16 %v3454, %v3454
    %v3456 = vld [vmem:[%s13] sm:$0xf]
    %v3457 = vld [vmem:[%s13 + $0x4] sm:$0xf]
    %v3458 = vld [vmem:[%s13 + $0x8] sm:$0xf]
    %v3459 = vld [vmem:[%s13 + $0xc] sm:$0xf]
    %v3460 = vld [vmem:[%s13 + $0x10] sm:$0xf]
    %v3461 = vld [vmem:[%s13 + $0x14] sm:$0xf]
    %v3462 = vld [vmem:[%s13 + $0x18] sm:$0xf]
    %v3463 = vld [vmem:[%s13 + $0x1c] sm:$0xf]
    %v3464 = vld [vmem:[%s13 + $0x20] sm:$0xf]
    %v3465 = vld [vmem:[%s13 + $0x24] sm:$0xf]
    %v3466 = vld [vmem:[%s13 + $0x28] sm:$0xf]
    %v3467 = vld [vmem:[%s13 + $0x2c] sm:$0xf]
    %v3468 = vld [vmem:[%s13 + $0x30] sm:$0xf]
    %v3469 = vld [vmem:[%s13 + $0x34] sm:$0xf]
    %v3470 = vld [vmem:[%s13 + $0x38] sm:$0xf]
    %v3471 = vld [vmem:[%s13 + $0x3c] sm:$0xf]
    %v3472 = vld [vmem:[#allocation7] sm:$0x1]
    %v3474 = vlaneseq
    %v3475 = vshrl.u32 %v3474, 7
    %v3476 = vsub.s32 0, %v3475
    %v3477 = vrot.slane %v3472, %v3476
    %v3495 = vunpack.c.l.b16 %v3456
    %v3496 = vunpack.c.l.b16 %v3457
    %v3497 = vunpack.c.l.b16 %v3458
    %v3498 = vunpack.c.l.b16 %v3459
    %v3499 = vunpack.c.l.b16 %v3460
    %v3500 = vunpack.c.l.b16 %v3461
    %v3501 = vunpack.c.l.b16 %v3462
    %v3502 = vunpack.c.l.b16 %v3463
    %v3503 = vunpack.c.l.b16 %v3464
    %v3504 = vunpack.c.l.b16 %v3465
    %v3505 = vunpack.c.l.b16 %v3466
    %v3506 = vunpack.c.l.b16 %v3467
    %v3507 = vunpack.c.l.b16 %v3468
    %v3508 = vunpack.c.l.b16 %v3469
    %v3509 = vunpack.c.l.b16 %v3470
    %v3510 = vunpack.c.l.b16 %v3471
    %v3511 = vpack.c.b16 %v3496, %v3495
    %v3512 = vpack.c.b16 %v3498, %v3497
    %v3513 = vpack.c.b16 %v3500, %v3499
    %v3514 = vpack.c.b16 %v3502, %v3501
    %v3515 = vpack.c.b16 %v3504, %v3503
    %v3516 = vpack.c.b16 %v3506, %v3505
    %v3517 = vpack.c.b16 %v3508, %v3507
    %v3518 = vpack.c.b16 %v3510, %v3509
    %3527 = vmatprep.subr.bf16.mxu0 0
    %3528 = vmatpush1.bf16.msra.mxu0 %v3511
    %3529 = vmatprep.subr.bf16.mxu0 0
    %3530 = vmatpush1.bf16.msra.mxu0 %v3512
    %3531 = vmatprep.subr.bf16.mxu0 0
    %3532 = vmatpush1.bf16.msra.mxu0 %v3513
    %3533 = vmatprep.subr.bf16.mxu0 0
    %3534 = vmatpush1.bf16.msra.mxu0 %v3514
    %3535 = vmatprep.subr.bf16.mxu0 0
    %3536 = vmatpush1.bf16.msra.mxu0 %v3515
    %3537 = vmatprep.subr.bf16.mxu0 0
    %3538 = vmatpush1.bf16.msra.mxu0 %v3516
    %3539 = vmatprep.subr.bf16.mxu0 0
    %3540 = vmatpush1.bf16.msra.mxu0 %v3517
    %3541 = vmatprep.subr.bf16.mxu0 0
    %3542 = vmatpush1.bf16.msra.mxu0 %v3518
    %3543 = vmatprep.subr.bf16.mxu0 0
    %3544 = vmatpush1.bf16.msra.mxu0 0
    %3545 = vmatprep.subr.bf16.mxu0 0
    %3546 = vmatpush1.bf16.msra.mxu0 0
    %3547 = vmatprep.subr.bf16.mxu0 0
    %3548 = vmatpush1.bf16.msra.mxu0 0
    %3549 = vmatprep.subr.bf16.mxu0 0
    %3550 = vmatpush1.bf16.msra.mxu0 0
    %3551 = vmatprep.subr.bf16.mxu0 0
    %3552 = vmatpush1.bf16.msra.mxu0 0
    %3553 = vmatprep.subr.bf16.mxu0 0
    %3554 = vmatpush1.bf16.msra.mxu0 0
    %3555 = vmatprep.subr.bf16.mxu0 0
    %3556 = vmatpush1.bf16.msra.mxu0 0
    %3557 = vmatprep.subr.bf16.mxu0 0
    %3558 = vmatpush1.bf16.msra.mxu0 0
    %3559 = vmatprep.mubr.bf16.mxu0 0
    %3560 = vmatmul.mubr.bf16.gmra.mrb[0].mxu0 %v3455
    %v3561 = vpop.f32.mrb[0].mxu0
    %v3562 = vadd.f32 %v3477, %v3561
    %v3563 = vpop.f32.mrb[0].mxu0
    %v3564 = vpop.f32.mrb[0].mxu0
    %v3565 = vpop.f32.mrb[0].mxu0
    %3566 = vdwg.mxu0
    %v3567 = vpack.c.bf16 %v3562, %v3562
    %3568 = vst [vmem:[%s15] sm:$0xf] %v3567
    // Predicated region
    $region78: #{mynet7_forward.1} parent=1 // pred_check
      _
    $region79: #{mynet7_forward.1} parent=1 // pred_check_branch
      %3570 = sbr.rel (0) target = $region81
    $region80: #{mynet7_forward.1} parent=1 // pred_region
      _
    $region81: #{mynet7_forward.1} parent=1 // pred_fallthru
      _
    // Predicated region
    $region82: #{mynet7_forward.1} parent=1 // pred_check
      _
    $region83: #{mynet7_forward.1} parent=1 // pred_check_branch
      %3572 = sbr.rel (0) target = $region85
    $region84: #{mynet7_forward.1} parent=1 // pred_region
      _
    $region85: #{mynet7_forward.1} parent=1 // pred_fallthru
      _
    %3573 = vsyncpa [#allocation3], 1
    %3574 = vsyncpa [#allocation5], 1
    %3575 = vsyncpa [#allocation8], 1

</llo_original>
